<compile_context>
chip_gen: v7x
topology: tpu7x:2x2x1
jax: 0.10.0
libtpu: 0.0.40
codegen_flags: <defaults>
</compile_context>

<pallas_src>
import functools

import jax
import jax.numpy as jnp
from jax.experimental import pallas as pl
from jax.experimental.pallas import tpu as pltpu


# ----------------------------------------------------------------------------
# The fused encoder kernel (one grid step == one image, start to finish)
# ----------------------------------------------------------------------------
def _encoder_kernel(*refs, nrl, C1, C2, H2, W2, Q1, P2, P3, R02, R03):
    """refs = (a1, w1, b1, w2, b2, w3, b3, [res_w1_i, res_w2_i]*nrl, out,
               f2, m2, f3, m3 scratch).

    a1 : [1, H1*W1, 16*Cin] bf16  host-prebuilt conv1 im2col, rows ordered
                                  (row-parity a, col-parity b, i, j), (oh,ow)=(2i+a,2j+b)
    f2 : [(H2+1)*P2, 4*C1] f32    conv2's space-to-depth frame (row pitch P2)
    m2 : [R02, 16*C1]      f32    conv2 im2col
    f3 : [(H2+2)*P3, C2]   f32    3x3 frame shared by conv3 + residual convs
    m3 : [R03, 9*C2]       f32    3x3 im2col
    """
    (a1_ref, w1_ref, b1_ref, w2_ref, b2_ref, w3_ref, b3_ref) = refs[:7]
    rw = refs[7:7 + 2 * nrl]
    o_ref = refs[7 + 2 * nrl]
    f2, m2, f3, m3 = refs[8 + 2 * nrl:]

    f32 = jnp.float32
    bf16 = jnp.bfloat16

    # ---- conv1: 4x4 / stride-2 / pad-1 as ONE matmul on the prebuilt im2col --
    out1 = jnp.dot(a1_ref[0], w1_ref[...], preferred_element_type=f32)
    out1 = jnp.maximum(out1 + b1_ref[...], 0.0)          # [H1*W1, C1] f32, ReLU fused

    # ---- scatter conv1 output into conv2's space-to-depth frame F2 -----------
    # F2 pixel (r, c), channel block (py, px) holds relu(conv1)[2r+py-1, 2c+px-1]
    # (zero outside).  Parity block (a, b) -> channel block cb = (1-a)*2+(1-b),
    # placed at frame pixel (a+i, b+j).  Only static slices needed.
    f2[...] = jnp.zeros(f2.shape, f2.dtype)
    for a in range(2):
        for b in range(2):
            cb = (1 - a) * 2 + (1 - b)
            base = (2 * a + b) * Q1
            for i in range(H2):
                row = (a + i) * P2 + b
                f2[row:row + W2, cb * C1:(cb + 1) * C1] = \
                    out1[base + i * W2: base + (i + 1) * W2, :]

    # ---- conv2: 4x4 / stride-2 / pad-1 == 2x2 stride-1 conv over F2 ----------
    # tap-folded into one [R02, 16*C1] @ [16*C1, C2] matmul
    for ty in range(2):
        for tx in range(2):
            t = ty * 2 + tx
            m2[:, t * 4 * C1:(t + 1) * 4 * C1] = \
                f2[ty * P2 + tx: ty * P2 + tx + R02, :]
    h2 = jnp.dot(m2[...].astype(bf16), w2_ref[...], preferred_element_type=f32)
    h2 = jnp.maximum(h2 + b2_ref[...], 0.0)              # [R02, C2] f32, row pitch P2

    # ---- shared 3x3 / stride-1 / pad-1 machinery (conv3 + residual convs) ----
    def fill_f3(src, src_pitch):
        # copy the H2 x W2 valid pixels of `src` into F3's interior
        for r in range(H2):
            dst = (1 + r) * P3 + 1
            f3[dst:dst + W2, :] = src[r * src_pitch: r * src_pitch + W2, :]

    def conv3x3(w_ref_):
        # tap-folded 3x3 conv: one [R03, 9*C2] @ [9*C2, n] matmul
        for dy in range(3):
            for dx in range(3):
                t = dy * 3 + dx
                m3[:, t * C2:(t + 1) * C2] = \
                    f3[dy * P3 + dx: dy * P3 + dx + R03, :]
        return jnp.dot(m3[...].astype(bf16), w_ref_[...],
                       preferred_element_type=f32)

    f3[...] = jnp.zeros(f3.shape, f3.dtype)              # zero border, kept forever

    # ---- conv3: 3x3 / stride-1 / pad-1 (+bias, no activation) ---------------
    fill_f3(h2, P2)
    x = conv3x3(w3_ref) + b3_ref[...]                    # [R03, C2] f32, row pitch P3

    # ---- residual stack: x = x + Conv1x1(ReLU(Conv3x3(ReLU(x)))); final ReLU -
    for li in range(nrl):
        fill_f3(jnp.maximum(x, 0.0), P3)
        h = jnp.maximum(conv3x3(rw[2 * li]), 0.0).astype(bf16)       # [R03, nrh]
        x = x + jnp.dot(h, rw[2 * li + 1][...], preferred_element_type=f32)
    x = jnp.maximum(x, 0.0)

    # ---- write the H2*W2 valid rows (padded-pitch junk rows are dropped) -----
    for r in range(H2):
        o_ref[0, r, :, :] = x[r * P3: r * P3 + W2, :].astype(o_ref.dtype)


# ----------------------------------------------------------------------------
# Parameters: deterministic synthetic init + one-time kernel-ready conversion
# ----------------------------------------------------------------------------
def init_params(key, config):
    cin = config['in_channels']
    nh = config['num_hiddens']
    nrh = config['num_residual_hiddens']
    nrl = config['num_residual_layers']

    def w(key, kh, kw, ci, co):
        fan_in = kh * kw * ci
        return (jax.random.normal(key, (kh, kw, ci, co), jnp.float32)
                * (1.0 / jnp.sqrt(fan_in)))

    keys = jax.random.split(key, 6 + 2 * nrl)
    p = {}
    p['conv1_w'] = w(keys[0], 4, 4, cin, nh // 2)
    p['conv1_b'] = 0.01 * jax.random.normal(keys[1], (nh // 2,), jnp.float32)
    p['conv2_w'] = w(keys[2], 4, 4, nh // 2, nh)
    p['conv2_b'] = 0.01 * jax.random.normal(keys[3], (nh,), jnp.float32)
    p['conv3_w'] = w(keys[4], 3, 3, nh, nh)
    p['conv3_b'] = 0.01 * jax.random.normal(keys[5], (nh,), jnp.float32)
    for i in range(nrl):
        p[f'res{i}_w1'] = w(keys[6 + 2 * i], 3, 3, nh, nrh)   # 3x3, bias-free
        p[f'res{i}_w2'] = w(keys[7 + 2 * i], 1, 1, nrh, nh)   # 1x1, bias-free
    return p


def prepare_params(params, config):
    """One-time conversion to kernel-ready (flattened, bf16) weights."""
    nh = config['num_hiddens']
    nrl = config['num_residual_layers']
    C1, C2 = nh // 2, nh
    p = {}
    w1 = params['conv1_w']                                   # [4,4,Cin,C1]
    cin = w1.shape[2]
    p['conv1_w'] = w1.reshape(16 * cin, C1).astype(jnp.bfloat16)
    p['conv1_b'] = params['conv1_b'].reshape(1, -1).astype(jnp.float32)
    w2 = params['conv2_w'].reshape(2, 2, 2, 2, C1, C2)       # [ty,py,tx,px,ci,co]
    w2 = jnp.transpose(w2, (0, 2, 1, 3, 4, 5))               # [ty,tx,py,px,ci,co]
    p['conv2_w'] = w2.reshape(16 * C1, C2).astype(jnp.bfloat16)
    p['conv2_b'] = params['conv2_b'].reshape(1, -1).astype(jnp.float32)
    p['conv3_w'] = params['conv3_w'].reshape(9 * C2, C2).astype(jnp.bfloat16)
    p['conv3_b'] = params['conv3_b'].reshape(1, -1).astype(jnp.float32)
    for i in range(nrl):
        rw1 = params[f'res{i}_w1']                           # [3,3,C2,nrh]
        rw2 = params[f'res{i}_w2']                           # [1,1,nrh,C2]
        p[f'res{i}_w1'] = rw1.reshape(9 * C2, -1).astype(jnp.bfloat16)
        p[f'res{i}_w2'] = rw2.reshape(rw2.shape[2], rw2.shape[3]).astype(jnp.bfloat16)
    return p


# ----------------------------------------------------------------------------
# Forward pass (matches the PyTorch ResNetEncoder semantics)
# ----------------------------------------------------------------------------
def resnet_encoder_forward(prep, x_nchw, config):
    N, Cin, H, W = x_nchw.shape
    nh = config['num_hiddens']
    nrl = config['num_residual_layers']
    C1, C2 = nh // 2, nh
    assert H % 4 == 0 and W % 4 == 0, "spatial dims must be divisible by 4"

    H1, W1 = H // 2, W // 2          # after conv1
    H2, W2 = H // 4, W // 4          # after conv2 (== conv3 == residual stack)
    K1 = 16 * Cin
    R1 = H1 * W1
    Q1 = H2 * W2
    P2 = -(-(W2 + 1) // 8) * 8       # row pitch of F2 (sublane aligned)
    P3 = -(-(W2 + 2) // 8) * 8       # row pitch of F3
    R02 = (H2 - 1) * P2 + W2         # rows computed by conv2
    R03 = (H2 - 1) * P3 + W2         # rows computed by conv3 / residual convs

    # One-time, tiny host prep of conv1's im2col (the only host-side re-layout).
    # Rows are ordered (row-parity a, col-parity b, i, j) so that the kernel can
    # build conv2's space-to-depth frame with static slices only.
    x_nhwc = jnp.transpose(x_nchw, (0, 2, 3, 1)).astype(jnp.float32)
    xp = jnp.pad(x_nhwc, ((0, 0), (1, 1), (1, 1), (0, 0)))
    taps = [xp[:, dy:dy + 2 * H1:2, dx:dx + 2 * W1:2, :]
            for dy in range(4) for dx in range(4)]
    a1 = jnp.concatenate(taps, axis=-1)                      # [N,H1,W1,16*Cin]
    a1 = a1.reshape(N, H2, 2, W2, 2, K1)                     # (i, a, j, b, k)
    a1 = jnp.transpose(a1, (0, 2, 4, 1, 3, 5))               # (a, b, i, j, k)
    a1 = a1.reshape(N, R1, K1).astype(jnp.bfloat16)

    weights = [prep['conv1_w'], prep['conv1_b'],
               prep['conv2_w'], prep['conv2_b'],
               prep['conv3_w'], prep['conv3_b']]
    for i in range(nrl):
        weights += [prep[f'res{i}_w1'], prep[f'res{i}_w2']]

    in_specs = [pl.BlockSpec((1, R1, K1), lambda i: (i, 0, 0))]
    in_specs += [pl.BlockSpec(w.shape, lambda i: (0, 0)) for w in weights]

    kernel = functools.partial(
        _encoder_kernel, nrl=nrl, C1=C1, C2=C2, H2=H2, W2=W2,
        Q1=Q1, P2=P2, P3=P3, R02=R02, R03=R03)

    out = pl.pallas_call(
        kernel,
        out_shape=jax.ShapeDtypeStruct((N, H2, W2, C2), jnp.float32),
        grid=(N,),
        in_specs=in_specs,
        out_specs=pl.BlockSpec((1, H2, W2, C2), lambda i: (i, 0, 0, 0)),
        scratch_shapes=[
            pltpu.VMEM(((H2 + 1) * P2, 4 * C1), jnp.float32),   # F2 (s2d frame)
            pltpu.VMEM((R02, 16 * C1), jnp.float32),            # M2 (conv2 im2col)
            pltpu.VMEM(((H2 + 2) * P3, C2), jnp.float32),       # F3 (3x3 frame)
            pltpu.VMEM((R03, 9 * C2), jnp.float32),             # M3 (3x3 im2col)
        ],
        compiler_params=pltpu.CompilerParams(
            dimension_semantics=("parallel",)),
    )(a1, *weights)

    return jnp.transpose(out, (0, 3, 1, 2))                  # NHWC -> NCHW


# ----------------------------------------------------------------------------
# Pure-JAX reference (for a correctness cross-check in __main__)
# ----------------------------------------------------------------------------
def reference_forward(params, x_nchw, config):
    dn = ('NHWC', 'HWIO', 'NHWC')
    prec = jax.lax.Precision.HIGHEST

    def conv(x, w, b, stride, pad):
        y = jax.lax.conv_general_dilated(
            x, w, (stride, stride), [(pad, pad), (pad, pad)],
            dimension_numbers=dn, precision=prec)
        if b is not None:
            y = y + b.reshape(1, 1, 1, -1)
        return y

    x = jnp.transpose(x_nchw, (0, 2, 3, 1)).astype(jnp.float32)
    x = jax.nn.relu(conv(x, params['conv1_w'], params['conv1_b'], 2, 1))
    x = jax.nn.relu(conv(x, params['conv2_w'], params['conv2_b'], 2, 1))
    x = conv(x, params['conv3_w'], params['conv3_b'], 1, 1)
    for i in range(config['num_residual_layers']):
        h = conv(jax.nn.relu(x), params[f'res{i}_w1'], None, 1, 1)
        h = conv(jax.nn.relu(h), params[f'res{i}_w2'], None, 1, 0)
        x = x + h
    x = jax.nn.relu(x)
    return jnp.transpose(x, (0, 3, 1, 2))


if __name__ == "__main__":
    config = {
        'in_channels': 4,
        'num_hiddens': 32,
        'num_residual_layers': 2,
        'num_residual_hiddens': 8,
    }
    root = jax.random.PRNGKey(0)
    k_params, k_x = jax.random.split(root)
    params = init_params(k_params, config)
    prep = prepare_params(params, config)

    # NCHW input like the PyTorch module expects
    x = jax.random.normal(k_x, (2, config['in_channels'], 16, 16), jnp.float32)

    fwd = jax.jit(lambda p, xx: resnet_encoder_forward(p, xx, config))
    out = jax.block_until_ready(fwd(prep, x))
    assert out.shape == (2, config['num_hiddens'], 4, 4), out.shape
    assert bool(jnp.all(out >= 0.0))                          # final ReLU

    # Correctness cross-check against a pure-JAX f32 reference (bf16 tolerance).
    ref = jax.block_until_ready(jax.jit(
        lambda p, xx: reference_forward(p, xx, config))(params, x))
    max_err = float(jnp.max(jnp.abs(out - ref)))
    tol = 0.05 * float(jnp.max(jnp.abs(ref))) + 0.02
    assert max_err < tol, (max_err, tol)

    print("KERNEL_OK")
</pallas_src>

<mosaic_0001>
module attributes {stable_mosaic.version = 11 : i64} {
  func.func @_encoder_kernel(%arg0: i32, %arg1: memref<1x64x64xbf16, #tpu.memory_space<vmem>>, %arg2: memref<64x16xbf16, #tpu.memory_space<vmem>>, %arg3: memref<1x16xf32, #tpu.memory_space<vmem>>, %arg4: memref<256x32xbf16, #tpu.memory_space<vmem>>, %arg5: memref<1x32xf32, #tpu.memory_space<vmem>>, %arg6: memref<288x32xbf16, #tpu.memory_space<vmem>>, %arg7: memref<1x32xf32, #tpu.memory_space<vmem>>, %arg8: memref<288x8xbf16, #tpu.memory_space<vmem>>, %arg9: memref<8x32xbf16, #tpu.memory_space<vmem>>, %arg10: memref<288x8xbf16, #tpu.memory_space<vmem>>, %arg11: memref<8x32xbf16, #tpu.memory_space<vmem>>, %arg12: memref<1x4x4x32xf32, #tpu.memory_space<vmem>>, %arg13: memref<40x64xf32, #tpu.memory_space<vmem>>, %arg14: memref<28x256xf32, #tpu.memory_space<vmem>>, %arg15: memref<48x32xf32, #tpu.memory_space<vmem>>, %arg16: memref<28x288xf32, #tpu.memory_space<vmem>>) attributes {dimension_semantics = [#tpu.dimension_semantics<parallel>], iteration_bounds = array<i64: 2>, scalar_prefetch = 0 : i64, scratch_operands = 4 : i64, tpu.core_type = #tpu.core_type<tc>, window_params = [{transform_indices = @transform_0, window_bounds = array<i64: 1, 64, 64>}, {pipeline_mode = #tpu.pipeline_mode<synchronous>, transform_indices = @transform_1, window_bounds = array<i64: 64, 16>}, {pipeline_mode = #tpu.pipeline_mode<synchronous>, transform_indices = @transform_2, window_bounds = array<i64: 1, 16>}, {pipeline_mode = #tpu.pipeline_mode<synchronous>, transform_indices = @transform_3, window_bounds = array<i64: 256, 32>}, {pipeline_mode = #tpu.pipeline_mode<synchronous>, transform_indices = @transform_4, window_bounds = array<i64: 1, 32>}, {pipeline_mode = #tpu.pipeline_mode<synchronous>, transform_indices = @transform_5, window_bounds = array<i64: 288, 32>}, {pipeline_mode = #tpu.pipeline_mode<synchronous>, transform_indices = @transform_6, window_bounds = array<i64: 1, 32>}, {pipeline_mode = #tpu.pipeline_mode<synchronous>, transform_indices = @transform_7, window_bounds = array<i64: 288, 8>}, {pipeline_mode = #tpu.pipeline_mode<synchronous>, transform_indices = @transform_8, window_bounds = array<i64: 8, 32>}, {pipeline_mode = #tpu.pipeline_mode<synchronous>, transform_indices = @transform_9, window_bounds = array<i64: 288, 8>}, {pipeline_mode = #tpu.pipeline_mode<synchronous>, transform_indices = @transform_10, window_bounds = array<i64: 8, 32>}, {transform_indices = @transform_11, window_bounds = array<i64: 1, 4, 4, 32>}]} {
    %c0 = arith.constant 0 : index
    %c0_0 = arith.constant 0 : index
    %c0_1 = arith.constant 0 : index
    %0 = vector.load %arg1[%c0, %c0_0, %c0_1] : memref<1x64x64xbf16, #tpu.memory_space<vmem>>, vector<1x64x64xbf16>
    %1 = vector.shape_cast %0 : vector<1x64x64xbf16> to vector<64x64xbf16>
    %c0_2 = arith.constant 0 : index
    %c0_3 = arith.constant 0 : index
    %2 = vector.load %arg2[%c0_2, %c0_3] : memref<64x16xbf16, #tpu.memory_space<vmem>>, vector<64x16xbf16>
    %cst = arith.constant dense<0.000000e+00> : vector<64x16xf32>
    %3 = tpu.matmul %1, %2, %cst {dimension_numbers = #tpu.dot_dimension_numbers<[1], [0], [0], [1], [0, 0, 1, 1], [], []>} : vector<64x64xbf16>, vector<64x16xbf16>, vector<64x16xf32> -> vector<64x16xf32>
    %c0_4 = arith.constant 0 : index
    %c0_5 = arith.constant 0 : index
    %4 = vector.load %arg3[%c0_4, %c0_5] : memref<1x16xf32, #tpu.memory_space<vmem>>, vector<1x16xf32>
    %5 = vector.broadcast %4 : vector<1x16xf32> to vector<64x16xf32>
    %6 = arith.addf %3, %5 : vector<64x16xf32>
    %cst_6 = arith.constant 0.000000e+00 : f32
    %7 = vector.broadcast %cst_6 : f32 to vector<64x16xf32>
    %8 = arith.maximumf %6, %7 : vector<64x16xf32>
    %cst_7 = arith.constant 0.000000e+00 : f32
    %9 = vector.broadcast %cst_7 : f32 to vector<40x64xf32>
    %c0_8 = arith.constant 0 : index
    %c0_9 = arith.constant 0 : index
    %10 = vector.load %arg13[%c0_8, %c0_9] : memref<40x64xf32, #tpu.memory_space<vmem>>, vector<40x64xf32>
    tpu.vector_store %arg13[%c0_8, %c0_9], %9 {strides = array<i32>} : memref<40x64xf32, #tpu.memory_space<vmem>>, vector<40x64xf32>,
    %11 = vector.extract_strided_slice %8 {offsets = [0, 0], sizes = [4, 16], strides = [1, 1]} : vector<64x16xf32> to vector<4x16xf32>
    %c0_10 = arith.constant 0 : index
    %c48 = arith.constant 48 : index
    %12 = vector.load %arg13[%c0_10, %c48] : memref<40x64xf32, #tpu.memory_space<vmem>>, vector<4x16xf32>
    tpu.vector_store %arg13[%c0_10, %c48], %11 {strides = array<i32>} : memref<40x64xf32, #tpu.memory_space<vmem>>, vector<4x16xf32>,
    %13 = vector.extract_strided_slice %8 {offsets = [4, 0], sizes = [4, 16], strides = [1, 1]} : vector<64x16xf32> to vector<4x16xf32>
    %c8 = arith.constant 8 : index
    %c48_11 = arith.constant 48 : index
    %14 = vector.load %arg13[%c8, %c48_11] : memref<40x64xf32, #tpu.memory_space<vmem>>, vector<4x16xf32>
    tpu.vector_store %arg13[%c8, %c48_11], %13 {strides = array<i32>} : memref<40x64xf32, #tpu.memory_space<vmem>>, vector<4x16xf32>,
    %15 = vector.extract_strided_slice %8 {offsets = [8, 0], sizes = [4, 16], strides = [1, 1]} : vector<64x16xf32> to vector<4x16xf32>
    %c16 = arith.constant 16 : index
    %c48_12 = arith.constant 48 : index
    %16 = vector.load %arg13[%c16, %c48_12] : memref<40x64xf32, #tpu.memory_space<vmem>>, vector<4x16xf32>
    tpu.vector_store %arg13[%c16, %c48_12], %15 {strides = array<i32>} : memref<40x64xf32, #tpu.memory_space<vmem>>, vector<4x16xf32>,
    %17 = vector.extract_strided_slice %8 {offsets = [12, 0], sizes = [4, 16], strides = [1, 1]} : vector<64x16xf32> to vector<4x16xf32>
    %c24 = arith.constant 24 : index
    %c48_13 = arith.constant 48 : index
    %18 = vector.load %arg13[%c24, %c48_13] : memref<40x64xf32, #tpu.memory_space<vmem>>, vector<4x16xf32>
    tpu.vector_store %arg13[%c24, %c48_13], %17 {strides = array<i32>} : memref<40x64xf32, #tpu.memory_space<vmem>>, vector<4x16xf32>,
    %19 = vector.extract_strided_slice %8 {offsets = [16, 0], sizes = [4, 16], strides = [1, 1]} : vector<64x16xf32> to vector<4x16xf32>
    %c1 = arith.constant 1 : index
    %c32 = arith.constant 32 : index
    %20 = vector.load %arg13[%c1, %c32] : memref<40x64xf32, #tpu.memory_space<vmem>>, vector<4x16xf32>
    tpu.vector_store %arg13[%c1, %c32], %19 {strides = array<i32>} : memref<40x64xf32, #tpu.memory_space<vmem>>, vector<4x16xf32>,
    %21 = vector.extract_strided_slice %8 {offsets = [20, 0], sizes = [4, 16], strides = [1, 1]} : vector<64x16xf32> to vector<4x16xf32>
    %c9 = arith.constant 9 : index
    %c32_14 = arith.constant 32 : index
    %22 = vector.load %arg13[%c9, %c32_14] : memref<40x64xf32, #tpu.memory_space<vmem>>, vector<4x16xf32>
    tpu.vector_store %arg13[%c9, %c32_14], %21 {strides = array<i32>} : memref<40x64xf32, #tpu.memory_space<vmem>>, vector<4x16xf32>,
    %23 = vector.extract_strided_slice %8 {offsets = [24, 0], sizes = [4, 16], strides = [1, 1]} : vector<64x16xf32> to vector<4x16xf32>
    %c17 = arith.constant 17 : index
    %c32_15 = arith.constant 32 : index
    %24 = vector.load %arg13[%c17, %c32_15] : memref<40x64xf32, #tpu.memory_space<vmem>>, vector<4x16xf32>
    tpu.vector_store %arg13[%c17, %c32_15], %23 {strides = array<i32>} : memref<40x64xf32, #tpu.memory_space<vmem>>, vector<4x16xf32>,
    %25 = vector.extract_strided_slice %8 {offsets = [28, 0], sizes = [4, 16], strides = [1, 1]} : vector<64x16xf32> to vector<4x16xf32>
    %c25 = arith.constant 25 : index
    %c32_16 = arith.constant 32 : index
    %26 = vector.load %arg13[%c25, %c32_16] : memref<40x64xf32, #tpu.memory_space<vmem>>, vector<4x16xf32>
    tpu.vector_store %arg13[%c25, %c32_16], %25 {strides = array<i32>} : memref<40x64xf32, #tpu.memory_space<vmem>>, vector<4x16xf32>,
    %27 = vector.extract_strided_slice %8 {offsets = [32, 0], sizes = [4, 16], strides = [1, 1]} : vector<64x16xf32> to vector<4x16xf32>
    %c8_17 = arith.constant 8 : index
    %c16_18 = arith.constant 16 : index
    %28 = vector.load %arg13[%c8_17, %c16_18] : memref<40x64xf32, #tpu.memory_space<vmem>>, vector<4x16xf32>
    tpu.vector_store %arg13[%c8_17, %c16_18], %27 {strides = array<i32>} : memref<40x64xf32, #tpu.memory_space<vmem>>, vector<4x16xf32>,
    %29 = vector.extract_strided_slice %8 {offsets = [36, 0], sizes = [4, 16], strides = [1, 1]} : vector<64x16xf32> to vector<4x16xf32>
    %c16_19 = arith.constant 16 : index
    %c16_20 = arith.constant 16 : index
    %30 = vector.load %arg13[%c16_19, %c16_20] : memref<40x64xf32, #tpu.memory_space<vmem>>, vector<4x16xf32>
    tpu.vector_store %arg13[%c16_19, %c16_20], %29 {strides = array<i32>} : memref<40x64xf32, #tpu.memory_space<vmem>>, vector<4x16xf32>,
    %31 = vector.extract_strided_slice %8 {offsets = [40, 0], sizes = [4, 16], strides = [1, 1]} : vector<64x16xf32> to vector<4x16xf32>
    %c24_21 = arith.constant 24 : index
    %c16_22 = arith.constant 16 : index
    %32 = vector.load %arg13[%c24_21, %c16_22] : memref<40x64xf32, #tpu.memory_space<vmem>>, vector<4x16xf32>
    tpu.vector_store %arg13[%c24_21, %c16_22], %31 {strides = array<i32>} : memref<40x64xf32, #tpu.memory_space<vmem>>, vector<4x16xf32>,
    %33 = vector.extract_strided_slice %8 {offsets = [44, 0], sizes = [4, 16], strides = [1, 1]} : vector<64x16xf32> to vector<4x16xf32>
    %c32_23 = arith.constant 32 : index
    %c16_24 = arith.constant 16 : index
    %34 = vector.load %arg13[%c32_23, %c16_24] : memref<40x64xf32, #tpu.memory_space<vmem>>, vector<4x16xf32>
    tpu.vector_store %arg13[%c32_23, %c16_24], %33 {strides = array<i32>} : memref<40x64xf32, #tpu.memory_space<vmem>>, vector<4x16xf32>,
    %35 = vector.extract_strided_slice %8 {offsets = [48, 0], sizes = [4, 16], strides = [1, 1]} : vector<64x16xf32> to vector<4x16xf32>
    %c9_25 = arith.constant 9 : index
    %c0_26 = arith.constant 0 : index
    %36 = vector.load %arg13[%c9_25, %c0_26] : memref<40x64xf32, #tpu.memory_space<vmem>>, vector<4x16xf32>
    tpu.vector_store %arg13[%c9_25, %c0_26], %35 {strides = array<i32>} : memref<40x64xf32, #tpu.memory_space<vmem>>, vector<4x16xf32>,
    %37 = vector.extract_strided_slice %8 {offsets = [52, 0], sizes = [4, 16], strides = [1, 1]} : vector<64x16xf32> to vector<4x16xf32>
    %c17_27 = arith.constant 17 : index
    %c0_28 = arith.constant 0 : index
    %38 = vector.load %arg13[%c17_27, %c0_28] : memref<40x64xf32, #tpu.memory_space<vmem>>, vector<4x16xf32>
    tpu.vector_store %arg13[%c17_27, %c0_28], %37 {strides = array<i32>} : memref<40x64xf32, #tpu.memory_space<vmem>>, vector<4x16xf32>,
    %39 = vector.extract_strided_slice %8 {offsets = [56, 0], sizes = [4, 16], strides = [1, 1]} : vector<64x16xf32> to vector<4x16xf32>
    %c25_29 = arith.constant 25 : index
    %c0_30 = arith.constant 0 : index
    %40 = vector.load %arg13[%c25_29, %c0_30] : memref<40x64xf32, #tpu.memory_space<vmem>>, vector<4x16xf32>
    tpu.vector_store %arg13[%c25_29, %c0_30], %39 {strides = array<i32>} : memref<40x64xf32, #tpu.memory_space<vmem>>, vector<4x16xf32>,
    %41 = vector.extract_strided_slice %8 {offsets = [60, 0], sizes = [4, 16], strides = [1, 1]} : vector<64x16xf32> to vector<4x16xf32>
    %c33 = arith.constant 33 : index
    %c0_31 = arith.constant 0 : index
    %42 = vector.load %arg13[%c33, %c0_31] : memref<40x64xf32, #tpu.memory_space<vmem>>, vector<4x16xf32>
    tpu.vector_store %arg13[%c33, %c0_31], %41 {strides = array<i32>} : memref<40x64xf32, #tpu.memory_space<vmem>>, vector<4x16xf32>,
    %c0_32 = arith.constant 0 : index
    %c0_33 = arith.constant 0 : index
    %43 = vector.load %arg13[%c0_32, %c0_33] : memref<40x64xf32, #tpu.memory_space<vmem>>, vector<28x64xf32>
    %c0_34 = arith.constant 0 : index
    %c0_35 = arith.constant 0 : index
    %44 = vector.load %arg14[%c0_34, %c0_35] : memref<28x256xf32, #tpu.memory_space<vmem>>, vector<28x64xf32>
    tpu.vector_store %arg14[%c0_34, %c0_35], %43 {strides = array<i32>} : memref<28x256xf32, #tpu.memory_space<vmem>>, vector<28x64xf32>,
    %c1_36 = arith.constant 1 : index
    %c0_37 = arith.constant 0 : index
    %45 = vector.load %arg13[%c1_36, %c0_37] : memref<40x64xf32, #tpu.memory_space<vmem>>, vector<28x64xf32>
    %c0_38 = arith.constant 0 : index
    %c64 = arith.constant 64 : index
    %46 = vector.load %arg14[%c0_38, %c64] : memref<28x256xf32, #tpu.memory_space<vmem>>, vector<28x64xf32>
    tpu.vector_store %arg14[%c0_38, %c64], %45 {strides = array<i32>} : memref<28x256xf32, #tpu.memory_space<vmem>>, vector<28x64xf32>,
    %c8_39 = arith.constant 8 : index
    %c0_40 = arith.constant 0 : index
    %47 = vector.load %arg13[%c8_39, %c0_40] : memref<40x64xf32, #tpu.memory_space<vmem>>, vector<28x64xf32>
    %c0_41 = arith.constant 0 : index
    %c128 = arith.constant 128 : index
    %48 = vector.load %arg14[%c0_41, %c128] : memref<28x256xf32, #tpu.memory_space<vmem>>, vector<28x64xf32>
    tpu.vector_store %arg14[%c0_41, %c128], %47 {strides = array<i32>} : memref<28x256xf32, #tpu.memory_space<vmem>>, vector<28x64xf32>,
    %c9_42 = arith.constant 9 : index
    %c0_43 = arith.constant 0 : index
    %49 = vector.load %arg13[%c9_42, %c0_43] : memref<40x64xf32, #tpu.memory_space<vmem>>, vector<28x64xf32>
    %c0_44 = arith.constant 0 : index
    %c192 = arith.constant 192 : index
    %50 = vector.load %arg14[%c0_44, %c192] : memref<28x256xf32, #tpu.memory_space<vmem>>, vector<28x64xf32>
    tpu.vector_store %arg14[%c0_44, %c192], %49 {strides = array<i32>} : memref<28x256xf32, #tpu.memory_space<vmem>>, vector<28x64xf32>,
    %c0_45 = arith.constant 0 : index
    %c0_46 = arith.constant 0 : index
    %51 = vector.load %arg14[%c0_45, %c0_46] : memref<28x256xf32, #tpu.memory_space<vmem>>, vector<28x256xf32>
    %52 = arith.truncf %51 : vector<28x256xf32> to vector<28x256xbf16>
    %c0_47 = arith.constant 0 : index
    %c0_48 = arith.constant 0 : index
    %53 = vector.load %arg4[%c0_47, %c0_48] : memref<256x32xbf16, #tpu.memory_space<vmem>>, vector<256x32xbf16>
    %cst_49 = arith.constant dense<0.000000e+00> : vector<28x32xf32>
    %54 = tpu.matmul %52, %53, %cst_49 {dimension_numbers = #tpu.dot_dimension_numbers<[1], [0], [0], [1], [0, 0, 1, 1], [], []>} : vector<28x256xbf16>, vector<256x32xbf16>, vector<28x32xf32> -> vector<28x32xf32>
    %c0_50 = arith.constant 0 : index
    %c0_51 = arith.constant 0 : index
    %55 = vector.load %arg5[%c0_50, %c0_51] : memref<1x32xf32, #tpu.memory_space<vmem>>, vector<1x32xf32>
    %56 = vector.broadcast %55 : vector<1x32xf32> to vector<28x32xf32>
    %57 = arith.addf %54, %56 : vector<28x32xf32>
    %cst_52 = arith.constant 0.000000e+00 : f32
    %58 = vector.broadcast %cst_52 : f32 to vector<28x32xf32>
    %59 = arith.maximumf %57, %58 : vector<28x32xf32>
    %cst_53 = arith.constant 0.000000e+00 : f32
    %60 = vector.broadcast %cst_53 : f32 to vector<48x32xf32>
    %c0_54 = arith.constant 0 : index
    %c0_55 = arith.constant 0 : index
    %61 = vector.load %arg15[%c0_54, %c0_55] : memref<48x32xf32, #tpu.memory_space<vmem>>, vector<48x32xf32>
    tpu.vector_store %arg15[%c0_54, %c0_55], %60 {strides = array<i32>} : memref<48x32xf32, #tpu.memory_space<vmem>>, vector<48x32xf32>,
    %62 = vector.extract_strided_slice %59 {offsets = [0, 0], sizes = [4, 32], strides = [1, 1]} : vector<28x32xf32> to vector<4x32xf32>
    %c9_56 = arith.constant 9 : index
    %c0_57 = arith.constant 0 : index
    %63 = vector.load %arg15[%c9_56, %c0_57] : memref<48x32xf32, #tpu.memory_space<vmem>>, vector<4x32xf32>
    tpu.vector_store %arg15[%c9_56, %c0_57], %62 {strides = array<i32>} : memref<48x32xf32, #tpu.memory_space<vmem>>, vector<4x32xf32>,
    %64 = vector.extract_strided_slice %59 {offsets = [8, 0], sizes = [4, 32], strides = [1, 1]} : vector<28x32xf32> to vector<4x32xf32>
    %c17_58 = arith.constant 17 : index
    %c0_59 = arith.constant 0 : index
    %65 = vector.load %arg15[%c17_58, %c0_59] : memref<48x32xf32, #tpu.memory_space<vmem>>, vector<4x32xf32>
    tpu.vector_store %arg15[%c17_58, %c0_59], %64 {strides = array<i32>} : memref<48x32xf32, #tpu.memory_space<vmem>>, vector<4x32xf32>,
    %66 = vector.extract_strided_slice %59 {offsets = [16, 0], sizes = [4, 32], strides = [1, 1]} : vector<28x32xf32> to vector<4x32xf32>
    %c25_60 = arith.constant 25 : index
    %c0_61 = arith.constant 0 : index
    %67 = vector.load %arg15[%c25_60, %c0_61] : memref<48x32xf32, #tpu.memory_space<vmem>>, vector<4x32xf32>
    tpu.vector_store %arg15[%c25_60, %c0_61], %66 {strides = array<i32>} : memref<48x32xf32, #tpu.memory_space<vmem>>, vector<4x32xf32>,
    %68 = vector.extract_strided_slice %59 {offsets = [24, 0], sizes = [4, 32], strides = [1, 1]} : vector<28x32xf32> to vector<4x32xf32>
    %c33_62 = arith.constant 33 : index
    %c0_63 = arith.constant 0 : index
    %69 = vector.load %arg15[%c33_62, %c0_63] : memref<48x32xf32, #tpu.memory_space<vmem>>, vector<4x32xf32>
    tpu.vector_store %arg15[%c33_62, %c0_63], %68 {strides = array<i32>} : memref<48x32xf32, #tpu.memory_space<vmem>>, vector<4x32xf32>,
    %c0_64 = arith.constant 0 : index
    %c0_65 = arith.constant 0 : index
    %70 = vector.load %arg15[%c0_64, %c0_65] : memref<48x32xf32, #tpu.memory_space<vmem>>, vector<28x32xf32>
    %c0_66 = arith.constant 0 : index
    %c0_67 = arith.constant 0 : index
    %71 = vector.load %arg16[%c0_66, %c0_67] : memref<28x288xf32, #tpu.memory_space<vmem>>, vector<28x32xf32>
    tpu.vector_store %arg16[%c0_66, %c0_67], %70 {strides = array<i32>} : memref<28x288xf32, #tpu.memory_space<vmem>>, vector<28x32xf32>,
    %c1_68 = arith.constant 1 : index
    %c0_69 = arith.constant 0 : index
    %72 = vector.load %arg15[%c1_68, %c0_69] : memref<48x32xf32, #tpu.memory_space<vmem>>, vector<28x32xf32>
    %c0_70 = arith.constant 0 : index
    %c32_71 = arith.constant 32 : index
    %73 = vector.load %arg16[%c0_70, %c32_71] : memref<28x288xf32, #tpu.memory_space<vmem>>, vector<28x32xf32>
    tpu.vector_store %arg16[%c0_70, %c32_71], %72 {strides = array<i32>} : memref<28x288xf32, #tpu.memory_space<vmem>>, vector<28x32xf32>,
    %c2 = arith.constant 2 : index
    %c0_72 = arith.constant 0 : index
    %74 = vector.load %arg15[%c2, %c0_72] : memref<48x32xf32, #tpu.memory_space<vmem>>, vector<28x32xf32>
    %c0_73 = arith.constant 0 : index
    %c64_74 = arith.constant 64 : index
    %75 = vector.load %arg16[%c0_73, %c64_74] : memref<28x288xf32, #tpu.memory_space<vmem>>, vector<28x32xf32>
    tpu.vector_store %arg16[%c0_73, %c64_74], %74 {strides = array<i32>} : memref<28x288xf32, #tpu.memory_space<vmem>>, vector<28x32xf32>,
    %c8_75 = arith.constant 8 : index
    %c0_76 = arith.constant 0 : index
    %76 = vector.load %arg15[%c8_75, %c0_76] : memref<48x32xf32, #tpu.memory_space<vmem>>, vector<28x32xf32>
    %c0_77 = arith.constant 0 : index
    %c96 = arith.constant 96 : index
    %77 = vector.load %arg16[%c0_77, %c96] : memref<28x288xf32, #tpu.memory_space<vmem>>, vector<28x32xf32>
    tpu.vector_store %arg16[%c0_77, %c96], %76 {strides = array<i32>} : memref<28x288xf32, #tpu.memory_space<vmem>>, vector<28x32xf32>,
    %c9_78 = arith.constant 9 : index
    %c0_79 = arith.constant 0 : index
    %78 = vector.load %arg15[%c9_78, %c0_79] : memref<48x32xf32, #tpu.memory_space<vmem>>, vector<28x32xf32>
    %c0_80 = arith.constant 0 : index
    %c128_81 = arith.constant 128 : index
    %79 = vector.load %arg16[%c0_80, %c128_81] : memref<28x288xf32, #tpu.memory_space<vmem>>, vector<28x32xf32>
    tpu.vector_store %arg16[%c0_80, %c128_81], %78 {strides = array<i32>} : memref<28x288xf32, #tpu.memory_space<vmem>>, vector<28x32xf32>,
    %c10 = arith.constant 10 : index
    %c0_82 = arith.constant 0 : index
    %80 = vector.load %arg15[%c10, %c0_82] : memref<48x32xf32, #tpu.memory_space<vmem>>, vector<28x32xf32>
    %c0_83 = arith.constant 0 : index
    %c160 = arith.constant 160 : index
    %81 = vector.load %arg16[%c0_83, %c160] : memref<28x288xf32, #tpu.memory_space<vmem>>, vector<28x32xf32>
    tpu.vector_store %arg16[%c0_83, %c160], %80 {strides = array<i32>} : memref<28x288xf32, #tpu.memory_space<vmem>>, vector<28x32xf32>,
    %c16_84 = arith.constant 16 : index
    %c0_85 = arith.constant 0 : index
    %82 = vector.load %arg15[%c16_84, %c0_85] : memref<48x32xf32, #tpu.memory_space<vmem>>, vector<28x32xf32>
    %c0_86 = arith.constant 0 : index
    %c192_87 = arith.constant 192 : index
    %83 = vector.load %arg16[%c0_86, %c192_87] : memref<28x288xf32, #tpu.memory_space<vmem>>, vector<28x32xf32>
    tpu.vector_store %arg16[%c0_86, %c192_87], %82 {strides = array<i32>} : memref<28x288xf32, #tpu.memory_space<vmem>>, vector<28x32xf32>,
    %c17_88 = arith.constant 17 : index
    %c0_89 = arith.constant 0 : index
    %84 = vector.load %arg15[%c17_88, %c0_89] : memref<48x32xf32, #tpu.memory_space<vmem>>, vector<28x32xf32>
    %c0_90 = arith.constant 0 : index
    %c224 = arith.constant 224 : index
    %85 = vector.load %arg16[%c0_90, %c224] : memref<28x288xf32, #tpu.memory_space<vmem>>, vector<28x32xf32>
    tpu.vector_store %arg16[%c0_90, %c224], %84 {strides = array<i32>} : memref<28x288xf32, #tpu.memory_space<vmem>>, vector<28x32xf32>,
    %c18 = arith.constant 18 : index
    %c0_91 = arith.constant 0 : index
    %86 = vector.load %arg15[%c18, %c0_91] : memref<48x32xf32, #tpu.memory_space<vmem>>, vector<28x32xf32>
    %c0_92 = arith.constant 0 : index
    %c256 = arith.constant 256 : index
    %87 = vector.load %arg16[%c0_92, %c256] : memref<28x288xf32, #tpu.memory_space<vmem>>, vector<28x32xf32>
    tpu.vector_store %arg16[%c0_92, %c256], %86 {strides = array<i32>} : memref<28x288xf32, #tpu.memory_space<vmem>>, vector<28x32xf32>,
    %c0_93 = arith.constant 0 : index
    %c0_94 = arith.constant 0 : index
    %88 = vector.load %arg16[%c0_93, %c0_94] : memref<28x288xf32, #tpu.memory_space<vmem>>, vector<28x288xf32>
    %89 = arith.truncf %88 : vector<28x288xf32> to vector<28x288xbf16>
    %c0_95 = arith.constant 0 : index
    %c0_96 = arith.constant 0 : index
    %90 = vector.load %arg6[%c0_95, %c0_96] : memref<288x32xbf16, #tpu.memory_space<vmem>>, vector<288x32xbf16>
    %cst_97 = arith.constant dense<0.000000e+00> : vector<28x32xf32>
    %91 = tpu.matmul %89, %90, %cst_97 {dimension_numbers = #tpu.dot_dimension_numbers<[1], [0], [0], [1], [0, 0, 1, 1], [], []>} : vector<28x288xbf16>, vector<288x32xbf16>, vector<28x32xf32> -> vector<28x32xf32>
    %c0_98 = arith.constant 0 : index
    %c0_99 = arith.constant 0 : index
    %92 = vector.load %arg7[%c0_98, %c0_99] : memref<1x32xf32, #tpu.memory_space<vmem>>, vector<1x32xf32>
    %93 = vector.broadcast %92 : vector<1x32xf32> to vector<28x32xf32>
    %94 = arith.addf %91, %93 : vector<28x32xf32>
    %cst_100 = arith.constant 0.000000e+00 : f32
    %95 = vector.broadcast %cst_100 : f32 to vector<28x32xf32>
    %96 = arith.maximumf %94, %95 : vector<28x32xf32>
    %97 = vector.extract_strided_slice %96 {offsets = [0, 0], sizes = [4, 32], strides = [1, 1]} : vector<28x32xf32> to vector<4x32xf32>
    %c9_101 = arith.constant 9 : index
    %c0_102 = arith.constant 0 : index
    %98 = vector.load %arg15[%c9_101, %c0_102] : memref<48x32xf32, #tpu.memory_space<vmem>>, vector<4x32xf32>
    tpu.vector_store %arg15[%c9_101, %c0_102], %97 {strides = array<i32>} : memref<48x32xf32, #tpu.memory_space<vmem>>, vector<4x32xf32>,
    %99 = vector.extract_strided_slice %96 {offsets = [8, 0], sizes = [4, 32], strides = [1, 1]} : vector<28x32xf32> to vector<4x32xf32>
    %c17_103 = arith.constant 17 : index
    %c0_104 = arith.constant 0 : index
    %100 = vector.load %arg15[%c17_103, %c0_104] : memref<48x32xf32, #tpu.memory_space<vmem>>, vector<4x32xf32>
    tpu.vector_store %arg15[%c17_103, %c0_104], %99 {strides = array<i32>} : memref<48x32xf32, #tpu.memory_space<vmem>>, vector<4x32xf32>,
    %101 = vector.extract_strided_slice %96 {offsets = [16, 0], sizes = [4, 32], strides = [1, 1]} : vector<28x32xf32> to vector<4x32xf32>
    %c25_105 = arith.constant 25 : index
    %c0_106 = arith.constant 0 : index
    %102 = vector.load %arg15[%c25_105, %c0_106] : memref<48x32xf32, #tpu.memory_space<vmem>>, vector<4x32xf32>
    tpu.vector_store %arg15[%c25_105, %c0_106], %101 {strides = array<i32>} : memref<48x32xf32, #tpu.memory_space<vmem>>, vector<4x32xf32>,
    %103 = vector.extract_strided_slice %96 {offsets = [24, 0], sizes = [4, 32], strides = [1, 1]} : vector<28x32xf32> to vector<4x32xf32>
    %c33_107 = arith.constant 33 : index
    %c0_108 = arith.constant 0 : index
    %104 = vector.load %arg15[%c33_107, %c0_108] : memref<48x32xf32, #tpu.memory_space<vmem>>, vector<4x32xf32>
    tpu.vector_store %arg15[%c33_107, %c0_108], %103 {strides = array<i32>} : memref<48x32xf32, #tpu.memory_space<vmem>>, vector<4x32xf32>,
    %c0_109 = arith.constant 0 : index
    %c0_110 = arith.constant 0 : index
    %105 = vector.load %arg15[%c0_109, %c0_110] : memref<48x32xf32, #tpu.memory_space<vmem>>, vector<28x32xf32>
    %c0_111 = arith.constant 0 : index
    %c0_112 = arith.constant 0 : index
    %106 = vector.load %arg16[%c0_111, %c0_112] : memref<28x288xf32, #tpu.memory_space<vmem>>, vector<28x32xf32>
    tpu.vector_store %arg16[%c0_111, %c0_112], %105 {strides = array<i32>} : memref<28x288xf32, #tpu.memory_space<vmem>>, vector<28x32xf32>,
    %c1_113 = arith.constant 1 : index
    %c0_114 = arith.constant 0 : index
    %107 = vector.load %arg15[%c1_113, %c0_114] : memref<48x32xf32, #tpu.memory_space<vmem>>, vector<28x32xf32>
    %c0_115 = arith.constant 0 : index
    %c32_116 = arith.constant 32 : index
    %108 = vector.load %arg16[%c0_115, %c32_116] : memref<28x288xf32, #tpu.memory_space<vmem>>, vector<28x32xf32>
    tpu.vector_store %arg16[%c0_115, %c32_116], %107 {strides = array<i32>} : memref<28x288xf32, #tpu.memory_space<vmem>>, vector<28x32xf32>,
    %c2_117 = arith.constant 2 : index
    %c0_118 = arith.constant 0 : index
    %109 = vector.load %arg15[%c2_117, %c0_118] : memref<48x32xf32, #tpu.memory_space<vmem>>, vector<28x32xf32>
    %c0_119 = arith.constant 0 : index
    %c64_120 = arith.constant 64 : index
    %110 = vector.load %arg16[%c0_119, %c64_120] : memref<28x288xf32, #tpu.memory_space<vmem>>, vector<28x32xf32>
    tpu.vector_store %arg16[%c0_119, %c64_120], %109 {strides = array<i32>} : memref<28x288xf32, #tpu.memory_space<vmem>>, vector<28x32xf32>,
    %c8_121 = arith.constant 8 : index
    %c0_122 = arith.constant 0 : index
    %111 = vector.load %arg15[%c8_121, %c0_122] : memref<48x32xf32, #tpu.memory_space<vmem>>, vector<28x32xf32>
    %c0_123 = arith.constant 0 : index
    %c96_124 = arith.constant 96 : index
    %112 = vector.load %arg16[%c0_123, %c96_124] : memref<28x288xf32, #tpu.memory_space<vmem>>, vector<28x32xf32>
    tpu.vector_store %arg16[%c0_123, %c96_124], %111 {strides = array<i32>} : memref<28x288xf32, #tpu.memory_space<vmem>>, vector<28x32xf32>,
    %c9_125 = arith.constant 9 : index
    %c0_126 = arith.constant 0 : index
    %113 = vector.load %arg15[%c9_125, %c0_126] : memref<48x32xf32, #tpu.memory_space<vmem>>, vector<28x32xf32>
    %c0_127 = arith.constant 0 : index
    %c128_128 = arith.constant 128 : index
    %114 = vector.load %arg16[%c0_127, %c128_128] : memref<28x288xf32, #tpu.memory_space<vmem>>, vector<28x32xf32>
    tpu.vector_store %arg16[%c0_127, %c128_128], %113 {strides = array<i32>} : memref<28x288xf32, #tpu.memory_space<vmem>>, vector<28x32xf32>,
    %c10_129 = arith.constant 10 : index
    %c0_130 = arith.constant 0 : index
    %115 = vector.load %arg15[%c10_129, %c0_130] : memref<48x32xf32, #tpu.memory_space<vmem>>, vector<28x32xf32>
    %c0_131 = arith.constant 0 : index
    %c160_132 = arith.constant 160 : index
    %116 = vector.load %arg16[%c0_131, %c160_132] : memref<28x288xf32, #tpu.memory_space<vmem>>, vector<28x32xf32>
    tpu.vector_store %arg16[%c0_131, %c160_132], %115 {strides = array<i32>} : memref<28x288xf32, #tpu.memory_space<vmem>>, vector<28x32xf32>,
    %c16_133 = arith.constant 16 : index
    %c0_134 = arith.constant 0 : index
    %117 = vector.load %arg15[%c16_133, %c0_134] : memref<48x32xf32, #tpu.memory_space<vmem>>, vector<28x32xf32>
    %c0_135 = arith.constant 0 : index
    %c192_136 = arith.constant 192 : index
    %118 = vector.load %arg16[%c0_135, %c192_136] : memref<28x288xf32, #tpu.memory_space<vmem>>, vector<28x32xf32>
    tpu.vector_store %arg16[%c0_135, %c192_136], %117 {strides = array<i32>} : memref<28x288xf32, #tpu.memory_space<vmem>>, vector<28x32xf32>,
    %c17_137 = arith.constant 17 : index
    %c0_138 = arith.constant 0 : index
    %119 = vector.load %arg15[%c17_137, %c0_138] : memref<48x32xf32, #tpu.memory_space<vmem>>, vector<28x32xf32>
    %c0_139 = arith.constant 0 : index
    %c224_140 = arith.constant 224 : index
    %120 = vector.load %arg16[%c0_139, %c224_140] : memref<28x288xf32, #tpu.memory_space<vmem>>, vector<28x32xf32>
    tpu.vector_store %arg16[%c0_139, %c224_140], %119 {strides = array<i32>} : memref<28x288xf32, #tpu.memory_space<vmem>>, vector<28x32xf32>,
    %c18_141 = arith.constant 18 : index
    %c0_142 = arith.constant 0 : index
    %121 = vector.load %arg15[%c18_141, %c0_142] : memref<48x32xf32, #tpu.memory_space<vmem>>, vector<28x32xf32>
    %c0_143 = arith.constant 0 : index
    %c256_144 = arith.constant 256 : index
    %122 = vector.load %arg16[%c0_143, %c256_144] : memref<28x288xf32, #tpu.memory_space<vmem>>, vector<28x32xf32>
    tpu.vector_store %arg16[%c0_143, %c256_144], %121 {strides = array<i32>} : memref<28x288xf32, #tpu.memory_space<vmem>>, vector<28x32xf32>,
    %c0_145 = arith.constant 0 : index
    %c0_146 = arith.constant 0 : index
    %123 = vector.load %arg16[%c0_145, %c0_146] : memref<28x288xf32, #tpu.memory_space<vmem>>, vector<28x288xf32>
    %124 = arith.truncf %123 : vector<28x288xf32> to vector<28x288xbf16>
    %c0_147 = arith.constant 0 : index
    %c0_148 = arith.constant 0 : index
    %125 = vector.load %arg8[%c0_147, %c0_148] : memref<288x8xbf16, #tpu.memory_space<vmem>>, vector<288x8xbf16>
    %cst_149 = arith.constant dense<0.000000e+00> : vector<28x8xf32>
    %126 = tpu.matmul %124, %125, %cst_149 {dimension_numbers = #tpu.dot_dimension_numbers<[1], [0], [0], [1], [0, 0, 1, 1], [], []>} : vector<28x288xbf16>, vector<288x8xbf16>, vector<28x8xf32> -> vector<28x8xf32>
    %cst_150 = arith.constant 0.000000e+00 : f32
    %127 = vector.broadcast %cst_150 : f32 to vector<28x8xf32>
    %128 = arith.maximumf %126, %127 : vector<28x8xf32>
    %129 = arith.truncf %128 : vector<28x8xf32> to vector<28x8xbf16>
    %c0_151 = arith.constant 0 : index
    %c0_152 = arith.constant 0 : index
    %130 = vector.load %arg9[%c0_151, %c0_152] : memref<8x32xbf16, #tpu.memory_space<vmem>>, vector<8x32xbf16>
    %cst_153 = arith.constant dense<0.000000e+00> : vector<28x32xf32>
    %131 = tpu.matmul %129, %130, %cst_153 {dimension_numbers = #tpu.dot_dimension_numbers<[1], [0], [0], [1], [0, 0, 1, 1], [], []>} : vector<28x8xbf16>, vector<8x32xbf16>, vector<28x32xf32> -> vector<28x32xf32>
    %132 = arith.addf %94, %131 : vector<28x32xf32>
    %cst_154 = arith.constant 0.000000e+00 : f32
    %133 = vector.broadcast %cst_154 : f32 to vector<28x32xf32>
    %134 = arith.maximumf %132, %133 : vector<28x32xf32>
    %135 = vector.extract_strided_slice %134 {offsets = [0, 0], sizes = [4, 32], strides = [1, 1]} : vector<28x32xf32> to vector<4x32xf32>
    %c9_155 = arith.constant 9 : index
    %c0_156 = arith.constant 0 : index
    %136 = vector.load %arg15[%c9_155, %c0_156] : memref<48x32xf32, #tpu.memory_space<vmem>>, vector<4x32xf32>
    tpu.vector_store %arg15[%c9_155, %c0_156], %135 {strides = array<i32>} : memref<48x32xf32, #tpu.memory_space<vmem>>, vector<4x32xf32>,
    %137 = vector.extract_strided_slice %134 {offsets = [8, 0], sizes = [4, 32], strides = [1, 1]} : vector<28x32xf32> to vector<4x32xf32>
    %c17_157 = arith.constant 17 : index
    %c0_158 = arith.constant 0 : index
    %138 = vector.load %arg15[%c17_157, %c0_158] : memref<48x32xf32, #tpu.memory_space<vmem>>, vector<4x32xf32>
    tpu.vector_store %arg15[%c17_157, %c0_158], %137 {strides = array<i32>} : memref<48x32xf32, #tpu.memory_space<vmem>>, vector<4x32xf32>,
    %139 = vector.extract_strided_slice %134 {offsets = [16, 0], sizes = [4, 32], strides = [1, 1]} : vector<28x32xf32> to vector<4x32xf32>
    %c25_159 = arith.constant 25 : index
    %c0_160 = arith.constant 0 : index
    %140 = vector.load %arg15[%c25_159, %c0_160] : memref<48x32xf32, #tpu.memory_space<vmem>>, vector<4x32xf32>
    tpu.vector_store %arg15[%c25_159, %c0_160], %139 {strides = array<i32>} : memref<48x32xf32, #tpu.memory_space<vmem>>, vector<4x32xf32>,
    %141 = vector.extract_strided_slice %134 {offsets = [24, 0], sizes = [4, 32], strides = [1, 1]} : vector<28x32xf32> to vector<4x32xf32>
    %c33_161 = arith.constant 33 : index
    %c0_162 = arith.constant 0 : index
    %142 = vector.load %arg15[%c33_161, %c0_162] : memref<48x32xf32, #tpu.memory_space<vmem>>, vector<4x32xf32>
    tpu.vector_store %arg15[%c33_161, %c0_162], %141 {strides = array<i32>} : memref<48x32xf32, #tpu.memory_space<vmem>>, vector<4x32xf32>,
    %c0_163 = arith.constant 0 : index
    %c0_164 = arith.constant 0 : index
    %143 = vector.load %arg15[%c0_163, %c0_164] : memref<48x32xf32, #tpu.memory_space<vmem>>, vector<28x32xf32>
    %c0_165 = arith.constant 0 : index
    %c0_166 = arith.constant 0 : index
    %144 = vector.load %arg16[%c0_165, %c0_166] : memref<28x288xf32, #tpu.memory_space<vmem>>, vector<28x32xf32>
    tpu.vector_store %arg16[%c0_165, %c0_166], %143 {strides = array<i32>} : memref<28x288xf32, #tpu.memory_space<vmem>>, vector<28x32xf32>,
    %c1_167 = arith.constant 1 : index
    %c0_168 = arith.constant 0 : index
    %145 = vector.load %arg15[%c1_167, %c0_168] : memref<48x32xf32, #tpu.memory_space<vmem>>, vector<28x32xf32>
    %c0_169 = arith.constant 0 : index
    %c32_170 = arith.constant 32 : index
    %146 = vector.load %arg16[%c0_169, %c32_170] : memref<28x288xf32, #tpu.memory_space<vmem>>, vector<28x32xf32>
    tpu.vector_store %arg16[%c0_169, %c32_170], %145 {strides = array<i32>} : memref<28x288xf32, #tpu.memory_space<vmem>>, vector<28x32xf32>,
    %c2_171 = arith.constant 2 : index
    %c0_172 = arith.constant 0 : index
    %147 = vector.load %arg15[%c2_171, %c0_172] : memref<48x32xf32, #tpu.memory_space<vmem>>, vector<28x32xf32>
    %c0_173 = arith.constant 0 : index
    %c64_174 = arith.constant 64 : index
    %148 = vector.load %arg16[%c0_173, %c64_174] : memref<28x288xf32, #tpu.memory_space<vmem>>, vector<28x32xf32>
    tpu.vector_store %arg16[%c0_173, %c64_174], %147 {strides = array<i32>} : memref<28x288xf32, #tpu.memory_space<vmem>>, vector<28x32xf32>,
    %c8_175 = arith.constant 8 : index
    %c0_176 = arith.constant 0 : index
    %149 = vector.load %arg15[%c8_175, %c0_176] : memref<48x32xf32, #tpu.memory_space<vmem>>, vector<28x32xf32>
    %c0_177 = arith.constant 0 : index
    %c96_178 = arith.constant 96 : index
    %150 = vector.load %arg16[%c0_177, %c96_178] : memref<28x288xf32, #tpu.memory_space<vmem>>, vector<28x32xf32>
    tpu.vector_store %arg16[%c0_177, %c96_178], %149 {strides = array<i32>} : memref<28x288xf32, #tpu.memory_space<vmem>>, vector<28x32xf32>,
    %c9_179 = arith.constant 9 : index
    %c0_180 = arith.constant 0 : index
    %151 = vector.load %arg15[%c9_179, %c0_180] : memref<48x32xf32, #tpu.memory_space<vmem>>, vector<28x32xf32>
    %c0_181 = arith.constant 0 : index
    %c128_182 = arith.constant 128 : index
    %152 = vector.load %arg16[%c0_181, %c128_182] : memref<28x288xf32, #tpu.memory_space<vmem>>, vector<28x32xf32>
    tpu.vector_store %arg16[%c0_181, %c128_182], %151 {strides = array<i32>} : memref<28x288xf32, #tpu.memory_space<vmem>>, vector<28x32xf32>,
    %c10_183 = arith.constant 10 : index
    %c0_184 = arith.constant 0 : index
    %153 = vector.load %arg15[%c10_183, %c0_184] : memref<48x32xf32, #tpu.memory_space<vmem>>, vector<28x32xf32>
    %c0_185 = arith.constant 0 : index
    %c160_186 = arith.constant 160 : index
    %154 = vector.load %arg16[%c0_185, %c160_186] : memref<28x288xf32, #tpu.memory_space<vmem>>, vector<28x32xf32>
    tpu.vector_store %arg16[%c0_185, %c160_186], %153 {strides = array<i32>} : memref<28x288xf32, #tpu.memory_space<vmem>>, vector<28x32xf32>,
    %c16_187 = arith.constant 16 : index
    %c0_188 = arith.constant 0 : index
    %155 = vector.load %arg15[%c16_187, %c0_188] : memref<48x32xf32, #tpu.memory_space<vmem>>, vector<28x32xf32>
    %c0_189 = arith.constant 0 : index
    %c192_190 = arith.constant 192 : index
    %156 = vector.load %arg16[%c0_189, %c192_190] : memref<28x288xf32, #tpu.memory_space<vmem>>, vector<28x32xf32>
    tpu.vector_store %arg16[%c0_189, %c192_190], %155 {strides = array<i32>} : memref<28x288xf32, #tpu.memory_space<vmem>>, vector<28x32xf32>,
    %c17_191 = arith.constant 17 : index
    %c0_192 = arith.constant 0 : index
    %157 = vector.load %arg15[%c17_191, %c0_192] : memref<48x32xf32, #tpu.memory_space<vmem>>, vector<28x32xf32>
    %c0_193 = arith.constant 0 : index
    %c224_194 = arith.constant 224 : index
    %158 = vector.load %arg16[%c0_193, %c224_194] : memref<28x288xf32, #tpu.memory_space<vmem>>, vector<28x32xf32>
    tpu.vector_store %arg16[%c0_193, %c224_194], %157 {strides = array<i32>} : memref<28x288xf32, #tpu.memory_space<vmem>>, vector<28x32xf32>,
    %c18_195 = arith.constant 18 : index
    %c0_196 = arith.constant 0 : index
    %159 = vector.load %arg15[%c18_195, %c0_196] : memref<48x32xf32, #tpu.memory_space<vmem>>, vector<28x32xf32>
    %c0_197 = arith.constant 0 : index
    %c256_198 = arith.constant 256 : index
    %160 = vector.load %arg16[%c0_197, %c256_198] : memref<28x288xf32, #tpu.memory_space<vmem>>, vector<28x32xf32>
    tpu.vector_store %arg16[%c0_197, %c256_198], %159 {strides = array<i32>} : memref<28x288xf32, #tpu.memory_space<vmem>>, vector<28x32xf32>,
    %c0_199 = arith.constant 0 : index
    %c0_200 = arith.constant 0 : index
    %161 = vector.load %arg16[%c0_199, %c0_200] : memref<28x288xf32, #tpu.memory_space<vmem>>, vector<28x288xf32>
    %162 = arith.truncf %161 : vector<28x288xf32> to vector<28x288xbf16>
    %c0_201 = arith.constant 0 : index
    %c0_202 = arith.constant 0 : index
    %163 = vector.load %arg10[%c0_201, %c0_202] : memref<288x8xbf16, #tpu.memory_space<vmem>>, vector<288x8xbf16>
    %cst_203 = arith.constant dense<0.000000e+00> : vector<28x8xf32>
    %164 = tpu.matmul %162, %163, %cst_203 {dimension_numbers = #tpu.dot_dimension_numbers<[1], [0], [0], [1], [0, 0, 1, 1], [], []>} : vector<28x288xbf16>, vector<288x8xbf16>, vector<28x8xf32> -> vector<28x8xf32>
    %cst_204 = arith.constant 0.000000e+00 : f32
    %165 = vector.broadcast %cst_204 : f32 to vector<28x8xf32>
    %166 = arith.maximumf %164, %165 : vector<28x8xf32>
    %167 = arith.truncf %166 : vector<28x8xf32> to vector<28x8xbf16>
    %c0_205 = arith.constant 0 : index
    %c0_206 = arith.constant 0 : index
    %168 = vector.load %arg11[%c0_205, %c0_206] : memref<8x32xbf16, #tpu.memory_space<vmem>>, vector<8x32xbf16>
    %cst_207 = arith.constant dense<0.000000e+00> : vector<28x32xf32>
    %169 = tpu.matmul %167, %168, %cst_207 {dimension_numbers = #tpu.dot_dimension_numbers<[1], [0], [0], [1], [0, 0, 1, 1], [], []>} : vector<28x8xbf16>, vector<8x32xbf16>, vector<28x32xf32> -> vector<28x32xf32>
    %170 = arith.addf %132, %169 : vector<28x32xf32>
    %cst_208 = arith.constant 0.000000e+00 : f32
    %171 = vector.broadcast %cst_208 : f32 to vector<28x32xf32>
    %172 = arith.maximumf %170, %171 : vector<28x32xf32>
    %173 = vector.extract_strided_slice %172 {offsets = [0, 0], sizes = [4, 32], strides = [1, 1]} : vector<28x32xf32> to vector<4x32xf32>
    %c0_209 = arith.constant 0 : index
    %c0_210 = arith.constant 0 : index
    %c0_211 = arith.constant 0 : index
    %c0_212 = arith.constant 0 : index
    %174 = vector.load %arg12[%c0_209, %c0_210, %c0_211, %c0_212] : memref<1x4x4x32xf32, #tpu.memory_space<vmem>>, vector<1x1x4x32xf32>
    %175 = vector.shape_cast %174 : vector<1x1x4x32xf32> to vector<4x32xf32>
    %176 = vector.shape_cast %173 : vector<4x32xf32> to vector<1x1x4x32xf32>
    tpu.vector_store %arg12[%c0_209, %c0_210, %c0_211, %c0_212], %176 {strides = array<i32>} : memref<1x4x4x32xf32, #tpu.memory_space<vmem>>, vector<1x1x4x32xf32>,
    %177 = vector.extract_strided_slice %172 {offsets = [8, 0], sizes = [4, 32], strides = [1, 1]} : vector<28x32xf32> to vector<4x32xf32>
    %c0_213 = arith.constant 0 : index
    %c1_214 = arith.constant 1 : index
    %c0_215 = arith.constant 0 : index
    %c0_216 = arith.constant 0 : index
    %178 = vector.load %arg12[%c0_213, %c1_214, %c0_215, %c0_216] : memref<1x4x4x32xf32, #tpu.memory_space<vmem>>, vector<1x1x4x32xf32>
    %179 = vector.shape_cast %178 : vector<1x1x4x32xf32> to vector<4x32xf32>
    %180 = vector.shape_cast %177 : vector<4x32xf32> to vector<1x1x4x32xf32>
    tpu.vector_store %arg12[%c0_213, %c1_214, %c0_215, %c0_216], %180 {strides = array<i32>} : memref<1x4x4x32xf32, #tpu.memory_space<vmem>>, vector<1x1x4x32xf32>,
    %181 = vector.extract_strided_slice %172 {offsets = [16, 0], sizes = [4, 32], strides = [1, 1]} : vector<28x32xf32> to vector<4x32xf32>
    %c0_217 = arith.constant 0 : index
    %c2_218 = arith.constant 2 : index
    %c0_219 = arith.constant 0 : index
    %c0_220 = arith.constant 0 : index
    %182 = vector.load %arg12[%c0_217, %c2_218, %c0_219, %c0_220] : memref<1x4x4x32xf32, #tpu.memory_space<vmem>>, vector<1x1x4x32xf32>
    %183 = vector.shape_cast %182 : vector<1x1x4x32xf32> to vector<4x32xf32>
    %184 = vector.shape_cast %181 : vector<4x32xf32> to vector<1x1x4x32xf32>
    tpu.vector_store %arg12[%c0_217, %c2_218, %c0_219, %c0_220], %184 {strides = array<i32>} : memref<1x4x4x32xf32, #tpu.memory_space<vmem>>, vector<1x1x4x32xf32>,
    %185 = vector.extract_strided_slice %172 {offsets = [24, 0], sizes = [4, 32], strides = [1, 1]} : vector<28x32xf32> to vector<4x32xf32>
    %c0_221 = arith.constant 0 : index
    %c3 = arith.constant 3 : index
    %c0_222 = arith.constant 0 : index
    %c0_223 = arith.constant 0 : index
    %186 = vector.load %arg12[%c0_221, %c3, %c0_222, %c0_223] : memref<1x4x4x32xf32, #tpu.memory_space<vmem>>, vector<1x1x4x32xf32>
    %187 = vector.shape_cast %186 : vector<1x1x4x32xf32> to vector<4x32xf32>
    %188 = vector.shape_cast %185 : vector<4x32xf32> to vector<1x1x4x32xf32>
    tpu.vector_store %arg12[%c0_221, %c3, %c0_222, %c0_223], %188 {strides = array<i32>} : memref<1x4x4x32xf32, #tpu.memory_space<vmem>>, vector<1x1x4x32xf32>,
    return
  }
  func.func @transform_0(%arg0: i32) -> (i32, i32, i32) {
    %c0_i32 = arith.constant 0 : i32
    %c0_i32_0 = arith.constant 0 : i32
    %c0_i32_1 = arith.constant 0 : i32
    return %arg0, %c0_i32, %c0_i32_0 : i32, i32, i32
  }
  func.func @transform_1(%arg0: i32) -> (i32, i32) {
    %c0_i32 = arith.constant 0 : i32
    %c0_i32_0 = arith.constant 0 : i32
    %c0_i32_1 = arith.constant 0 : i32
    return %c0_i32, %c0_i32_0 : i32, i32
  }
  func.func @transform_2(%arg0: i32) -> (i32, i32) {
    %c0_i32 = arith.constant 0 : i32
    %c0_i32_0 = arith.constant 0 : i32
    %c0_i32_1 = arith.constant 0 : i32
    return %c0_i32, %c0_i32_0 : i32, i32
  }
  func.func @transform_3(%arg0: i32) -> (i32, i32) {
    %c0_i32 = arith.constant 0 : i32
    %c0_i32_0 = arith.constant 0 : i32
    %c0_i32_1 = arith.constant 0 : i32
    return %c0_i32, %c0_i32_0 : i32, i32
  }
  func.func @transform_4(%arg0: i32) -> (i32, i32) {
    %c0_i32 = arith.constant 0 : i32
    %c0_i32_0 = arith.constant 0 : i32
    %c0_i32_1 = arith.constant 0 : i32
    return %c0_i32, %c0_i32_0 : i32, i32
  }
  func.func @transform_5(%arg0: i32) -> (i32, i32) {
    %c0_i32 = arith.constant 0 : i32
    %c0_i32_0 = arith.constant 0 : i32
    %c0_i32_1 = arith.constant 0 : i32
    return %c0_i32, %c0_i32_0 : i32, i32
  }
  func.func @transform_6(%arg0: i32) -> (i32, i32) {
    %c0_i32 = arith.constant 0 : i32
    %c0_i32_0 = arith.constant 0 : i32
    %c0_i32_1 = arith.constant 0 : i32
    return %c0_i32, %c0_i32_0 : i32, i32
  }
  func.func @transform_7(%arg0: i32) -> (i32, i32) {
    %c0_i32 = arith.constant 0 : i32
    %c0_i32_0 = arith.constant 0 : i32
    %c0_i32_1 = arith.constant 0 : i32
    return %c0_i32, %c0_i32_0 : i32, i32
  }
  func.func @transform_8(%arg0: i32) -> (i32, i32) {
    %c0_i32 = arith.constant 0 : i32
    %c0_i32_0 = arith.constant 0 : i32
    %c0_i32_1 = arith.constant 0 : i32
    return %c0_i32, %c0_i32_0 : i32, i32
  }
  func.func @transform_9(%arg0: i32) -> (i32, i32) {
    %c0_i32 = arith.constant 0 : i32
    %c0_i32_0 = arith.constant 0 : i32
    %c0_i32_1 = arith.constant 0 : i32
    return %c0_i32, %c0_i32_0 : i32, i32
  }
  func.func @transform_10(%arg0: i32) -> (i32, i32) {
    %c0_i32 = arith.constant 0 : i32
    %c0_i32_0 = arith.constant 0 : i32
    %c0_i32_1 = arith.constant 0 : i32
    return %c0_i32, %c0_i32_0 : i32, i32
  }
  func.func @transform_11(%arg0: i32) -> (i32, i32, i32, i32) {
    %c0_i32 = arith.constant 0 : i32
    %c0_i32_0 = arith.constant 0 : i32
    %c0_i32_1 = arith.constant 0 : i32
    %c0_i32_2 = arith.constant 0 : i32
    return %arg0, %c0_i32, %c0_i32_0, %c0_i32_1 : i32, i32, i32, i32
  }
}

</mosaic_0001>

<llo_original>
// kernel: _lambda_.1
$region0: #{_lambda_.1}
  #allocation0 [shape = 'u32[]', space=smem, size = 0x4, offset = 0x4, fixed_abs, tag = 'smem constant byte address 0x4 - core index']
  #allocation1 [shape = 'u32[144,128]{1,0:T(1,128)}', space=vmem, size = 0x12000, scoped, tag = 'internal scratch']
  #allocation2 [shape = 'f32[40,64]{1,0:T(8,128)}', space=vmem, size = 0x5000, scoped, tag = 'scratch operand']
  #allocation3 [shape = 'f32[28,256]{1,0:T(8,128)}', space=vmem, size = 0x8000, scoped, tag = 'scratch operand']
  #allocation4 [shape = 'f32[48,32]{1,0:T(8,128)}', space=vmem, size = 0x6000, scoped, tag = 'scratch operand']
  #allocation5 [shape = 'f32[28,288]{1,0:T(8,128)}', space=vmem, size = 0xc000, scoped, tag = 'scratch operand']
  %s0 = inlined_call_operand.vmem [shape: bf16[2,64,64], index: 0, kind: input, shape index: {}]
  %s1 = inlined_call_operand.vmem [shape: bf16[64,16], index: 1, kind: input, shape index: {}]
  %s2 = inlined_call_operand.vmem [shape: f32[1,16], index: 2, kind: input, shape index: {}]
  %s3 = inlined_call_operand.vmem [shape: bf16[256,32], index: 3, kind: input, shape index: {}]
  %s4 = inlined_call_operand.vmem [shape: f32[1,32], index: 4, kind: input, shape index: {}]
  %s5 = inlined_call_operand.vmem [shape: bf16[288,32], index: 5, kind: input, shape index: {}]
  %s6 = inlined_call_operand.vmem [shape: f32[1,32], index: 6, kind: input, shape index: {}]
  %s7 = inlined_call_operand.vmem [shape: bf16[288,8], index: 7, kind: input, shape index: {}]
  %s8 = inlined_call_operand.vmem [shape: bf16[8,32], index: 8, kind: input, shape index: {}]
  %s9 = inlined_call_operand.vmem [shape: bf16[288,8], index: 9, kind: input, shape index: {}]
  %s10 = inlined_call_operand.vmem [shape: bf16[8,32], index: 10, kind: input, shape index: {}]
  %s11 = inlined_call_operand.hbm [shape: f32[2,4,4,32], index: 11, kind: output, shape index: {}]
  %s12 = sld [smem:[#allocation0]]
  $region77: #{_lambda_.1} parent=0
    _
  %s14 = ssub.s32 1, %s12
  %s15 = scalar_select 0, %s14, %s12
  $region1: #{_lambda_.1} parent=0
    #allocation6 [shape = 'u8[16384]{0}', space=vmem, size = 0x4000, scoped, tag = 'output window, operand 0']
    #allocation7 [shape = 's32[2]{0}', space=sflag, size = 0x8, scoped, tag = 'scoped memory for _lambda_.1']
    %16 = vsyncpa [#allocation7], 0
    %s17 = scalar_lea.sflag [#allocation7], 1
    %18 = vsyncpa %s17, 0
    loop: start=0, step=1, limit=4
    $region2: #{_lambda_.1} parent=1 // loop_pre_header
      _
    $region3: #{_lambda_.1} parent=1 // loop_header
      %s20 = sphi 0, %s24
      %p21 = scmp.ge.s32.totalorder %s20, 4
      %s30 = sphi 0, %s32
      %s33 = sphi 0, %s30
      %s34 = sphi 0, %s33
      %s50 = sphi 0, %s34
      %s54 = sphi 0, %s54
      %s56 = sphi 0, %s54
      %s57 = sphi 0, %s56
      %s71 = sphi 0, %s57
      %s75 = sphi 0, %s75
      %s77 = sphi 0, %s75
      %s78 = sphi 0, %s77
      %s92 = sphi 0, %s78
      %s96 = sphi 0, %s96
      %s98 = sphi 0, %s96
      %s99 = sphi 0, %s98
      %s113 = sphi 0, %s99
      %s117 = sphi 0, %s117
      %s119 = sphi 0, %s117
      %s120 = sphi 0, %s119
      %s134 = sphi 0, %s120
      %s138 = sphi 0, %s138
      %s140 = sphi 0, %s138
      %s141 = sphi 0, %s140
      %s155 = sphi 0, %s141
      %s159 = sphi 0, %s159
      %s161 = sphi 0, %s159
      %s162 = sphi 0, %s161
      %s176 = sphi 0, %s162
      %s180 = sphi 0, %s180
      %s182 = sphi 0, %s180
      %s183 = sphi 0, %s182
      %s197 = sphi 0, %s183
      %s201 = sphi 0, %s201
      %s203 = sphi 0, %s201
      %s204 = sphi 0, %s203
      %s218 = sphi 0, %s204
      %s222 = sphi 0, %s222
      %s224 = sphi 0, %s222
      %s225 = sphi 0, %s224
      %s239 = sphi 0, %s225
      %s243 = sphi 0, %s243
      %s245 = sphi 0, %s243
      %s246 = sphi 0, %s245
      %s260 = sphi 0, %s246
      %s266 = sphi 0, %s268
      %s269 = sphi 0, %s266
      %s270 = sphi 0, %s269
      %s286 = sphi 0, %s270
    $region4: #{_lambda_.1} parent=1 // loop_header_branch
      %23 = sbr.rel (%p21) target = $region8
    $region5: #{_lambda_.1} parent=1 // loop_body
      %s25 = ssub.s32 %s20, 1
      %s26 = ssub.s32 %s20, 2
      %s27 = sadd.s32 %s20, 1
      %s28 = ssub.s32 %s20, %s27
      %p29 = scmp.eq.s32.totalorder %s28, 0
      %s31 = sadd.s32 %s30, 1
      %s32 = scalar_select %p29, %s30, %s31
      %p35 = pneg %p29
      %p36 = scmp.eq.s32.totalorder %s20, 1
      %p37 = por %p35, %p36
      %p38 = scmp.ne.s32.totalorder %s30, %s33
      %p39 = scmp.eq.s32.totalorder %s20, 0
      %p40 = por %p38, %p39
      %p41 = scmp.ne.s32.totalorder %s30, %s33
      %p42 = scmp.eq.s32.totalorder %s25, 1
      %p43 = por %p41, %p42
      %p44 = scmp.ne.s32.totalorder %s33, %s34
      %p45 = scmp.eq.s32.totalorder %s25, 0
      %p46 = por %p44, %p45
      %p47 = scmp.ne.s32.totalorder %s33, %s34
      %p48 = scmp.eq.s32.totalorder %s26, 1
      %p49 = por %p47, %p48
      %p51 = scmp.ne.s32.totalorder %s34, %s50
      %p52 = scmp.eq.s32.totalorder %s26, 0
      %p53 = por %p51, %p52
      %s55 = sadd.s32 %s54, 1
      %p58 = scmp.eq.s32.totalorder %s20, 1
      %p59 = scmp.ne.s32.totalorder %s54, %s56
      %p60 = scmp.eq.s32.totalorder %s20, 0
      %p61 = por %p59, %p60
      %p62 = scmp.ne.s32.totalorder %s54, %s56
      %p63 = scmp.eq.s32.totalorder %s25, 1
      %p64 = por %p62, %p63
      %p65 = scmp.ne.s32.totalorder %s56, %s57
      %p66 = scmp.eq.s32.totalorder %s25, 0
      %p67 = por %p65, %p66
      %p68 = scmp.ne.s32.totalorder %s56, %s57
      %p69 = scmp.eq.s32.totalorder %s26, 1
      %p70 = por %p68, %p69
      %p72 = scmp.ne.s32.totalorder %s57, %s71
      %p73 = scmp.eq.s32.totalorder %s26, 0
      %p74 = por %p72, %p73
      %s76 = sadd.s32 %s75, 1
      %p79 = scmp.eq.s32.totalorder %s20, 1
      %p80 = scmp.ne.s32.totalorder %s75, %s77
      %p81 = scmp.eq.s32.totalorder %s20, 0
      %p82 = por %p80, %p81
      %p83 = scmp.ne.s32.totalorder %s75, %s77
      %p84 = scmp.eq.s32.totalorder %s25, 1
      %p85 = por %p83, %p84
      %p86 = scmp.ne.s32.totalorder %s77, %s78
      %p87 = scmp.eq.s32.totalorder %s25, 0
      %p88 = por %p86, %p87
      %p89 = scmp.ne.s32.totalorder %s77, %s78
      %p90 = scmp.eq.s32.totalorder %s26, 1
      %p91 = por %p89, %p90
      %p93 = scmp.ne.s32.totalorder %s78, %s92
      %p94 = scmp.eq.s32.totalorder %s26, 0
      %p95 = por %p93, %p94
      %s97 = sadd.s32 %s96, 1
      %p100 = scmp.eq.s32.totalorder %s20, 1
      %p101 = scmp.ne.s32.totalorder %s96, %s98
      %p102 = scmp.eq.s32.totalorder %s20, 0
      %p103 = por %p101, %p102
      %p104 = scmp.ne.s32.totalorder %s96, %s98
      %p105 = scmp.eq.s32.totalorder %s25, 1
      %p106 = por %p104, %p105
      %p107 = scmp.ne.s32.totalorder %s98, %s99
      %p108 = scmp.eq.s32.totalorder %s25, 0
      %p109 = por %p107, %p108
      %p110 = scmp.ne.s32.totalorder %s98, %s99
      %p111 = scmp.eq.s32.totalorder %s26, 1
      %p112 = por %p110, %p111
      %p114 = scmp.ne.s32.totalorder %s99, %s113
      %p115 = scmp.eq.s32.totalorder %s26, 0
      %p116 = por %p114, %p115
      %s118 = sadd.s32 %s117, 1
      %p121 = scmp.eq.s32.totalorder %s20, 1
      %p122 = scmp.ne.s32.totalorder %s117, %s119
      %p123 = scmp.eq.s32.totalorder %s20, 0
      %p124 = por %p122, %p123
      %p125 = scmp.ne.s32.totalorder %s117, %s119
      %p126 = scmp.eq.s32.totalorder %s25, 1
      %p127 = por %p125, %p126
      %p128 = scmp.ne.s32.totalorder %s119, %s120
      %p129 = scmp.eq.s32.totalorder %s25, 0
      %p130 = por %p128, %p129
      %p131 = scmp.ne.s32.totalorder %s119, %s120
      %p132 = scmp.eq.s32.totalorder %s26, 1
      %p133 = por %p131, %p132
      %p135 = scmp.ne.s32.totalorder %s120, %s134
      %p136 = scmp.eq.s32.totalorder %s26, 0
      %p137 = por %p135, %p136
      %s139 = sadd.s32 %s138, 1
      %p142 = scmp.eq.s32.totalorder %s20, 1
      %p143 = scmp.ne.s32.totalorder %s138, %s140
      %p144 = scmp.eq.s32.totalorder %s20, 0
      %p145 = por %p143, %p144
      %p146 = scmp.ne.s32.totalorder %s138, %s140
      %p147 = scmp.eq.s32.totalorder %s25, 1
      %p148 = por %p146, %p147
      %p149 = scmp.ne.s32.totalorder %s140, %s141
      %p150 = scmp.eq.s32.totalorder %s25, 0
      %p151 = por %p149, %p150
      %p152 = scmp.ne.s32.totalorder %s140, %s141
      %p153 = scmp.eq.s32.totalorder %s26, 1
      %p154 = por %p152, %p153
      %p156 = scmp.ne.s32.totalorder %s141, %s155
      %p157 = scmp.eq.s32.totalorder %s26, 0
      %p158 = por %p156, %p157
      %s160 = sadd.s32 %s159, 1
      %p163 = scmp.eq.s32.totalorder %s20, 1
      %p164 = scmp.ne.s32.totalorder %s159, %s161
      %p165 = scmp.eq.s32.totalorder %s20, 0
      %p166 = por %p164, %p165
      %p167 = scmp.ne.s32.totalorder %s159, %s161
      %p168 = scmp.eq.s32.totalorder %s25, 1
      %p169 = por %p167, %p168
      %p170 = scmp.ne.s32.totalorder %s161, %s162
      %p171 = scmp.eq.s32.totalorder %s25, 0
      %p172 = por %p170, %p171
      %p173 = scmp.ne.s32.totalorder %s161, %s162
      %p174 = scmp.eq.s32.totalorder %s26, 1
      %p175 = por %p173, %p174
      %p177 = scmp.ne.s32.totalorder %s162, %s176
      %p178 = scmp.eq.s32.totalorder %s26, 0
      %p179 = por %p177, %p178
      %s181 = sadd.s32 %s180, 1
      %p184 = scmp.eq.s32.totalorder %s20, 1
      %p185 = scmp.ne.s32.totalorder %s180, %s182
      %p186 = scmp.eq.s32.totalorder %s20, 0
      %p187 = por %p185, %p186
      %p188 = scmp.ne.s32.totalorder %s180, %s182
      %p189 = scmp.eq.s32.totalorder %s25, 1
      %p190 = por %p188, %p189
      %p191 = scmp.ne.s32.totalorder %s182, %s183
      %p192 = scmp.eq.s32.totalorder %s25, 0
      %p193 = por %p191, %p192
      %p194 = scmp.ne.s32.totalorder %s182, %s183
      %p195 = scmp.eq.s32.totalorder %s26, 1
      %p196 = por %p194, %p195
      %p198 = scmp.ne.s32.totalorder %s183, %s197
      %p199 = scmp.eq.s32.totalorder %s26, 0
      %p200 = por %p198, %p199
      %s202 = sadd.s32 %s201, 1
      %p205 = scmp.eq.s32.totalorder %s20, 1
      %p206 = scmp.ne.s32.totalorder %s201, %s203
      %p207 = scmp.eq.s32.totalorder %s20, 0
      %p208 = por %p206, %p207
      %p209 = scmp.ne.s32.totalorder %s201, %s203
      %p210 = scmp.eq.s32.totalorder %s25, 1
      %p211 = por %p209, %p210
      %p212 = scmp.ne.s32.totalorder %s203, %s204
      %p213 = scmp.eq.s32.totalorder %s25, 0
      %p214 = por %p212, %p213
      %p215 = scmp.ne.s32.totalorder %s203, %s204
      %p216 = scmp.eq.s32.totalorder %s26, 1
      %p217 = por %p215, %p216
      %p219 = scmp.ne.s32.totalorder %s204, %s218
      %p220 = scmp.eq.s32.totalorder %s26, 0
      %p221 = por %p219, %p220
      %s223 = sadd.s32 %s222, 1
      %p226 = scmp.eq.s32.totalorder %s20, 1
      %p227 = scmp.ne.s32.totalorder %s222, %s224
      %p228 = scmp.eq.s32.totalorder %s20, 0
      %p229 = por %p227, %p228
      %p230 = scmp.ne.s32.totalorder %s222, %s224
      %p231 = scmp.eq.s32.totalorder %s25, 1
      %p232 = por %p230, %p231
      %p233 = scmp.ne.s32.totalorder %s224, %s225
      %p234 = scmp.eq.s32.totalorder %s25, 0
      %p235 = por %p233, %p234
      %p236 = scmp.ne.s32.totalorder %s224, %s225
      %p237 = scmp.eq.s32.totalorder %s26, 1
      %p238 = por %p236, %p237
      %p240 = scmp.ne.s32.totalorder %s225, %s239
      %p241 = scmp.eq.s32.totalorder %s26, 0
      %p242 = por %p240, %p241
      %s244 = sadd.s32 %s243, 1
      %p247 = scmp.eq.s32.totalorder %s20, 1
      %p248 = scmp.ne.s32.totalorder %s243, %s245
      %p249 = scmp.eq.s32.totalorder %s20, 0
      %p250 = por %p248, %p249
      %p251 = scmp.ne.s32.totalorder %s243, %s245
      %p252 = scmp.eq.s32.totalorder %s25, 1
      %p253 = por %p251, %p252
      %p254 = scmp.ne.s32.totalorder %s245, %s246
      %p255 = scmp.eq.s32.totalorder %s25, 0
      %p256 = por %p254, %p255
      %p257 = scmp.ne.s32.totalorder %s245, %s246
      %p258 = scmp.eq.s32.totalorder %s26, 1
      %p259 = por %p257, %p258
      %p261 = scmp.ne.s32.totalorder %s246, %s260
      %p262 = scmp.eq.s32.totalorder %s26, 0
      %p263 = por %p261, %p262
      %s264 = ssub.s32 %s20, %s27
      %p265 = scmp.eq.s32.totalorder %s264, 0
      %s267 = sadd.s32 %s266, 1
      %s268 = scalar_select %p265, %s266, %s267
      %p271 = pneg %p265
      %p272 = scmp.eq.s32.totalorder %s20, 1
      %p273 = por %p271, %p272
      %p274 = scmp.ne.s32.totalorder %s266, %s269
      %p275 = scmp.eq.s32.totalorder %s20, 0
      %p276 = por %p274, %p275
      %p277 = scmp.ne.s32.totalorder %s266, %s269
      %p278 = scmp.eq.s32.totalorder %s25, 1
      %p279 = por %p277, %p278
      %p280 = scmp.ne.s32.totalorder %s269, %s270
      %p281 = scmp.eq.s32.totalorder %s25, 0
      %p282 = por %p280, %p281
      %p283 = scmp.ne.s32.totalorder %s269, %s270
      %p284 = scmp.eq.s32.totalorder %s26, 1
      %p285 = por %p283, %p284
      %p287 = scmp.ne.s32.totalorder %s270, %s286
      %p288 = scmp.eq.s32.totalorder %s26, 0
      %p289 = por %p287, %p288
      %p290 = scmp.le.s32.totalorder 1, %s20
      %p291 = scmp.lt.s32.totalorder %s20, 3
      %p292 = pnand %p290, %p291
      %p293 = pneg %p292
      // Predicated region
      $region9: #{_lambda_.1} parent=5 // pred_check
        _
      $region10: #{_lambda_.1} parent=5 // pred_check_branch
        %295 = sbr.rel (%p292) target = $region12
      $region11: #{_lambda_.1} parent=5 // pred_region
        %s296 = ssub.s32 %s20, 1
        // Predicated region
        $region13: #{_lambda_.1} parent=11 // pred_check
          %p297 = pneg %p67
        $region14: #{_lambda_.1} parent=11 // pred_check_branch
          %299 = sbr.rel (%p297) target = $region16
        $region15: #{_lambda_.1} parent=11 // pred_region
          _
        $region16: #{_lambda_.1} parent=11 // pred_fallthru
          _
        // Predicated region
        $region17: #{_lambda_.1} parent=11 // pred_check
          %p300 = pneg %p88
        $region18: #{_lambda_.1} parent=11 // pred_check_branch
          %302 = sbr.rel (%p300) target = $region20
        $region19: #{_lambda_.1} parent=11 // pred_region
          _
        $region20: #{_lambda_.1} parent=11 // pred_fallthru
          _
        // Predicated region
        $region21: #{_lambda_.1} parent=11 // pred_check
          %p303 = pneg %p109
        $region22: #{_lambda_.1} parent=11 // pred_check_branch
          %305 = sbr.rel (%p303) target = $region24
        $region23: #{_lambda_.1} parent=11 // pred_region
          _
        $region24: #{_lambda_.1} parent=11 // pred_fallthru
          _
        // Predicated region
        $region25: #{_lambda_.1} parent=11 // pred_check
          %p306 = pneg %p130
        $region26: #{_lambda_.1} parent=11 // pred_check_branch
          %308 = sbr.rel (%p306) target = $region28
        $region27: #{_lambda_.1} parent=11 // pred_region
          _
        $region28: #{_lambda_.1} parent=11 // pred_fallthru
          _
        // Predicated region
        $region29: #{_lambda_.1} parent=11 // pred_check
          %p309 = pneg %p151
        $region30: #{_lambda_.1} parent=11 // pred_check_branch
          %311 = sbr.rel (%p309) target = $region32
        $region31: #{_lambda_.1} parent=11 // pred_region
          _
        $region32: #{_lambda_.1} parent=11 // pred_fallthru
          _
        // Predicated region
        $region33: #{_lambda_.1} parent=11 // pred_check
          %p312 = pneg %p172
        $region34: #{_lambda_.1} parent=11 // pred_check_branch
          %314 = sbr.rel (%p312) target = $region36
        $region35: #{_lambda_.1} parent=11 // pred_region
          _
        $region36: #{_lambda_.1} parent=11 // pred_fallthru
          _
        // Predicated region
        $region37: #{_lambda_.1} parent=11 // pred_check
          %p315 = pneg %p193
        $region38: #{_lambda_.1} parent=11 // pred_check_branch
          %317 = sbr.rel (%p315) target = $region40
        $region39: #{_lambda_.1} parent=11 // pred_region
          _
        $region40: #{_lambda_.1} parent=11 // pred_fallthru
          _
        // Predicated region
        $region41: #{_lambda_.1} parent=11 // pred_check
          %p318 = pneg %p214
        $region42: #{_lambda_.1} parent=11 // pred_check_branch
          %320 = sbr.rel (%p318) target = $region44
        $region43: #{_lambda_.1} parent=11 // pred_region
          _
        $region44: #{_lambda_.1} parent=11 // pred_fallthru
          _
        // Predicated region
        $region45: #{_lambda_.1} parent=11 // pred_check
          %p321 = pneg %p235
        $region46: #{_lambda_.1} parent=11 // pred_check_branch
          %323 = sbr.rel (%p321) target = $region48
        $region47: #{_lambda_.1} parent=11 // pred_region
          _
        $region48: #{_lambda_.1} parent=11 // pred_fallthru
          _
        // Predicated region
        $region49: #{_lambda_.1} parent=11 // pred_check
          %p324 = pneg %p256
        $region50: #{_lambda_.1} parent=11 // pred_check_branch
          %326 = sbr.rel (%p324) target = $region52
        $region51: #{_lambda_.1} parent=11 // pred_region
          _
        $region52: #{_lambda_.1} parent=11 // pred_fallthru
          _
      $region12: #{_lambda_.1} parent=5 // pred_fallthru
        _
      %p327 = scmp.lt.s32.totalorder %s20, 2
      // Predicated region
      $region53: #{_lambda_.1} parent=5 // pred_check
        %p328 = pneg %p327
      $region54: #{_lambda_.1} parent=5 // pred_check_branch
        %330 = sbr.rel (%p328) target = $region56
      $region55: #{_lambda_.1} parent=5 // pred_region
        // Predicated region
        $region57: #{_lambda_.1} parent=55 // pred_check
          %p331 = pneg %p40
        $region58: #{_lambda_.1} parent=55 // pred_check_branch
          %333 = sbr.rel (%p331) target = $region60
        $region59: #{_lambda_.1} parent=55 // pred_region
          %p334 = scmp.lt.s32.totalorder %s20, 1
          %s335 = scalar_select %p334, %s20, 1
          %s336 = smul.addr %s335, 8
          %s337 = smul.addr %s336, 4
          %s338 = scalar_lea.vmem %s0, %s337
        $region60: #{_lambda_.1} parent=55 // pred_fallthru
          _
      $region56: #{_lambda_.1} parent=5 // pred_fallthru
        _
      %p339 = scmp.le.s32.totalorder 1, %s20
      %p340 = scmp.lt.s32.totalorder %s20, 3
      %p341 = pnand %p339, %p340
      %p342 = pneg %p341
      // Predicated region
      $region61: #{_lambda_.1} parent=5 // pred_check
        _
      $region62: #{_lambda_.1} parent=5 // pred_check_branch
        %344 = sbr.rel (%p341) target = $region64
      $region63: #{_lambda_.1} parent=5 // pred_region
        %s345 = ssub.s32 %s20, 1
        %p346 = scmp.lt.s32.totalorder %s25, 1
        %s347 = scalar_select %p346, %s25, 1
        %s348 = smul.addr %s347, 8
        %s349 = smul.addr %s348, 4
        %s350 = scalar_lea.vmem %s0, %s349
        %p351 = pneg %p46
        %p352 = pneg %p43
        %p353 = pneg %p67
        %p354 = pneg %p64
        %p355 = pneg %p88
        %p356 = pneg %p85
        %p357 = pneg %p109
        %p358 = pneg %p106
        %p359 = pneg %p130
        %p360 = pneg %p127
        %p361 = pneg %p151
        %p362 = pneg %p148
        %p363 = pneg %p172
        %p364 = pneg %p169
        %p365 = pneg %p193
        %p366 = pneg %p190
        %p367 = pneg %p214
        %p368 = pneg %p211
        %p369 = pneg %p235
        %p370 = pneg %p232
        %p371 = pneg %p256
        %p372 = pneg %p253
        %p373 = pneg %p282
        %p374 = pneg %p279
        %s375 = sand.u32 %s269, 1
        %s376 = scalar_lea.sflag [#allocation7], %s375
        %s377 = sand.u32 %s269, 1
        %s378 = smul.addr %s377, 16
        %s379 = scalar_lea.vmem [#allocation6], %s378
        %p380 = scmp.lt.s32.totalorder %s25, 1
        %s381 = scalar_select %p380, %s25, 1
        %s382 = smul.addr %s381, 8
        %s383 = smul.addr %s382, 4
        %s384 = scalar_lea.vmem %s0, %s383
        %v386 = vld [vmem:[%s384] sm:$0xf]
        %v387 = vld [vmem:[%s384 + $0x4] sm:$0xf]
        %v388 = vld [vmem:[%s384 + $0x8] sm:$0xf]
        %v389 = vld [vmem:[%s384 + $0xc] sm:$0xf]
        %v390 = vld [vmem:[%s384 + $0x10] sm:$0xf]
        %v391 = vld [vmem:[%s384 + $0x14] sm:$0xf]
        %v392 = vld [vmem:[%s384 + $0x18] sm:$0xf]
        %v393 = vld [vmem:[%s384 + $0x1c] sm:$0xf]
        %v394 = vld [vmem:[%s1] sm:$0xf]
        %v395 = vld [vmem:[%s1 + $0x4] sm:$0xf]
        %v396 = vld [vmem:[%s1 + $0x8] sm:$0xf]
        %v397 = vld [vmem:[%s1 + $0xc] sm:$0xf]
        %v398 = vld [vmem:[%s1 + $0x10] sm:$0xf]
        %v399 = vld [vmem:[%s1 + $0x14] sm:$0xf]
        %v400 = vld [vmem:[%s1 + $0x18] sm:$0xf]
        %v401 = vld [vmem:[%s1 + $0x1c] sm:$0xf]
        %v402 = vld [vmem:[%s2] sm:$0x1]
        %v404 = vlaneseq
        %v405 = vshrl.u32 %v404, 7
        %v406 = vsub.s32 0, %v405
        %v407 = vrot.slane %v402, %v406
        %v417 = vunpack.c.l.b16 %v386
        %v418 = vunpack.c.l.b16 %v387
        %v419 = vunpack.c.l.b16 %v388
        %v420 = vunpack.c.l.b16 %v389
        %v421 = vunpack.c.l.b16 %v390
        %v422 = vunpack.c.l.b16 %v391
        %v423 = vunpack.c.l.b16 %v392
        %v424 = vunpack.c.l.b16 %v393
        %v425 = vpack.c.b16 %v418, %v417
        %v426 = vpack.c.b16 %v420, %v419
        %v427 = vpack.c.b16 %v422, %v421
        %v428 = vpack.c.b16 %v424, %v423
        %v437 = vunpack.c.l.b16 %v394
        %v438 = vunpack.c.l.b16 %v395
        %v439 = vunpack.c.l.b16 %v396
        %v440 = vunpack.c.l.b16 %v397
        %v441 = vunpack.c.l.b16 %v398
        %v442 = vunpack.c.l.b16 %v399
        %v443 = vunpack.c.l.b16 %v400
        %v444 = vunpack.c.l.b16 %v401
        %v445 = vpack.c.b16 %v438, %v437
        %v446 = vpack.c.b16 %v440, %v439
        %v447 = vpack.c.b16 %v442, %v441
        %v448 = vpack.c.b16 %v444, %v443
        %vm453 = vcmask 523264
        %v455 = vsel %vm453, %v425, 0
        %v458 = vsel %vm453, %v426, 0
        %v461 = vsel %vm453, %v427, 0
        %v464 = vsel %vm453, %v428, 0
        %466 = vmatprep.subr.bf16.mxu0 0
        %467 = vmatpush1.bf16.msra.mxu0 %v445
        %468 = vmatprep.subr.bf16.mxu0 0
        %469 = vmatpush1.bf16.msra.mxu0 %v446
        %470 = vmatprep.subr.bf16.mxu0 0
        %471 = vmatpush1.bf16.msra.mxu0 %v447
        %472 = vmatprep.subr.bf16.mxu0 0
        %473 = vmatpush1.bf16.msra.mxu0 %v448
        %474 = vmatprep.subr.bf16.mxu0 0
        %475 = vmatpush1.bf16.msra.mxu0 0
        %476 = vmatprep.subr.bf16.mxu0 0
        %477 = vmatpush1.bf16.msra.mxu0 0
        %478 = vmatprep.subr.bf16.mxu0 0
        %479 = vmatpush1.bf16.msra.mxu0 0
        %480 = vmatprep.subr.bf16.mxu0 0
        %481 = vmatpush1.bf16.msra.mxu0 0
        %482 = vmatprep.subr.bf16.mxu0 0
        %483 = vmatpush1.bf16.msra.mxu0 0
        %484 = vmatprep.subr.bf16.mxu0 0
        %485 = vmatpush1.bf16.msra.mxu0 0
        %486 = vmatprep.subr.bf16.mxu0 0
        %487 = vmatpush1.bf16.msra.mxu0 0
        %488 = vmatprep.subr.bf16.mxu0 0
        %489 = vmatpush1.bf16.msra.mxu0 0
        %490 = vmatprep.subr.bf16.mxu0 0
        %491 = vmatpush1.bf16.msra.mxu0 0
        %492 = vmatprep.subr.bf16.mxu0 0
        %493 = vmatpush1.bf16.msra.mxu0 0
        %494 = vmatprep.subr.bf16.mxu0 0
        %495 = vmatpush1.bf16.msra.mxu0 0
        %496 = vmatprep.subr.bf16.mxu0 0
        %497 = vmatpush1.bf16.msra.mxu0 0
        %498 = vmatprep.mubr.bf16.mxu0 0
        %499 = vmatmul.mubr.bf16.gmra.mrb[0].mxu0 %v455
        %v500 = vpop.f32.mrb[0].mxu0
        %v501 = vadd.f32 %v407, %v500
        %v502 = vpop.f32.mrb[0].mxu0
        %v503 = vpop.f32.mrb[0].mxu0
        %v504 = vadd.f32 %v407, %v503
        %v505 = vpop.f32.mrb[0].mxu0
        %506 = vmatprep.mubr.bf16.mxu0 0
        %507 = vmatmul.mubr.bf16.gmra.mrb[0].mxu0 %v458
        %v508 = vpop.f32.mrb[0].mxu0
        %v509 = vadd.f32 %v407, %v508
        %v510 = vpop.f32.mrb[0].mxu0
        %v511 = vpop.f32.mrb[0].mxu0
        %v512 = vadd.f32 %v407, %v511
        %v513 = vpop.f32.mrb[0].mxu0
        %514 = vmatprep.mubr.bf16.mxu0 0
        %515 = vmatmul.mubr.bf16.gmra.mrb[0].mxu0 %v461
        %v516 = vpop.f32.mrb[0].mxu0
        %v517 = vadd.f32 %v407, %v516
        %v518 = vpop.f32.mrb[0].mxu0
        %v519 = vpop.f32.mrb[0].mxu0
        %v520 = vadd.f32 %v407, %v519
        %v521 = vpop.f32.mrb[0].mxu0
        %522 = vmatprep.mubr.bf16.mxu0 0
        %523 = vmatmul.mubr.bf16.gmra.mrb[0].mxu0 %v464
        %v524 = vpop.f32.mrb[0].mxu0
        %v525 = vadd.f32 %v407, %v524
        %v526 = vpop.f32.mrb[0].mxu0
        %v527 = vpop.f32.mrb[0].mxu0
        %v528 = vadd.f32 %v407, %v527
        %v529 = vpop.f32.mrb[0].mxu0
        %530 = vdwg.mxu0
        %v531 = vmax.f32 %v501, 0.0
        %v532 = vmax.f32 %v504, 0.0
        %v533 = vmax.f32 %v509, 0.0
        %v534 = vmax.f32 %v512, 0.0
        %v535 = vmax.f32 %v517, 0.0
        %v536 = vmax.f32 %v520, 0.0
        %v537 = vmax.f32 %v525, 0.0
        %v538 = vmax.f32 %v528, 0.0
        %539 = vst.msk [vmem:[#allocation2] sm:$0xff] %vm453, 0.0
        %540 = vst.msk [vmem:[#allocation2 + $0x8] sm:$0xff] %vm453, 0.0
        %541 = vst.msk [vmem:[#allocation2 + $0x10] sm:$0xff] %vm453, 0.0
        %542 = vst.msk [vmem:[#allocation2 + $0x18] sm:$0xff] %vm453, 0.0
        %543 = vst.msk [vmem:[#allocation2 + $0x20] sm:$0xff] %vm453, 0.0
        %545 = vrot.lane.b32.xlu0 %v531, 48
        %v546 = vpop.permute.xlu0 %545
        %vm548 = vcmask 519552
        %549 = vst.msk [vmem:[#allocation2] sm:$0xf] %vm548, %v546
        %vm550 = vcmask 523652
        %551 = vst.msk [vmem:[#allocation2 + $0x4] sm:$0xf0] %vm550, %v546
        %553 = vrot.lane.b32.xlu0 %v532, 48
        %v554 = vpop.permute.xlu0 %553
        %556 = vst.msk [vmem:[#allocation2 + $0x10] sm:$0xf] %vm548, %v554
        %557 = vst.msk [vmem:[#allocation2 + $0x14] sm:$0xf0] %vm550, %v554
        %559 = vrot.lane.b32.xlu0 %v533, 32
        %v560 = vpop.permute.xlu0 %559
        %vm562 = vcmask 388352
        %563 = vst.msk [vmem:[#allocation2 + $0x1] sm:$0xf] %vm562, %v560
        %vm564 = vcmask 392452
        %565 = vst.msk [vmem:[#allocation2 + $0x5] sm:$0xf0] %vm564, %v560
        %567 = vrot.lane.b32.xlu0 %v534, 32
        %v568 = vpop.permute.xlu0 %567
        %570 = vst.msk [vmem:[#allocation2 + $0x11] sm:$0xf] %vm562, %v568
        %571 = vst.msk [vmem:[#allocation2 + $0x15] sm:$0xf0] %vm564, %v568
        %573 = vrot.lane.b32.xlu0 %v535, 16
        %v574 = vpop.permute.xlu0 %573
        %vm576 = vcmask 257152
        %577 = vst.msk [vmem:[#allocation2 + $0x8] sm:$0xf] %vm576, %v574
        %vm578 = vcmask 261252
        %579 = vst.msk [vmem:[#allocation2 + $0xc] sm:$0xf0] %vm578, %v574
        %581 = vrot.lane.b32.xlu0 %v536, 16
        %v582 = vpop.permute.xlu0 %581
        %584 = vst.msk [vmem:[#allocation2 + $0x18] sm:$0xf] %vm576, %v582
        %585 = vst.msk [vmem:[#allocation2 + $0x1c] sm:$0xf0] %vm578, %v582
        %vm586 = vcmask 125952
        %587 = vst.msk [vmem:[#allocation2 + $0x9] sm:$0xf] %vm586, %v537
        %vm588 = vcmask 130052
        %589 = vst.msk [vmem:[#allocation2 + $0xd] sm:$0xf0] %vm588, %v537
        %590 = vst.msk [vmem:[#allocation2 + $0x19] sm:$0xf] %vm586, %v538
        %591 = vst.msk [vmem:[#allocation2 + $0x1d] sm:$0xf0] %vm588, %v538
        %v592 = vld [vmem:[#allocation2] sm:$0xff]
        %v593 = vld [vmem:[#allocation2 + $0x8] sm:$0xff]
        %v594 = vld [vmem:[#allocation2 + $0x10] sm:$0xff]
        %v595 = vld [vmem:[#allocation2 + $0x18] sm:$0xf]
        %596 = vst.msk [vmem:[#allocation3] sm:$0xff] %vm453, %v592
        %597 = vst.msk [vmem:[#allocation3 + $0x10] sm:$0xff] %vm453, %v593
        %598 = vst.msk [vmem:[#allocation3 + $0x20] sm:$0xff] %vm453, %v594
        %vm599 = vcmask 519168
        %600 = vst.msk [vmem:[#allocation3 + $0x30] sm:$0xf] %vm599, %v595
        %v601 = vld [vmem:[#allocation2 + $0x1] sm:$0xff]
        %v602 = vld [vmem:[#allocation2 + $0x9] sm:$0xff]
        %v603 = vld [vmem:[#allocation2 + $0x11] sm:$0xff]
        %v604 = vld [vmem:[#allocation2 + $0x19] sm:$0xf]
        %609 = vrot.lane.b32.xlu0 %v601, 64
        %v610 = vpop.permute.xlu0 %609
        %611 = vrot.lane.b32.xlu0 %v602, 64
        %v612 = vpop.permute.xlu0 %611
        %613 = vrot.lane.b32.xlu0 %v603, 64
        %v614 = vpop.permute.xlu0 %613
        %615 = vrot.lane.b32.xlu0 %v604, 64
        %v616 = vpop.permute.xlu0 %615
        %vm621 = vcmask 1048064
        %622 = vst.msk [vmem:[#allocation3] sm:$0xff] %vm621, %v610
        %623 = vst.msk [vmem:[#allocation3 + $0x10] sm:$0xff] %vm621, %v612
        %624 = vst.msk [vmem:[#allocation3 + $0x20] sm:$0xff] %vm621, %v614
        %vm625 = vcmask 1043968
        %626 = vst.msk [vmem:[#allocation3 + $0x30] sm:$0xf] %vm625, %v616
        %v627 = vld [vmem:[#allocation2 + $0x8] sm:$0xff]
        %v628 = vld [vmem:[#allocation2 + $0x10] sm:$0xff]
        %v629 = vld [vmem:[#allocation2 + $0x18] sm:$0xff]
        %v630 = vld [vmem:[#allocation2 + $0x20] sm:$0xf]
        %631 = vst.msk [vmem:[#allocation3 + $0x8] sm:$0xff] %vm453, %v627
        %632 = vst.msk [vmem:[#allocation3 + $0x18] sm:$0xff] %vm453, %v628
        %633 = vst.msk [vmem:[#allocation3 + $0x28] sm:$0xff] %vm453, %v629
        %634 = vst.msk [vmem:[#allocation3 + $0x38] sm:$0xf] %vm599, %v630
        %v635 = vld [vmem:[#allocation2 + $0x9] sm:$0xff]
        %v636 = vld [vmem:[#allocation2 + $0x11] sm:$0xff]
        %v637 = vld [vmem:[#allocation2 + $0x19] sm:$0xff]
        %v638 = vld [vmem:[#allocation2 + $0x21] sm:$0xf]
        %643 = vrot.lane.b32.xlu0 %v635, 64
        %v644 = vpop.permute.xlu0 %643
        %645 = vrot.lane.b32.xlu0 %v636, 64
        %v646 = vpop.permute.xlu0 %645
        %647 = vrot.lane.b32.xlu0 %v637, 64
        %v648 = vpop.permute.xlu0 %647
        %649 = vrot.lane.b32.xlu0 %v638, 64
        %v650 = vpop.permute.xlu0 %649
        %655 = vst.msk [vmem:[#allocation3 + $0x8] sm:$0xff] %vm621, %v644
        %656 = vst.msk [vmem:[#allocation3 + $0x18] sm:$0xff] %vm621, %v646
        %657 = vst.msk [vmem:[#allocation3 + $0x28] sm:$0xff] %vm621, %v648
        %658 = vst.msk [vmem:[#allocation3 + $0x38] sm:$0xf] %vm625, %v650
        %v659 = vld [vmem:[#allocation3] sm:$0xff]
        %v660 = vld [vmem:[#allocation3 + $0x8] sm:$0xff]
        %v661 = vld [vmem:[#allocation3 + $0x10] sm:$0xff]
        %v662 = vld [vmem:[#allocation3 + $0x18] sm:$0xff]
        %v663 = vld [vmem:[#allocation3 + $0x20] sm:$0xff]
        %v664 = vld [vmem:[#allocation3 + $0x28] sm:$0xff]
        %v665 = vld [vmem:[#allocation3 + $0x30] sm:$0xf]
        %v666 = vld [vmem:[#allocation3 + $0x38] sm:$0xf]
        %v667 = vpack.c.bf16 %v661, %v659
        %v668 = vpack.c.bf16 %v662, %v660
        %v669 = vpack.c.bf16 %v665, %v663
        %v670 = vpack.c.bf16 %v666, %v664
        %v671 = vld [vmem:[%s3] sm:$0xf]
        %v672 = vld [vmem:[%s3 + $0x4] sm:$0xf]
        %v673 = vld [vmem:[%s3 + $0x8] sm:$0xf]
        %v674 = vld [vmem:[%s3 + $0xc] sm:$0xf]
        %v675 = vld [vmem:[%s3 + $0x10] sm:$0xf]
        %v676 = vld [vmem:[%s3 + $0x14] sm:$0xf]
        %v677 = vld [vmem:[%s3 + $0x18] sm:$0xf]
        %v678 = vld [vmem:[%s3 + $0x1c] sm:$0xf]
        %v679 = vld [vmem:[%s3 + $0x20] sm:$0xf]
        %v680 = vld [vmem:[%s3 + $0x24] sm:$0xf]
        %v681 = vld [vmem:[%s3 + $0x28] sm:$0xf]
        %v682 = vld [vmem:[%s3 + $0x2c] sm:$0xf]
        %v683 = vld [vmem:[%s3 + $0x30] sm:$0xf]
        %v684 = vld [vmem:[%s3 + $0x34] sm:$0xf]
        %v685 = vld [vmem:[%s3 + $0x38] sm:$0xf]
        %v686 = vld [vmem:[%s3 + $0x3c] sm:$0xf]
        %v687 = vld [vmem:[%s3 + $0x40] sm:$0xf]
        %v688 = vld [vmem:[%s3 + $0x44] sm:$0xf]
        %v689 = vld [vmem:[%s3 + $0x48] sm:$0xf]
        %v690 = vld [vmem:[%s3 + $0x4c] sm:$0xf]
        %v691 = vld [vmem:[%s3 + $0x50] sm:$0xf]
        %v692 = vld [vmem:[%s3 + $0x54] sm:$0xf]
        %v693 = vld [vmem:[%s3 + $0x58] sm:$0xf]
        %v694 = vld [vmem:[%s3 + $0x5c] sm:$0xf]
        %v695 = vld [vmem:[%s3 + $0x60] sm:$0xf]
        %v696 = vld [vmem:[%s3 + $0x64] sm:$0xf]
        %v697 = vld [vmem:[%s3 + $0x68] sm:$0xf]
        %v698 = vld [vmem:[%s3 + $0x6c] sm:$0xf]
        %v699 = vld [vmem:[%s3 + $0x70] sm:$0xf]
        %v700 = vld [vmem:[%s3 + $0x74] sm:$0xf]
        %v701 = vld [vmem:[%s3 + $0x78] sm:$0xf]
        %v702 = vld [vmem:[%s3 + $0x7c] sm:$0xf]
        %v703 = vld [vmem:[%s4] sm:$0x1]
        %v705 = vlaneseq
        %v706 = vshrl.u32 %v705, 7
        %v707 = vsub.s32 0, %v706
        %v708 = vrot.slane %v703, %v707
        %v742 = vunpack.c.l.b16 %v671
        %v743 = vunpack.c.l.b16 %v672
        %v744 = vunpack.c.l.b16 %v673
        %v745 = vunpack.c.l.b16 %v674
        %v746 = vunpack.c.l.b16 %v675
        %v747 = vunpack.c.l.b16 %v676
        %v748 = vunpack.c.l.b16 %v677
        %v749 = vunpack.c.l.b16 %v678
        %v750 = vunpack.c.l.b16 %v679
        %v751 = vunpack.c.l.b16 %v680
        %v752 = vunpack.c.l.b16 %v681
        %v753 = vunpack.c.l.b16 %v682
        %v754 = vunpack.c.l.b16 %v683
        %v755 = vunpack.c.l.b16 %v684
        %v756 = vunpack.c.l.b16 %v685
        %v757 = vunpack.c.l.b16 %v686
        %v758 = vunpack.c.l.b16 %v687
        %v759 = vunpack.c.l.b16 %v688
        %v760 = vunpack.c.l.b16 %v689
        %v761 = vunpack.c.l.b16 %v690
        %v762 = vunpack.c.l.b16 %v691
        %v763 = vunpack.c.l.b16 %v692
        %v764 = vunpack.c.l.b16 %v693
        %v765 = vunpack.c.l.b16 %v694
        %v766 = vunpack.c.l.b16 %v695
        %v767 = vunpack.c.l.b16 %v696
        %v768 = vunpack.c.l.b16 %v697
        %v769 = vunpack.c.l.b16 %v698
        %v770 = vunpack.c.l.b16 %v699
        %v771 = vunpack.c.l.b16 %v700
        %v772 = vunpack.c.l.b16 %v701
        %v773 = vunpack.c.l.b16 %v702
        %v774 = vpack.c.b16 %v743, %v742
        %v775 = vpack.c.b16 %v745, %v744
        %v776 = vpack.c.b16 %v747, %v746
        %v777 = vpack.c.b16 %v749, %v748
        %v778 = vpack.c.b16 %v751, %v750
        %v779 = vpack.c.b16 %v753, %v752
        %v780 = vpack.c.b16 %v755, %v754
        %v781 = vpack.c.b16 %v757, %v756
        %v782 = vpack.c.b16 %v759, %v758
        %v783 = vpack.c.b16 %v761, %v760
        %v784 = vpack.c.b16 %v763, %v762
        %v785 = vpack.c.b16 %v765, %v764
        %v786 = vpack.c.b16 %v767, %v766
        %v787 = vpack.c.b16 %v769, %v768
        %v788 = vpack.c.b16 %v771, %v770
        %v789 = vpack.c.b16 %v773, %v772
        %806 = vmatprep.subr.bf16.mxu0 0
        %807 = vmatpush1.bf16.msra.mxu0 %v774
        %808 = vmatprep.subr.bf16.mxu0 0
        %809 = vmatpush1.bf16.msra.mxu0 %v775
        %810 = vmatprep.subr.bf16.mxu0 0
        %811 = vmatpush1.bf16.msra.mxu0 %v776
        %812 = vmatprep.subr.bf16.mxu0 0
        %813 = vmatpush1.bf16.msra.mxu0 %v777
        %814 = vmatprep.subr.bf16.mxu0 0
        %815 = vmatpush1.bf16.msra.mxu0 %v778
        %816 = vmatprep.subr.bf16.mxu0 0
        %817 = vmatpush1.bf16.msra.mxu0 %v779
        %818 = vmatprep.subr.bf16.mxu0 0
        %819 = vmatpush1.bf16.msra.mxu0 %v780
        %820 = vmatprep.subr.bf16.mxu0 0
        %821 = vmatpush1.bf16.msra.mxu0 %v781
        %822 = vmatprep.subr.bf16.mxu0 0
        %823 = vmatpush1.bf16.msra.mxu0 %v782
        %824 = vmatprep.subr.bf16.mxu0 0
        %825 = vmatpush1.bf16.msra.mxu0 %v783
        %826 = vmatprep.subr.bf16.mxu0 0
        %827 = vmatpush1.bf16.msra.mxu0 %v784
        %828 = vmatprep.subr.bf16.mxu0 0
        %829 = vmatpush1.bf16.msra.mxu0 %v785
        %830 = vmatprep.subr.bf16.mxu0 0
        %831 = vmatpush1.bf16.msra.mxu0 %v786
        %832 = vmatprep.subr.bf16.mxu0 0
        %833 = vmatpush1.bf16.msra.mxu0 %v787
        %834 = vmatprep.subr.bf16.mxu0 0
        %835 = vmatpush1.bf16.msra.mxu0 %v788
        %836 = vmatprep.subr.bf16.mxu0 0
        %837 = vmatpush1.bf16.msra.mxu0 %v789
        %838 = vmatprep.mubr.bf16.mxu0 %v668
        %839 = vmatmul.mubr.bf16.gmra.mrb[0].mxu0 %v667
        %v840 = vpop.f32.mrb[0].mxu0
        %v841 = vadd.f32 %v708, %v840
        %v842 = vpop.f32.mrb[0].mxu0
        %v843 = vpop.f32.mrb[0].mxu0
        %v844 = vadd.f32 %v708, %v843
        %v845 = vpop.f32.mrb[0].mxu0
        %846 = vmatprep.mubr.bf16.mxu0 %v670
        %847 = vmatmul.mubr.bf16.gmra.mrb[0].mxu0 %v669
        %v848 = vpop.f32.mrb[0].mxu0
        %v849 = vadd.f32 %v708, %v848
        %v850 = vpop.f32.mrb[0].mxu0
        %v851 = vpop.f32.mrb[0].mxu0
        %v852 = vadd.f32 %v708, %v851
        %v853 = vpop.f32.mrb[0].mxu0
        %854 = vdwg.mxu0
        %v855 = vmax.f32 %v841, 0.0
        %v856 = vmax.f32 %v844, 0.0
        %v857 = vmax.f32 %v849, 0.0
        %v858 = vmax.f32 %v852, 0.0
        %vm859 = vcmask 261120
        %860 = vst.msk [vmem:[#allocation4] sm:$0xff] %vm859, 0.0
        %861 = vst.msk [vmem:[#allocation4 + $0x8] sm:$0xff] %vm859, 0.0
        %862 = vst.msk [vmem:[#allocation4 + $0x10] sm:$0xff] %vm859, 0.0
        %863 = vst.msk [vmem:[#allocation4 + $0x18] sm:$0xff] %vm859, 0.0
        %864 = vst.msk [vmem:[#allocation4 + $0x20] sm:$0xff] %vm859, 0.0
        %865 = vst.msk [vmem:[#allocation4 + $0x28] sm:$0xff] %vm859, 0.0
        %vm866 = vcmask 257024
        %867 = vst.msk [vmem:[#allocation4 + $0x9] sm:$0xf] %vm866, %v855
        %868 = vst.msk [vmem:[#allocation4 + $0x11] sm:$0xf] %vm866, %v856
        %869 = vst.msk [vmem:[#allocation4 + $0x19] sm:$0xf] %vm866, %v857
        %870 = vst.msk [vmem:[#allocation4 + $0x21] sm:$0xf] %vm866, %v858
        %v871 = vld [vmem:[#allocation4] sm:$0xff]
        %v872 = vld [vmem:[#allocation4 + $0x8] sm:$0xff]
        %v873 = vld [vmem:[#allocation4 + $0x10] sm:$0xff]
        %v874 = vld [vmem:[#allocation4 + $0x18] sm:$0xf]
        %875 = vst.msk [vmem:[#allocation5] sm:$0xff] %vm859, %v871
        %876 = vst.msk [vmem:[#allocation5 + $0x18] sm:$0xff] %vm859, %v872
        %877 = vst.msk [vmem:[#allocation5 + $0x30] sm:$0xff] %vm859, %v873
        %878 = vst.msk [vmem:[#allocation5 + $0x48] sm:$0xf] %vm866, %v874
        %v879 = vld [vmem:[#allocation4 + $0x1] sm:$0xff]
        %v880 = vld [vmem:[#allocation4 + $0x9] sm:$0xff]
        %v881 = vld [vmem:[#allocation4 + $0x11] sm:$0xff]
        %v882 = vld [vmem:[#allocation4 + $0x19] sm:$0xf]
        %887 = vrot.lane.b32.xlu0 %v879, 32
        %v888 = vpop.permute.xlu0 %887
        %889 = vrot.lane.b32.xlu0 %v880, 32
        %v890 = vpop.permute.xlu0 %889
        %891 = vrot.lane.b32.xlu0 %v881, 32
        %v892 = vpop.permute.xlu0 %891
        %893 = vrot.lane.b32.xlu0 %v882, 32
        %v894 = vpop.permute.xlu0 %893
        %vm899 = vcmask 523520
        %900 = vst.msk [vmem:[#allocation5] sm:$0xff] %vm899, %v888
        %901 = vst.msk [vmem:[#allocation5 + $0x18] sm:$0xff] %vm899, %v890
        %902 = vst.msk [vmem:[#allocation5 + $0x30] sm:$0xff] %vm899, %v892
        %vm903 = vcmask 519424
        %904 = vst.msk [vmem:[#allocation5 + $0x48] sm:$0xf] %vm903, %v894
        %v905 = vld [vmem:[#allocation4 + $0x2] sm:$0xff]
        %v906 = vld [vmem:[#allocation4 + $0xa] sm:$0xff]
        %v907 = vld [vmem:[#allocation4 + $0x12] sm:$0xff]
        %v908 = vld [vmem:[#allocation4 + $0x1a] sm:$0xf]
        %913 = vrot.lane.b32.xlu0 %v905, 64
        %v914 = vpop.permute.xlu0 %913
        %915 = vrot.lane.b32.xlu0 %v906, 64
        %v916 = vpop.permute.xlu0 %915
        %917 = vrot.lane.b32.xlu0 %v907, 64
        %v918 = vpop.permute.xlu0 %917
        %919 = vrot.lane.b32.xlu0 %v908, 64
        %v920 = vpop.permute.xlu0 %919
        %vm925 = vcmask 785920
        %926 = vst.msk [vmem:[#allocation5] sm:$0xff] %vm925, %v914
        %927 = vst.msk [vmem:[#allocation5 + $0x18] sm:$0xff] %vm925, %v916
        %928 = vst.msk [vmem:[#allocation5 + $0x30] sm:$0xff] %vm925, %v918
        %vm929 = vcmask 781824
        %930 = vst.msk [vmem:[#allocation5 + $0x48] sm:$0xf] %vm929, %v920
        %v931 = vld [vmem:[#allocation4 + $0x8] sm:$0xff]
        %v932 = vld [vmem:[#allocation4 + $0x10] sm:$0xff]
        %v933 = vld [vmem:[#allocation4 + $0x18] sm:$0xff]
        %v934 = vld [vmem:[#allocation4 + $0x20] sm:$0xf]
        %939 = vrot.lane.b32.xlu0 %v931, 96
        %v940 = vpop.permute.xlu0 %939
        %941 = vrot.lane.b32.xlu0 %v932, 96
        %v942 = vpop.permute.xlu0 %941
        %943 = vrot.lane.b32.xlu0 %v933, 96
        %v944 = vpop.permute.xlu0 %943
        %945 = vrot.lane.b32.xlu0 %v934, 96
        %v946 = vpop.permute.xlu0 %945
        %vm951 = vcmask 1048320
        %952 = vst.msk [vmem:[#allocation5] sm:$0xff] %vm951, %v940
        %953 = vst.msk [vmem:[#allocation5 + $0x18] sm:$0xff] %vm951, %v942
        %954 = vst.msk [vmem:[#allocation5 + $0x30] sm:$0xff] %vm951, %v944
        %vm955 = vcmask 1044224
        %956 = vst.msk [vmem:[#allocation5 + $0x48] sm:$0xf] %vm955, %v946
        %v957 = vld [vmem:[#allocation4 + $0x9] sm:$0xff]
        %v958 = vld [vmem:[#allocation4 + $0x11] sm:$0xff]
        %v959 = vld [vmem:[#allocation4 + $0x19] sm:$0xff]
        %v960 = vld [vmem:[#allocation4 + $0x21] sm:$0xf]
        %961 = vst.msk [vmem:[#allocation5 + $0x8] sm:$0xff] %vm859, %v957
        %962 = vst.msk [vmem:[#allocation5 + $0x20] sm:$0xff] %vm859, %v958
        %963 = vst.msk [vmem:[#allocation5 + $0x38] sm:$0xff] %vm859, %v959
        %964 = vst.msk [vmem:[#allocation5 + $0x50] sm:$0xf] %vm866, %v960
        %v965 = vld [vmem:[#allocation4 + $0xa] sm:$0xff]
        %v966 = vld [vmem:[#allocation4 + $0x12] sm:$0xff]
        %v967 = vld [vmem:[#allocation4 + $0x1a] sm:$0xff]
        %v968 = vld [vmem:[#allocation4 + $0x22] sm:$0xf]
        %973 = vrot.lane.b32.xlu0 %v965, 32
        %v974 = vpop.permute.xlu0 %973
        %975 = vrot.lane.b32.xlu0 %v966, 32
        %v976 = vpop.permute.xlu0 %975
        %977 = vrot.lane.b32.xlu0 %v967, 32
        %v978 = vpop.permute.xlu0 %977
        %979 = vrot.lane.b32.xlu0 %v968, 32
        %v980 = vpop.permute.xlu0 %979
        %985 = vst.msk [vmem:[#allocation5 + $0x8] sm:$0xff] %vm899, %v974
        %986 = vst.msk [vmem:[#allocation5 + $0x20] sm:$0xff] %vm899, %v976
        %987 = vst.msk [vmem:[#allocation5 + $0x38] sm:$0xff] %vm899, %v978
        %988 = vst.msk [vmem:[#allocation5 + $0x50] sm:$0xf] %vm903, %v980
        %v989 = vld [vmem:[#allocation4 + $0x10] sm:$0xff]
        %v990 = vld [vmem:[#allocation4 + $0x18] sm:$0xff]
        %v991 = vld [vmem:[#allocation4 + $0x20] sm:$0xff]
        %v992 = vld [vmem:[#allocation4 + $0x28] sm:$0xf]
        %997 = vrot.lane.b32.xlu0 %v989, 64
        %v998 = vpop.permute.xlu0 %997
        %999 = vrot.lane.b32.xlu0 %v990, 64
        %v1000 = vpop.permute.xlu0 %999
        %1001 = vrot.lane.b32.xlu0 %v991, 64
        %v1002 = vpop.permute.xlu0 %1001
        %1003 = vrot.lane.b32.xlu0 %v992, 64
        %v1004 = vpop.permute.xlu0 %1003
        %1009 = vst.msk [vmem:[#allocation5 + $0x8] sm:$0xff] %vm925, %v998
        %1010 = vst.msk [vmem:[#allocation5 + $0x20] sm:$0xff] %vm925, %v1000
        %1011 = vst.msk [vmem:[#allocation5 + $0x38] sm:$0xff] %vm925, %v1002
        %1012 = vst.msk [vmem:[#allocation5 + $0x50] sm:$0xf] %vm929, %v1004
        %v1013 = vld [vmem:[#allocation4 + $0x11] sm:$0xff]
        %v1014 = vld [vmem:[#allocation4 + $0x19] sm:$0xff]
        %v1015 = vld [vmem:[#allocation4 + $0x21] sm:$0xff]
        %v1016 = vld [vmem:[#allocation4 + $0x29] sm:$0xf]
        %1021 = vrot.lane.b32.xlu0 %v1013, 96
        %v1022 = vpop.permute.xlu0 %1021
        %1023 = vrot.lane.b32.xlu0 %v1014, 96
        %v1024 = vpop.permute.xlu0 %1023
        %1025 = vrot.lane.b32.xlu0 %v1015, 96
        %v1026 = vpop.permute.xlu0 %1025
        %1027 = vrot.lane.b32.xlu0 %v1016, 96
        %v1028 = vpop.permute.xlu0 %1027
        %1033 = vst.msk [vmem:[#allocation5 + $0x8] sm:$0xff] %vm951, %v1022
        %1034 = vst.msk [vmem:[#allocation5 + $0x20] sm:$0xff] %vm951, %v1024
        %1035 = vst.msk [vmem:[#allocation5 + $0x38] sm:$0xff] %vm951, %v1026
        %1036 = vst.msk [vmem:[#allocation5 + $0x50] sm:$0xf] %vm955, %v1028
        %v1037 = vld [vmem:[#allocation4 + $0x12] sm:$0xff]
        %v1038 = vld [vmem:[#allocation4 + $0x1a] sm:$0xff]
        %v1039 = vld [vmem:[#allocation4 + $0x22] sm:$0xff]
        %v1040 = vld [vmem:[#allocation4 + $0x2a] sm:$0xf]
        %1041 = vst.msk [vmem:[#allocation5 + $0x10] sm:$0xff] %vm859, %v1037
        %1042 = vst.msk [vmem:[#allocation5 + $0x28] sm:$0xff] %vm859, %v1038
        %1043 = vst.msk [vmem:[#allocation5 + $0x40] sm:$0xff] %vm859, %v1039
        %1044 = vst.msk [vmem:[#allocation5 + $0x58] sm:$0xf] %vm866, %v1040
        %v1045 = vld [vmem:[#allocation5] sm:$0xff]
        %v1046 = vld [vmem:[#allocation5 + $0x8] sm:$0xff]
        %v1047 = vld [vmem:[#allocation5 + $0x10] sm:$0xff]
        %v1048 = vld [vmem:[#allocation5 + $0x18] sm:$0xff]
        %v1049 = vld [vmem:[#allocation5 + $0x20] sm:$0xff]
        %v1050 = vld [vmem:[#allocation5 + $0x28] sm:$0xff]
        %v1051 = vld [vmem:[#allocation5 + $0x30] sm:$0xff]
        %v1052 = vld [vmem:[#allocation5 + $0x38] sm:$0xff]
        %v1053 = vld [vmem:[#allocation5 + $0x40] sm:$0xff]
        %v1054 = vld [vmem:[#allocation5 + $0x48] sm:$0xf]
        %v1055 = vld [vmem:[#allocation5 + $0x50] sm:$0xf]
        %v1056 = vld [vmem:[#allocation5 + $0x58] sm:$0xf]
        %v1057 = vpack.c.bf16 %v1048, %v1045
        %v1058 = vpack.c.bf16 %v1049, %v1046
        %v1059 = vpack.c.bf16 %v1050, %v1047
        %v1060 = vpack.c.bf16 %v1054, %v1051
        %v1061 = vpack.c.bf16 %v1055, %v1052
        %v1062 = vpack.c.bf16 %v1056, %v1053
        %v1063 = vld [vmem:[%s5] sm:$0xf]
        %v1064 = vld [vmem:[%s5 + $0x4] sm:$0xf]
        %v1065 = vld [vmem:[%s5 + $0x8] sm:$0xf]
        %v1066 = vld [vmem:[%s5 + $0xc] sm:$0xf]
        %v1067 = vld [vmem:[%s5 + $0x10] sm:$0xf]
        %v1068 = vld [vmem:[%s5 + $0x14] sm:$0xf]
        %v1069 = vld [vmem:[%s5 + $0x18] sm:$0xf]
        %v1070 = vld [vmem:[%s5 + $0x1c] sm:$0xf]
        %v1071 = vld [vmem:[%s5 + $0x20] sm:$0xf]
        %v1072 = vld [vmem:[%s5 + $0x24] sm:$0xf]
        %v1073 = vld [vmem:[%s5 + $0x28] sm:$0xf]
        %v1074 = vld [vmem:[%s5 + $0x2c] sm:$0xf]
        %v1075 = vld [vmem:[%s5 + $0x30] sm:$0xf]
        %v1076 = vld [vmem:[%s5 + $0x34] sm:$0xf]
        %v1077 = vld [vmem:[%s5 + $0x38] sm:$0xf]
        %v1078 = vld [vmem:[%s5 + $0x3c] sm:$0xf]
        %v1079 = vld [vmem:[%s5 + $0x40] sm:$0xf]
        %v1080 = vld [vmem:[%s5 + $0x44] sm:$0xf]
        %v1081 = vld [vmem:[%s5 + $0x48] sm:$0xf]
        %v1082 = vld [vmem:[%s5 + $0x4c] sm:$0xf]
        %v1083 = vld [vmem:[%s5 + $0x50] sm:$0xf]
        %v1084 = vld [vmem:[%s5 + $0x54] sm:$0xf]
        %v1085 = vld [vmem:[%s5 + $0x58] sm:$0xf]
        %v1086 = vld [vmem:[%s5 + $0x5c] sm:$0xf]
        %v1087 = vld [vmem:[%s5 + $0x60] sm:$0xf]
        %v1088 = vld [vmem:[%s5 + $0x64] sm:$0xf]
        %v1089 = vld [vmem:[%s5 + $0x68] sm:$0xf]
        %v1090 = vld [vmem:[%s5 + $0x6c] sm:$0xf]
        %v1091 = vld [vmem:[%s5 + $0x70] sm:$0xf]
        %v1092 = vld [vmem:[%s5 + $0x74] sm:$0xf]
        %v1093 = vld [vmem:[%s5 + $0x78] sm:$0xf]
        %v1094 = vld [vmem:[%s5 + $0x7c] sm:$0xf]
        %v1095 = vld [vmem:[%s5 + $0x80] sm:$0xf]
        %v1096 = vld [vmem:[%s5 + $0x84] sm:$0xf]
        %v1097 = vld [vmem:[%s5 + $0x88] sm:$0xf]
        %v1098 = vld [vmem:[%s5 + $0x8c] sm:$0xf]
        %v1099 = vld [vmem:[%s6] sm:$0x1]
        %v1101 = vlaneseq
        %v1102 = vshrl.u32 %v1101, 7
        %v1103 = vsub.s32 0, %v1102
        %v1104 = vrot.slane %v1099, %v1103
        %v1142 = vunpack.c.l.b16 %v1063
        %v1143 = vunpack.c.l.b16 %v1064
        %v1144 = vunpack.c.l.b16 %v1065
        %v1145 = vunpack.c.l.b16 %v1066
        %v1146 = vunpack.c.l.b16 %v1067
        %v1147 = vunpack.c.l.b16 %v1068
        %v1148 = vunpack.c.l.b16 %v1069
        %v1149 = vunpack.c.l.b16 %v1070
        %v1150 = vunpack.c.l.b16 %v1071
        %v1151 = vunpack.c.l.b16 %v1072
        %v1152 = vunpack.c.l.b16 %v1073
        %v1153 = vunpack.c.l.b16 %v1074
        %v1154 = vunpack.c.l.b16 %v1075
        %v1155 = vunpack.c.l.b16 %v1076
        %v1156 = vunpack.c.l.b16 %v1077
        %v1157 = vunpack.c.l.b16 %v1078
        %v1158 = vunpack.c.l.b16 %v1079
        %v1159 = vunpack.c.l.b16 %v1080
        %v1160 = vunpack.c.l.b16 %v1081
        %v1161 = vunpack.c.l.b16 %v1082
        %v1162 = vunpack.c.l.b16 %v1083
        %v1163 = vunpack.c.l.b16 %v1084
        %v1164 = vunpack.c.l.b16 %v1085
        %v1165 = vunpack.c.l.b16 %v1086
        %v1166 = vunpack.c.l.b16 %v1087
        %v1167 = vunpack.c.l.b16 %v1088
        %v1168 = vunpack.c.l.b16 %v1089
        %v1169 = vunpack.c.l.b16 %v1090
        %v1170 = vunpack.c.l.b16 %v1091
        %v1171 = vunpack.c.l.b16 %v1092
        %v1172 = vunpack.c.l.b16 %v1093
        %v1173 = vunpack.c.l.b16 %v1094
        %v1174 = vunpack.c.l.b16 %v1095
        %v1175 = vunpack.c.l.b16 %v1096
        %v1176 = vunpack.c.l.b16 %v1097
        %v1177 = vunpack.c.l.b16 %v1098
        %v1178 = vpack.c.b16 %v1143, %v1142
        %v1179 = vpack.c.b16 %v1145, %v1144
        %v1180 = vpack.c.b16 %v1147, %v1146
        %v1181 = vpack.c.b16 %v1149, %v1148
        %v1182 = vpack.c.b16 %v1151, %v1150
        %v1183 = vpack.c.b16 %v1153, %v1152
        %v1184 = vpack.c.b16 %v1155, %v1154
        %v1185 = vpack.c.b16 %v1157, %v1156
        %v1186 = vpack.c.b16 %v1159, %v1158
        %v1187 = vpack.c.b16 %v1161, %v1160
        %v1188 = vpack.c.b16 %v1163, %v1162
        %v1189 = vpack.c.b16 %v1165, %v1164
        %v1190 = vpack.c.b16 %v1167, %v1166
        %v1191 = vpack.c.b16 %v1169, %v1168
        %v1192 = vpack.c.b16 %v1171, %v1170
        %v1193 = vpack.c.b16 %v1173, %v1172
        %v1194 = vpack.c.b16 %v1175, %v1174
        %v1195 = vpack.c.b16 %v1177, %v1176
        %v1215 = vsel %vm859, %v1059, 0
        %v1218 = vsel %vm859, %v1062, 0
        %1220 = vmatprep.subr.bf16.mxu0 0
        %1221 = vmatpush1.bf16.msra.mxu0 %v1178
        %1222 = vmatprep.subr.bf16.mxu0 0
        %1223 = vmatpush1.bf16.msra.mxu0 %v1179
        %1224 = vmatprep.subr.bf16.mxu0 0
        %1225 = vmatpush1.bf16.msra.mxu0 %v1180
        %1226 = vmatprep.subr.bf16.mxu0 0
        %1227 = vmatpush1.bf16.msra.mxu0 %v1181
        %1228 = vmatprep.subr.bf16.mxu0 0
        %1229 = vmatpush1.bf16.msra.mxu0 %v1182
        %1230 = vmatprep.subr.bf16.mxu0 0
        %1231 = vmatpush1.bf16.msra.mxu0 %v1183
        %1232 = vmatprep.subr.bf16.mxu0 0
        %1233 = vmatpush1.bf16.msra.mxu0 %v1184
        %1234 = vmatprep.subr.bf16.mxu0 0
        %1235 = vmatpush1.bf16.msra.mxu0 %v1185
        %1236 = vmatprep.subr.bf16.mxu0 0
        %1237 = vmatpush1.bf16.msra.mxu0 %v1186
        %1238 = vmatprep.subr.bf16.mxu0 0
        %1239 = vmatpush1.bf16.msra.mxu0 %v1187
        %1240 = vmatprep.subr.bf16.mxu0 0
        %1241 = vmatpush1.bf16.msra.mxu0 %v1188
        %1242 = vmatprep.subr.bf16.mxu0 0
        %1243 = vmatpush1.bf16.msra.mxu0 %v1189
        %1244 = vmatprep.subr.bf16.mxu0 0
        %1245 = vmatpush1.bf16.msra.mxu0 %v1190
        %1246 = vmatprep.subr.bf16.mxu0 0
        %1247 = vmatpush1.bf16.msra.mxu0 %v1191
        %1248 = vmatprep.subr.bf16.mxu0 0
        %1249 = vmatpush1.bf16.msra.mxu0 %v1192
        %1250 = vmatprep.subr.bf16.mxu0 0
        %1251 = vmatpush1.bf16.msra.mxu0 %v1193
        %1252 = vmatprep.mubr.bf16.mxu0 %v1058
        %1253 = vmatmul.mubr.bf16.gmra.mrb[0].mxu0 %v1057
        %v1254 = vpop.f32.mrb[0].mxu0
        %v1255 = vadd.f32 %v1104, %v1254
        %v1256 = vpop.f32.mrb[0].mxu0
        %v1257 = vpop.f32.mrb[0].mxu0
        %v1258 = vadd.f32 %v1104, %v1257
        %v1259 = vpop.f32.mrb[0].mxu0
        %1260 = vmatprep.mubr.bf16.mxu0 %v1061
        %1261 = vmatmul.mubr.bf16.gmra.mrb[0].mxu0 %v1060
        %v1262 = vpop.f32.mrb[0].mxu0
        %v1263 = vadd.f32 %v1104, %v1262
        %v1264 = vpop.f32.mrb[0].mxu0
        %v1265 = vpop.f32.mrb[0].mxu0
        %v1266 = vadd.f32 %v1104, %v1265
        %v1267 = vpop.f32.mrb[0].mxu0
        %1268 = vdwg.mxu0
        %1269 = vmatprep.subr.bf16.mxu0 0
        %1270 = vmatpush1.bf16.msra.mxu0 %v1194
        %1271 = vmatprep.subr.bf16.mxu0 0
        %1272 = vmatpush1.bf16.msra.mxu0 %v1195
        %1273 = vmatprep.subr.bf16.mxu0 0
        %1274 = vmatpush1.bf16.msra.mxu0 0
        %1275 = vmatprep.subr.bf16.mxu0 0
        %1276 = vmatpush1.bf16.msra.mxu0 0
        %1277 = vmatprep.subr.bf16.mxu0 0
        %1278 = vmatpush1.bf16.msra.mxu0 0
        %1279 = vmatprep.subr.bf16.mxu0 0
        %1280 = vmatpush1.bf16.msra.mxu0 0
        %1281 = vmatprep.subr.bf16.mxu0 0
        %1282 = vmatpush1.bf16.msra.mxu0 0
        %1283 = vmatprep.subr.bf16.mxu0 0
        %1284 = vmatpush1.bf16.msra.mxu0 0
        %1285 = vmatprep.subr.bf16.mxu0 0
        %1286 = vmatpush1.bf16.msra.mxu0 0
        %1287 = vmatprep.subr.bf16.mxu0 0
        %1288 = vmatpush1.bf16.msra.mxu0 0
        %1289 = vmatprep.subr.bf16.mxu0 0
        %1290 = vmatpush1.bf16.msra.mxu0 0
        %1291 = vmatprep.subr.bf16.mxu0 0
        %1292 = vmatpush1.bf16.msra.mxu0 0
        %1293 = vmatprep.subr.bf16.mxu0 0
        %1294 = vmatpush1.bf16.msra.mxu0 0
        %1295 = vmatprep.subr.bf16.mxu0 0
        %1296 = vmatpush1.bf16.msra.mxu0 0
        %1297 = vmatprep.subr.bf16.mxu0 0
        %1298 = vmatpush1.bf16.msra.mxu0 0
        %1299 = vmatprep.subr.bf16.mxu0 0
        %1300 = vmatpush1.bf16.msra.mxu0 0
        %1301 = vmatprep.mubr.bf16.mxu0 0
        %1302 = vmatmul.mubr.bf16.gmra.mrb[0].mxu0 %v1215
        %v1303 = vpop.f32.mrb[0].mxu0
        %v1304 = vadd.f32 %v1255, %v1303
        %v1305 = vpop.f32.mrb[0].mxu0
        %v1306 = vpop.f32.mrb[0].mxu0
        %v1307 = vadd.f32 %v1258, %v1306
        %v1308 = vpop.f32.mrb[0].mxu0
        %1309 = vmatprep.mubr.bf16.mxu0 0
        %1310 = vmatmul.mubr.bf16.gmra.mrb[0].mxu0 %v1218
        %v1311 = vpop.f32.mrb[0].mxu0
        %v1312 = vadd.f32 %v1263, %v1311
        %v1313 = vpop.f32.mrb[0].mxu0
        %v1314 = vpop.f32.mrb[0].mxu0
        %v1315 = vadd.f32 %v1266, %v1314
        %v1316 = vpop.f32.mrb[0].mxu0
        %1317 = vdwg.mxu0
        %v1318 = vmax.f32 %v1304, 0.0
        %v1319 = vmax.f32 %v1307, 0.0
        %v1320 = vmax.f32 %v1312, 0.0
        %v1321 = vmax.f32 %v1315, 0.0
        %1322 = vst.msk [vmem:[#allocation4 + $0x9] sm:$0xf] %vm866, %v1318
        %1323 = vst.msk [vmem:[#allocation4 + $0x11] sm:$0xf] %vm866, %v1319
        %1324 = vst.msk [vmem:[#allocation4 + $0x19] sm:$0xf] %vm866, %v1320
        %1325 = vst.msk [vmem:[#allocation4 + $0x21] sm:$0xf] %vm866, %v1321
        %v1326 = vld [vmem:[#allocation4] sm:$0xff]
        %v1327 = vld [vmem:[#allocation4 + $0x8] sm:$0xff]
        %v1328 = vld [vmem:[#allocation4 + $0x10] sm:$0xff]
        %v1329 = vld [vmem:[#allocation4 + $0x18] sm:$0xf]
        %1330 = vst.msk [vmem:[#allocation5] sm:$0xff] %vm859, %v1326
        %1331 = vst.msk [vmem:[#allocation5 + $0x18] sm:$0xff] %vm859, %v1327
        %1332 = vst.msk [vmem:[#allocation5 + $0x30] sm:$0xff] %vm859, %v1328
        %1333 = vst.msk [vmem:[#allocation5 + $0x48] sm:$0xf] %vm866, %v1329
        %v1334 = vld [vmem:[#allocation4 + $0x1] sm:$0xff]
        %v1335 = vld [vmem:[#allocation4 + $0x9] sm:$0xff]
        %v1336 = vld [vmem:[#allocation4 + $0x11] sm:$0xff]
        %v1337 = vld [vmem:[#allocation4 + $0x19] sm:$0xf]
        %1342 = vrot.lane.b32.xlu0 %v1334, 32
        %v1343 = vpop.permute.xlu0 %1342
        %1344 = vrot.lane.b32.xlu0 %v1335, 32
        %v1345 = vpop.permute.xlu0 %1344
        %1346 = vrot.lane.b32.xlu0 %v1336, 32
        %v1347 = vpop.permute.xlu0 %1346
        %1348 = vrot.lane.b32.xlu0 %v1337, 32
        %v1349 = vpop.permute.xlu0 %1348
        %1354 = vst.msk [vmem:[#allocation5] sm:$0xff] %vm899, %v1343
        %1355 = vst.msk [vmem:[#allocation5 + $0x18] sm:$0xff] %vm899, %v1345
        %1356 = vst.msk [vmem:[#allocation5 + $0x30] sm:$0xff] %vm899, %v1347
        %1357 = vst.msk [vmem:[#allocation5 + $0x48] sm:$0xf] %vm903, %v1349
        %v1358 = vld [vmem:[#allocation4 + $0x2] sm:$0xff]
        %v1359 = vld [vmem:[#allocation4 + $0xa] sm:$0xff]
        %v1360 = vld [vmem:[#allocation4 + $0x12] sm:$0xff]
        %v1361 = vld [vmem:[#allocation4 + $0x1a] sm:$0xf]
        %1366 = vrot.lane.b32.xlu0 %v1358, 64
        %v1367 = vpop.permute.xlu0 %1366
        %1368 = vrot.lane.b32.xlu0 %v1359, 64
        %v1369 = vpop.permute.xlu0 %1368
        %1370 = vrot.lane.b32.xlu0 %v1360, 64
        %v1371 = vpop.permute.xlu0 %1370
        %1372 = vrot.lane.b32.xlu0 %v1361, 64
        %v1373 = vpop.permute.xlu0 %1372
        %1378 = vst.msk [vmem:[#allocation5] sm:$0xff] %vm925, %v1367
        %1379 = vst.msk [vmem:[#allocation5 + $0x18] sm:$0xff] %vm925, %v1369
        %1380 = vst.msk [vmem:[#allocation5 + $0x30] sm:$0xff] %vm925, %v1371
        %1381 = vst.msk [vmem:[#allocation5 + $0x48] sm:$0xf] %vm929, %v1373
        %v1382 = vld [vmem:[#allocation4 + $0x8] sm:$0xff]
        %v1383 = vld [vmem:[#allocation4 + $0x10] sm:$0xff]
        %v1384 = vld [vmem:[#allocation4 + $0x18] sm:$0xff]
        %v1385 = vld [vmem:[#allocation4 + $0x20] sm:$0xf]
        %1390 = vrot.lane.b32.xlu0 %v1382, 96
        %v1391 = vpop.permute.xlu0 %1390
        %1392 = vrot.lane.b32.xlu0 %v1383, 96
        %v1393 = vpop.permute.xlu0 %1392
        %1394 = vrot.lane.b32.xlu0 %v1384, 96
        %v1395 = vpop.permute.xlu0 %1394
        %1396 = vrot.lane.b32.xlu0 %v1385, 96
        %v1397 = vpop.permute.xlu0 %1396
        %1402 = vst.msk [vmem:[#allocation5] sm:$0xff] %vm951, %v1391
        %1403 = vst.msk [vmem:[#allocation5 + $0x18] sm:$0xff] %vm951, %v1393
        %1404 = vst.msk [vmem:[#allocation5 + $0x30] sm:$0xff] %vm951, %v1395
        %1405 = vst.msk [vmem:[#allocation5 + $0x48] sm:$0xf] %vm955, %v1397
        %v1406 = vld [vmem:[#allocation4 + $0x9] sm:$0xff]
        %v1407 = vld [vmem:[#allocation4 + $0x11] sm:$0xff]
        %v1408 = vld [vmem:[#allocation4 + $0x19] sm:$0xff]
        %v1409 = vld [vmem:[#allocation4 + $0x21] sm:$0xf]
        %1410 = vst.msk [vmem:[#allocation5 + $0x8] sm:$0xff] %vm859, %v1406
        %1411 = vst.msk [vmem:[#allocation5 + $0x20] sm:$0xff] %vm859, %v1407
        %1412 = vst.msk [vmem:[#allocation5 + $0x38] sm:$0xff] %vm859, %v1408
        %1413 = vst.msk [vmem:[#allocation5 + $0x50] sm:$0xf] %vm866, %v1409
        %v1414 = vld [vmem:[#allocation4 + $0xa] sm:$0xff]
        %v1415 = vld [vmem:[#allocation4 + $0x12] sm:$0xff]
        %v1416 = vld [vmem:[#allocation4 + $0x1a] sm:$0xff]
        %v1417 = vld [vmem:[#allocation4 + $0x22] sm:$0xf]
        %1422 = vrot.lane.b32.xlu0 %v1414, 32
        %v1423 = vpop.permute.xlu0 %1422
        %1424 = vrot.lane.b32.xlu0 %v1415, 32
        %v1425 = vpop.permute.xlu0 %1424
        %1426 = vrot.lane.b32.xlu0 %v1416, 32
        %v1427 = vpop.permute.xlu0 %1426
        %1428 = vrot.lane.b32.xlu0 %v1417, 32
        %v1429 = vpop.permute.xlu0 %1428
        %1434 = vst.msk [vmem:[#allocation5 + $0x8] sm:$0xff] %vm899, %v1423
        %1435 = vst.msk [vmem:[#allocation5 + $0x20] sm:$0xff] %vm899, %v1425
        %1436 = vst.msk [vmem:[#allocation5 + $0x38] sm:$0xff] %vm899, %v1427
        %1437 = vst.msk [vmem:[#allocation5 + $0x50] sm:$0xf] %vm903, %v1429
        %v1438 = vld [vmem:[#allocation4 + $0x10] sm:$0xff]
        %v1439 = vld [vmem:[#allocation4 + $0x18] sm:$0xff]
        %v1440 = vld [vmem:[#allocation4 + $0x20] sm:$0xff]
        %v1441 = vld [vmem:[#allocation4 + $0x28] sm:$0xf]
        %1446 = vrot.lane.b32.xlu0 %v1438, 64
        %v1447 = vpop.permute.xlu0 %1446
        %1448 = vrot.lane.b32.xlu0 %v1439, 64
        %v1449 = vpop.permute.xlu0 %1448
        %1450 = vrot.lane.b32.xlu0 %v1440, 64
        %v1451 = vpop.permute.xlu0 %1450
        %1452 = vrot.lane.b32.xlu0 %v1441, 64
        %v1453 = vpop.permute.xlu0 %1452
        %1458 = vst.msk [vmem:[#allocation5 + $0x8] sm:$0xff] %vm925, %v1447
        %1459 = vst.msk [vmem:[#allocation5 + $0x20] sm:$0xff] %vm925, %v1449
        %1460 = vst.msk [vmem:[#allocation5 + $0x38] sm:$0xff] %vm925, %v1451
        %1461 = vst.msk [vmem:[#allocation5 + $0x50] sm:$0xf] %vm929, %v1453
        %v1462 = vld [vmem:[#allocation4 + $0x11] sm:$0xff]
        %v1463 = vld [vmem:[#allocation4 + $0x19] sm:$0xff]
        %v1464 = vld [vmem:[#allocation4 + $0x21] sm:$0xff]
        %v1465 = vld [vmem:[#allocation4 + $0x29] sm:$0xf]
        %1470 = vrot.lane.b32.xlu0 %v1462, 96
        %v1471 = vpop.permute.xlu0 %1470
        %1472 = vrot.lane.b32.xlu0 %v1463, 96
        %v1473 = vpop.permute.xlu0 %1472
        %1474 = vrot.lane.b32.xlu0 %v1464, 96
        %v1475 = vpop.permute.xlu0 %1474
        %1476 = vrot.lane.b32.xlu0 %v1465, 96
        %v1477 = vpop.permute.xlu0 %1476
        %1482 = vst.msk [vmem:[#allocation5 + $0x8] sm:$0xff] %vm951, %v1471
        %1483 = vst.msk [vmem:[#allocation5 + $0x20] sm:$0xff] %vm951, %v1473
        %1484 = vst.msk [vmem:[#allocation5 + $0x38] sm:$0xff] %vm951, %v1475
        %1485 = vst.msk [vmem:[#allocation5 + $0x50] sm:$0xf] %vm955, %v1477
        %v1486 = vld [vmem:[#allocation4 + $0x12] sm:$0xff]
        %v1487 = vld [vmem:[#allocation4 + $0x1a] sm:$0xff]
        %v1488 = vld [vmem:[#allocation4 + $0x22] sm:$0xff]
        %v1489 = vld [vmem:[#allocation4 + $0x2a] sm:$0xf]
        %1490 = vst.msk [vmem:[#allocation5 + $0x10] sm:$0xff] %vm859, %v1486
        %1491 = vst.msk [vmem:[#allocation5 + $0x28] sm:$0xff] %vm859, %v1487
        %1492 = vst.msk [vmem:[#allocation5 + $0x40] sm:$0xff] %vm859, %v1488
        %1493 = vst.msk [vmem:[#allocation5 + $0x58] sm:$0xf] %vm866, %v1489
        %v1494 = vld [vmem:[#allocation5] sm:$0xff]
        %v1495 = vld [vmem:[#allocation5 + $0x8] sm:$0xff]
        %v1496 = vld [vmem:[#allocation5 + $0x10] sm:$0xff]
        %v1497 = vld [vmem:[#allocation5 + $0x18] sm:$0xff]
        %v1498 = vld [vmem:[#allocation5 + $0x20] sm:$0xff]
        %v1499 = vld [vmem:[#allocation5 + $0x28] sm:$0xff]
        %v1500 = vld [vmem:[#allocation5 + $0x30] sm:$0xff]
        %v1501 = vld [vmem:[#allocation5 + $0x38] sm:$0xff]
        %v1502 = vld [vmem:[#allocation5 + $0x40] sm:$0xff]
        %v1503 = vld [vmem:[#allocation5 + $0x48] sm:$0xf]
        %v1504 = vld [vmem:[#allocation5 + $0x50] sm:$0xf]
        %v1505 = vld [vmem:[#allocation5 + $0x58] sm:$0xf]
        %v1506 = vpack.c.bf16 %v1497, %v1494
        %v1507 = vpack.c.bf16 %v1498, %v1495
        %v1508 = vpack.c.bf16 %v1499, %v1496
        %v1509 = vpack.c.bf16 %v1503, %v1500
        %v1510 = vpack.c.bf16 %v1504, %v1501
        %v1511 = vpack.c.bf16 %v1505, %v1502
        %v1512 = vld [vmem:[%s7] sm:$0xf]
        %v1513 = vld [vmem:[%s7 + $0x4] sm:$0xf]
        %v1514 = vld [vmem:[%s7 + $0x8] sm:$0xf]
        %v1515 = vld [vmem:[%s7 + $0xc] sm:$0xf]
        %v1516 = vld [vmem:[%s7 + $0x10] sm:$0xf]
        %v1517 = vld [vmem:[%s7 + $0x14] sm:$0xf]
        %v1518 = vld [vmem:[%s7 + $0x18] sm:$0xf]
        %v1519 = vld [vmem:[%s7 + $0x1c] sm:$0xf]
        %v1520 = vld [vmem:[%s7 + $0x20] sm:$0xf]
        %v1521 = vld [vmem:[%s7 + $0x24] sm:$0xf]
        %v1522 = vld [vmem:[%s7 + $0x28] sm:$0xf]
        %v1523 = vld [vmem:[%s7 + $0x2c] sm:$0xf]
        %v1524 = vld [vmem:[%s7 + $0x30] sm:$0xf]
        %v1525 = vld [vmem:[%s7 + $0x34] sm:$0xf]
        %v1526 = vld [vmem:[%s7 + $0x38] sm:$0xf]
        %v1527 = vld [vmem:[%s7 + $0x3c] sm:$0xf]
        %v1528 = vld [vmem:[%s7 + $0x40] sm:$0xf]
        %v1529 = vld [vmem:[%s7 + $0x44] sm:$0xf]
        %v1530 = vld [vmem:[%s7 + $0x48] sm:$0xf]
        %v1531 = vld [vmem:[%s7 + $0x4c] sm:$0xf]
        %v1532 = vld [vmem:[%s7 + $0x50] sm:$0xf]
        %v1533 = vld [vmem:[%s7 + $0x54] sm:$0xf]
        %v1534 = vld [vmem:[%s7 + $0x58] sm:$0xf]
        %v1535 = vld [vmem:[%s7 + $0x5c] sm:$0xf]
        %v1536 = vld [vmem:[%s7 + $0x60] sm:$0xf]
        %v1537 = vld [vmem:[%s7 + $0x64] sm:$0xf]
        %v1538 = vld [vmem:[%s7 + $0x68] sm:$0xf]
        %v1539 = vld [vmem:[%s7 + $0x6c] sm:$0xf]
        %v1540 = vld [vmem:[%s7 + $0x70] sm:$0xf]
        %v1541 = vld [vmem:[%s7 + $0x74] sm:$0xf]
        %v1542 = vld [vmem:[%s7 + $0x78] sm:$0xf]
        %v1543 = vld [vmem:[%s7 + $0x7c] sm:$0xf]
        %v1544 = vld [vmem:[%s7 + $0x80] sm:$0xf]
        %v1545 = vld [vmem:[%s7 + $0x84] sm:$0xf]
        %v1546 = vld [vmem:[%s7 + $0x88] sm:$0xf]
        %v1547 = vld [vmem:[%s7 + $0x8c] sm:$0xf]
        %v1584 = vunpack.c.l.b16 %v1512
        %v1585 = vunpack.c.l.b16 %v1513
        %v1586 = vunpack.c.l.b16 %v1514
        %v1587 = vunpack.c.l.b16 %v1515
        %v1588 = vunpack.c.l.b16 %v1516
        %v1589 = vunpack.c.l.b16 %v1517
        %v1590 = vunpack.c.l.b16 %v1518
        %v1591 = vunpack.c.l.b16 %v1519
        %v1592 = vunpack.c.l.b16 %v1520
        %v1593 = vunpack.c.l.b16 %v1521
        %v1594 = vunpack.c.l.b16 %v1522
        %v1595 = vunpack.c.l.b16 %v1523
        %v1596 = vunpack.c.l.b16 %v1524
        %v1597 = vunpack.c.l.b16 %v1525
        %v1598 = vunpack.c.l.b16 %v1526
        %v1599 = vunpack.c.l.b16 %v1527
        %v1600 = vunpack.c.l.b16 %v1528
        %v1601 = vunpack.c.l.b16 %v1529
        %v1602 = vunpack.c.l.b16 %v1530
        %v1603 = vunpack.c.l.b16 %v1531
        %v1604 = vunpack.c.l.b16 %v1532
        %v1605 = vunpack.c.l.b16 %v1533
        %v1606 = vunpack.c.l.b16 %v1534
        %v1607 = vunpack.c.l.b16 %v1535
        %v1608 = vunpack.c.l.b16 %v1536
        %v1609 = vunpack.c.l.b16 %v1537
        %v1610 = vunpack.c.l.b16 %v1538
        %v1611 = vunpack.c.l.b16 %v1539
        %v1612 = vunpack.c.l.b16 %v1540
        %v1613 = vunpack.c.l.b16 %v1541
        %v1614 = vunpack.c.l.b16 %v1542
        %v1615 = vunpack.c.l.b16 %v1543
        %v1616 = vunpack.c.l.b16 %v1544
        %v1617 = vunpack.c.l.b16 %v1545
        %v1618 = vunpack.c.l.b16 %v1546
        %v1619 = vunpack.c.l.b16 %v1547
        %v1620 = vpack.c.b16 %v1585, %v1584
        %v1621 = vpack.c.b16 %v1587, %v1586
        %v1622 = vpack.c.b16 %v1589, %v1588
        %v1623 = vpack.c.b16 %v1591, %v1590
        %v1624 = vpack.c.b16 %v1593, %v1592
        %v1625 = vpack.c.b16 %v1595, %v1594
        %v1626 = vpack.c.b16 %v1597, %v1596
        %v1627 = vpack.c.b16 %v1599, %v1598
        %v1628 = vpack.c.b16 %v1601, %v1600
        %v1629 = vpack.c.b16 %v1603, %v1602
        %v1630 = vpack.c.b16 %v1605, %v1604
        %v1631 = vpack.c.b16 %v1607, %v1606
        %v1632 = vpack.c.b16 %v1609, %v1608
        %v1633 = vpack.c.b16 %v1611, %v1610
        %v1634 = vpack.c.b16 %v1613, %v1612
        %v1635 = vpack.c.b16 %v1615, %v1614
        %v1636 = vpack.c.b16 %v1617, %v1616
        %v1637 = vpack.c.b16 %v1619, %v1618
        %v1657 = vsel %vm859, %v1508, 0
        %v1660 = vsel %vm859, %v1511, 0
        %1662 = vmatprep.subr.bf16.mxu0 0
        %1663 = vmatpush1.bf16.msra.mxu0 %v1620
        %1664 = vmatprep.subr.bf16.mxu0 0
        %1665 = vmatpush1.bf16.msra.mxu0 %v1621
        %1666 = vmatprep.subr.bf16.mxu0 0
        %1667 = vmatpush1.bf16.msra.mxu0 %v1622
        %1668 = vmatprep.subr.bf16.mxu0 0
        %1669 = vmatpush1.bf16.msra.mxu0 %v1623
        %1670 = vmatprep.subr.bf16.mxu0 0
        %1671 = vmatpush1.bf16.msra.mxu0 %v1624
        %1672 = vmatprep.subr.bf16.mxu0 0
        %1673 = vmatpush1.bf16.msra.mxu0 %v1625
        %1674 = vmatprep.subr.bf16.mxu0 0
        %1675 = vmatpush1.bf16.msra.mxu0 %v1626
        %1676 = vmatprep.subr.bf16.mxu0 0
        %1677 = vmatpush1.bf16.msra.mxu0 %v1627
        %1678 = vmatprep.subr.bf16.mxu0 0
        %1679 = vmatpush1.bf16.msra.mxu0 %v1628
        %1680 = vmatprep.subr.bf16.mxu0 0
        %1681 = vmatpush1.bf16.msra.mxu0 %v1629
        %1682 = vmatprep.subr.bf16.mxu0 0
        %1683 = vmatpush1.bf16.msra.mxu0 %v1630
        %1684 = vmatprep.subr.bf16.mxu0 0
        %1685 = vmatpush1.bf16.msra.mxu0 %v1631
        %1686 = vmatprep.subr.bf16.mxu0 0
        %1687 = vmatpush1.bf16.msra.mxu0 %v1632
        %1688 = vmatprep.subr.bf16.mxu0 0
        %1689 = vmatpush1.bf16.msra.mxu0 %v1633
        %1690 = vmatprep.subr.bf16.mxu0 0
        %1691 = vmatpush1.bf16.msra.mxu0 %v1634
        %1692 = vmatprep.subr.bf16.mxu0 0
        %1693 = vmatpush1.bf16.msra.mxu0 %v1635
        %1694 = vmatprep.mubr.bf16.mxu0 %v1507
        %1695 = vmatmul.mubr.bf16.gmra.mrb[0].mxu0 %v1506
        %v1696 = vpop.f32.mrb[0].mxu0
        %v1697 = vadd.f32 0.0, %v1696
        %v1698 = vpop.f32.mrb[0].mxu0
        %v1699 = vpop.f32.mrb[0].mxu0
        %v1700 = vadd.f32 0.0, %v1699
        %v1701 = vpop.f32.mrb[0].mxu0
        %1702 = vmatprep.mubr.bf16.mxu0 %v1510
        %1703 = vmatmul.mubr.bf16.gmra.mrb[0].mxu0 %v1509
        %v1704 = vpop.f32.mrb[0].mxu0
        %v1705 = vadd.f32 0.0, %v1704
        %v1706 = vpop.f32.mrb[0].mxu0
        %v1707 = vpop.f32.mrb[0].mxu0
        %v1708 = vadd.f32 0.0, %v1707
        %v1709 = vpop.f32.mrb[0].mxu0
        %1710 = vdwg.mxu0
        %1711 = vmatprep.subr.bf16.mxu0 0
        %1712 = vmatpush1.bf16.msra.mxu0 %v1636
        %1713 = vmatprep.subr.bf16.mxu0 0
        %1714 = vmatpush1.bf16.msra.mxu0 %v1637
        %1715 = vmatprep.subr.bf16.mxu0 0
        %1716 = vmatpush1.bf16.msra.mxu0 0
        %1717 = vmatprep.subr.bf16.mxu0 0
        %1718 = vmatpush1.bf16.msra.mxu0 0
        %1719 = vmatprep.subr.bf16.mxu0 0
        %1720 = vmatpush1.bf16.msra.mxu0 0
        %1721 = vmatprep.subr.bf16.mxu0 0
        %1722 = vmatpush1.bf16.msra.mxu0 0
        %1723 = vmatprep.subr.bf16.mxu0 0
        %1724 = vmatpush1.bf16.msra.mxu0 0
        %1725 = vmatprep.subr.bf16.mxu0 0
        %1726 = vmatpush1.bf16.msra.mxu0 0
        %1727 = vmatprep.subr.bf16.mxu0 0
        %1728 = vmatpush1.bf16.msra.mxu0 0
        %1729 = vmatprep.subr.bf16.mxu0 0
        %1730 = vmatpush1.bf16.msra.mxu0 0
        %1731 = vmatprep.subr.bf16.mxu0 0
        %1732 = vmatpush1.bf16.msra.mxu0 0
        %1733 = vmatprep.subr.bf16.mxu0 0
        %1734 = vmatpush1.bf16.msra.mxu0 0
        %1735 = vmatprep.subr.bf16.mxu0 0
        %1736 = vmatpush1.bf16.msra.mxu0 0
        %1737 = vmatprep.subr.bf16.mxu0 0
        %1738 = vmatpush1.bf16.msra.mxu0 0
        %1739 = vmatprep.subr.bf16.mxu0 0
        %1740 = vmatpush1.bf16.msra.mxu0 0
        %1741 = vmatprep.subr.bf16.mxu0 0
        %1742 = vmatpush1.bf16.msra.mxu0 0
        %1743 = vmatprep.mubr.bf16.mxu0 0
        %1744 = vmatmul.mubr.bf16.gmra.mrb[0].mxu0 %v1657
        %v1745 = vpop.f32.mrb[0].mxu0
        %v1746 = vadd.f32 %v1697, %v1745
        %v1747 = vpop.f32.mrb[0].mxu0
        %v1748 = vpop.f32.mrb[0].mxu0
        %v1749 = vadd.f32 %v1700, %v1748
        %v1750 = vpop.f32.mrb[0].mxu0
        %1751 = vmatprep.mubr.bf16.mxu0 0
        %1752 = vmatmul.mubr.bf16.gmra.mrb[0].mxu0 %v1660
        %v1753 = vpop.f32.mrb[0].mxu0
        %v1754 = vadd.f32 %v1705, %v1753
        %v1755 = vpop.f32.mrb[0].mxu0
        %v1756 = vpop.f32.mrb[0].mxu0
        %v1757 = vadd.f32 %v1708, %v1756
        %v1758 = vpop.f32.mrb[0].mxu0
        %1759 = vdwg.mxu0
        %v1760 = vmax.f32 %v1746, 0.0
        %v1761 = vmax.f32 %v1749, 0.0
        %v1762 = vmax.f32 %v1754, 0.0
        %v1763 = vmax.f32 %v1757, 0.0
        %v1764 = vpack.c.bf16 %v1761, %v1760
        %v1765 = vpack.c.bf16 %v1763, %v1762
        %v1766 = vld [vmem:[%s8] sm:$0xf]
        %vm1767 = vcmask 64512
        %v1769 = vsel %vm1767, %v1764, 0
        %v1772 = vsel %vm1767, %v1765, 0
        %vm1774 = vcmask 1043456
        %v1776 = vsel %vm1774, %v1766, 0
        %1778 = vmatprep.subr.bf16.mxu0 0
        %1779 = vmatpush1.bf16.msra.mxu0 %v1776
        %1780 = vmatprep.subr.bf16.mxu0 0
        %1781 = vmatpush1.bf16.msra.mxu0 0
        %1782 = vmatprep.subr.bf16.mxu0 0
        %1783 = vmatpush1.bf16.msra.mxu0 0
        %1784 = vmatprep.subr.bf16.mxu0 0
        %1785 = vmatpush1.bf16.msra.mxu0 0
        %1786 = vmatprep.subr.bf16.mxu0 0
        %1787 = vmatpush1.bf16.msra.mxu0 0
        %1788 = vmatprep.subr.bf16.mxu0 0
        %1789 = vmatpush1.bf16.msra.mxu0 0
        %1790 = vmatprep.subr.bf16.mxu0 0
        %1791 = vmatpush1.bf16.msra.mxu0 0
        %1792 = vmatprep.subr.bf16.mxu0 0
        %1793 = vmatpush1.bf16.msra.mxu0 0
        %1794 = vmatprep.subr.bf16.mxu0 0
        %1795 = vmatpush1.bf16.msra.mxu0 0
        %1796 = vmatprep.subr.bf16.mxu0 0
        %1797 = vmatpush1.bf16.msra.mxu0 0
        %1798 = vmatprep.subr.bf16.mxu0 0
        %1799 = vmatpush1.bf16.msra.mxu0 0
        %1800 = vmatprep.subr.bf16.mxu0 0
        %1801 = vmatpush1.bf16.msra.mxu0 0
        %1802 = vmatprep.subr.bf16.mxu0 0
        %1803 = vmatpush1.bf16.msra.mxu0 0
        %1804 = vmatprep.subr.bf16.mxu0 0
        %1805 = vmatpush1.bf16.msra.mxu0 0
        %1806 = vmatprep.subr.bf16.mxu0 0
        %1807 = vmatpush1.bf16.msra.mxu0 0
        %1808 = vmatprep.subr.bf16.mxu0 0
        %1809 = vmatpush1.bf16.msra.mxu0 0
        %1810 = vmatprep.mubr.bf16.mxu0 0
        %1811 = vmatmul.mubr.bf16.gmra.mrb[0].mxu0 %v1769
        %v1812 = vpop.f32.mrb[0].mxu0
        %v1813 = vadd.f32 0.0, %v1812
        %v1814 = vpop.f32.mrb[0].mxu0
        %v1815 = vpop.f32.mrb[0].mxu0
        %v1816 = vadd.f32 0.0, %v1815
        %v1817 = vpop.f32.mrb[0].mxu0
        %1818 = vmatprep.mubr.bf16.mxu0 0
        %1819 = vmatmul.mubr.bf16.gmra.mrb[0].mxu0 %v1772
        %v1820 = vpop.f32.mrb[0].mxu0
        %v1821 = vadd.f32 0.0, %v1820
        %v1822 = vpop.f32.mrb[0].mxu0
        %v1823 = vpop.f32.mrb[0].mxu0
        %v1824 = vadd.f32 0.0, %v1823
        %v1825 = vpop.f32.mrb[0].mxu0
        %1826 = vdwg.mxu0
        %v1827 = vadd.f32 %v1304, %v1813
        %v1828 = vadd.f32 %v1307, %v1816
        %v1829 = vadd.f32 %v1312, %v1821
        %v1830 = vadd.f32 %v1315, %v1824
        %v1831 = vmax.f32 %v1827, 0.0
        %v1832 = vmax.f32 %v1828, 0.0
        %v1833 = vmax.f32 %v1829, 0.0
        %v1834 = vmax.f32 %v1830, 0.0
        %1835 = vst.msk [vmem:[#allocation4 + $0x9] sm:$0xf] %vm866, %v1831
        %1836 = vst.msk [vmem:[#allocation4 + $0x11] sm:$0xf] %vm866, %v1832
        %1837 = vst.msk [vmem:[#allocation4 + $0x19] sm:$0xf] %vm866, %v1833
        %1838 = vst.msk [vmem:[#allocation4 + $0x21] sm:$0xf] %vm866, %v1834
        %v1839 = vld [vmem:[#allocation4] sm:$0xff]
        %v1840 = vld [vmem:[#allocation4 + $0x8] sm:$0xff]
        %v1841 = vld [vmem:[#allocation4 + $0x10] sm:$0xff]
        %v1842 = vld [vmem:[#allocation4 + $0x18] sm:$0xf]
        %1843 = vst.msk [vmem:[#allocation5] sm:$0xff] %vm859, %v1839
        %1844 = vst.msk [vmem:[#allocation5 + $0x18] sm:$0xff] %vm859, %v1840
        %1845 = vst.msk [vmem:[#allocation5 + $0x30] sm:$0xff] %vm859, %v1841
        %1846 = vst.msk [vmem:[#allocation5 + $0x48] sm:$0xf] %vm866, %v1842
        %v1847 = vld [vmem:[#allocation4 + $0x1] sm:$0xff]
        %v1848 = vld [vmem:[#allocation4 + $0x9] sm:$0xff]
        %v1849 = vld [vmem:[#allocation4 + $0x11] sm:$0xff]
        %v1850 = vld [vmem:[#allocation4 + $0x19] sm:$0xf]
        %1855 = vrot.lane.b32.xlu0 %v1847, 32
        %v1856 = vpop.permute.xlu0 %1855
        %1857 = vrot.lane.b32.xlu0 %v1848, 32
        %v1858 = vpop.permute.xlu0 %1857
        %1859 = vrot.lane.b32.xlu0 %v1849, 32
        %v1860 = vpop.permute.xlu0 %1859
        %1861 = vrot.lane.b32.xlu0 %v1850, 32
        %v1862 = vpop.permute.xlu0 %1861
        %1867 = vst.msk [vmem:[#allocation5] sm:$0xff] %vm899, %v1856
        %1868 = vst.msk [vmem:[#allocation5 + $0x18] sm:$0xff] %vm899, %v1858
        %1869 = vst.msk [vmem:[#allocation5 + $0x30] sm:$0xff] %vm899, %v1860
        %1870 = vst.msk [vmem:[#allocation5 + $0x48] sm:$0xf] %vm903, %v1862
        %v1871 = vld [vmem:[#allocation4 + $0x2] sm:$0xff]
        %v1872 = vld [vmem:[#allocation4 + $0xa] sm:$0xff]
        %v1873 = vld [vmem:[#allocation4 + $0x12] sm:$0xff]
        %v1874 = vld [vmem:[#allocation4 + $0x1a] sm:$0xf]
        %1879 = vrot.lane.b32.xlu0 %v1871, 64
        %v1880 = vpop.permute.xlu0 %1879
        %1881 = vrot.lane.b32.xlu0 %v1872, 64
        %v1882 = vpop.permute.xlu0 %1881
        %1883 = vrot.lane.b32.xlu0 %v1873, 64
        %v1884 = vpop.permute.xlu0 %1883
        %1885 = vrot.lane.b32.xlu0 %v1874, 64
        %v1886 = vpop.permute.xlu0 %1885
        %1891 = vst.msk [vmem:[#allocation5] sm:$0xff] %vm925, %v1880
        %1892 = vst.msk [vmem:[#allocation5 + $0x18] sm:$0xff] %vm925, %v1882
        %1893 = vst.msk [vmem:[#allocation5 + $0x30] sm:$0xff] %vm925, %v1884
        %1894 = vst.msk [vmem:[#allocation5 + $0x48] sm:$0xf] %vm929, %v1886
        %v1895 = vld [vmem:[#allocation4 + $0x8] sm:$0xff]
        %v1896 = vld [vmem:[#allocation4 + $0x10] sm:$0xff]
        %v1897 = vld [vmem:[#allocation4 + $0x18] sm:$0xff]
        %v1898 = vld [vmem:[#allocation4 + $0x20] sm:$0xf]
        %1903 = vrot.lane.b32.xlu0 %v1895, 96
        %v1904 = vpop.permute.xlu0 %1903
        %1905 = vrot.lane.b32.xlu0 %v1896, 96
        %v1906 = vpop.permute.xlu0 %1905
        %1907 = vrot.lane.b32.xlu0 %v1897, 96
        %v1908 = vpop.permute.xlu0 %1907
        %1909 = vrot.lane.b32.xlu0 %v1898, 96
        %v1910 = vpop.permute.xlu0 %1909
        %1915 = vst.msk [vmem:[#allocation5] sm:$0xff] %vm951, %v1904
        %1916 = vst.msk [vmem:[#allocation5 + $0x18] sm:$0xff] %vm951, %v1906
        %1917 = vst.msk [vmem:[#allocation5 + $0x30] sm:$0xff] %vm951, %v1908
        %1918 = vst.msk [vmem:[#allocation5 + $0x48] sm:$0xf] %vm955, %v1910
        %v1919 = vld [vmem:[#allocation4 + $0x9] sm:$0xff]
        %v1920 = vld [vmem:[#allocation4 + $0x11] sm:$0xff]
        %v1921 = vld [vmem:[#allocation4 + $0x19] sm:$0xff]
        %v1922 = vld [vmem:[#allocation4 + $0x21] sm:$0xf]
        %1923 = vst.msk [vmem:[#allocation5 + $0x8] sm:$0xff] %vm859, %v1919
        %1924 = vst.msk [vmem:[#allocation5 + $0x20] sm:$0xff] %vm859, %v1920
        %1925 = vst.msk [vmem:[#allocation5 + $0x38] sm:$0xff] %vm859, %v1921
        %1926 = vst.msk [vmem:[#allocation5 + $0x50] sm:$0xf] %vm866, %v1922
        %v1927 = vld [vmem:[#allocation4 + $0xa] sm:$0xff]
        %v1928 = vld [vmem:[#allocation4 + $0x12] sm:$0xff]
        %v1929 = vld [vmem:[#allocation4 + $0x1a] sm:$0xff]
        %v1930 = vld [vmem:[#allocation4 + $0x22] sm:$0xf]
        %1935 = vrot.lane.b32.xlu0 %v1927, 32
        %v1936 = vpop.permute.xlu0 %1935
        %1937 = vrot.lane.b32.xlu0 %v1928, 32
        %v1938 = vpop.permute.xlu0 %1937
        %1939 = vrot.lane.b32.xlu0 %v1929, 32
        %v1940 = vpop.permute.xlu0 %1939
        %1941 = vrot.lane.b32.xlu0 %v1930, 32
        %v1942 = vpop.permute.xlu0 %1941
        %1947 = vst.msk [vmem:[#allocation5 + $0x8] sm:$0xff] %vm899, %v1936
        %1948 = vst.msk [vmem:[#allocation5 + $0x20] sm:$0xff] %vm899, %v1938
        %1949 = vst.msk [vmem:[#allocation5 + $0x38] sm:$0xff] %vm899, %v1940
        %1950 = vst.msk [vmem:[#allocation5 + $0x50] sm:$0xf] %vm903, %v1942
        %v1951 = vld [vmem:[#allocation4 + $0x10] sm:$0xff]
        %v1952 = vld [vmem:[#allocation4 + $0x18] sm:$0xff]
        %v1953 = vld [vmem:[#allocation4 + $0x20] sm:$0xff]
        %v1954 = vld [vmem:[#allocation4 + $0x28] sm:$0xf]
        %1959 = vrot.lane.b32.xlu0 %v1951, 64
        %v1960 = vpop.permute.xlu0 %1959
        %1961 = vrot.lane.b32.xlu0 %v1952, 64
        %v1962 = vpop.permute.xlu0 %1961
        %1963 = vrot.lane.b32.xlu0 %v1953, 64
        %v1964 = vpop.permute.xlu0 %1963
        %1965 = vrot.lane.b32.xlu0 %v1954, 64
        %v1966 = vpop.permute.xlu0 %1965
        %1971 = vst.msk [vmem:[#allocation5 + $0x8] sm:$0xff] %vm925, %v1960
        %1972 = vst.msk [vmem:[#allocation5 + $0x20] sm:$0xff] %vm925, %v1962
        %1973 = vst.msk [vmem:[#allocation5 + $0x38] sm:$0xff] %vm925, %v1964
        %1974 = vst.msk [vmem:[#allocation5 + $0x50] sm:$0xf] %vm929, %v1966
        %v1975 = vld [vmem:[#allocation4 + $0x11] sm:$0xff]
        %v1976 = vld [vmem:[#allocation4 + $0x19] sm:$0xff]
        %v1977 = vld [vmem:[#allocation4 + $0x21] sm:$0xff]
        %v1978 = vld [vmem:[#allocation4 + $0x29] sm:$0xf]
        %1983 = vrot.lane.b32.xlu0 %v1975, 96
        %v1984 = vpop.permute.xlu0 %1983
        %1985 = vrot.lane.b32.xlu0 %v1976, 96
        %v1986 = vpop.permute.xlu0 %1985
        %1987 = vrot.lane.b32.xlu0 %v1977, 96
        %v1988 = vpop.permute.xlu0 %1987
        %1989 = vrot.lane.b32.xlu0 %v1978, 96
        %v1990 = vpop.permute.xlu0 %1989
        %1995 = vst.msk [vmem:[#allocation5 + $0x8] sm:$0xff] %vm951, %v1984
        %1996 = vst.msk [vmem:[#allocation5 + $0x20] sm:$0xff] %vm951, %v1986
        %1997 = vst.msk [vmem:[#allocation5 + $0x38] sm:$0xff] %vm951, %v1988
        %1998 = vst.msk [vmem:[#allocation5 + $0x50] sm:$0xf] %vm955, %v1990
        %v1999 = vld [vmem:[#allocation4 + $0x12] sm:$0xff]
        %v2000 = vld [vmem:[#allocation4 + $0x1a] sm:$0xff]
        %v2001 = vld [vmem:[#allocation4 + $0x22] sm:$0xff]
        %v2002 = vld [vmem:[#allocation4 + $0x2a] sm:$0xf]
        %2003 = vst.msk [vmem:[#allocation5 + $0x10] sm:$0xff] %vm859, %v1999
        %2004 = vst.msk [vmem:[#allocation5 + $0x28] sm:$0xff] %vm859, %v2000
        %2005 = vst.msk [vmem:[#allocation5 + $0x40] sm:$0xff] %vm859, %v2001
        %2006 = vst.msk [vmem:[#allocation5 + $0x58] sm:$0xf] %vm866, %v2002
        %v2007 = vld [vmem:[#allocation5] sm:$0xff]
        %v2008 = vld [vmem:[#allocation5 + $0x8] sm:$0xff]
        %v2009 = vld [vmem:[#allocation5 + $0x10] sm:$0xff]
        %v2010 = vld [vmem:[#allocation5 + $0x18] sm:$0xff]
        %v2011 = vld [vmem:[#allocation5 + $0x20] sm:$0xff]
        %v2012 = vld [vmem:[#allocation5 + $0x28] sm:$0xff]
        %v2013 = vld [vmem:[#allocation5 + $0x30] sm:$0xff]
        %v2014 = vld [vmem:[#allocation5 + $0x38] sm:$0xff]
        %v2015 = vld [vmem:[#allocation5 + $0x40] sm:$0xff]
        %v2016 = vld [vmem:[#allocation5 + $0x48] sm:$0xf]
        %v2017 = vld [vmem:[#allocation5 + $0x50] sm:$0xf]
        %v2018 = vld [vmem:[#allocation5 + $0x58] sm:$0xf]
        %v2019 = vpack.c.bf16 %v2010, %v2007
        %v2020 = vpack.c.bf16 %v2011, %v2008
        %v2021 = vpack.c.bf16 %v2012, %v2009
        %v2022 = vpack.c.bf16 %v2016, %v2013
        %v2023 = vpack.c.bf16 %v2017, %v2014
        %v2024 = vpack.c.bf16 %v2018, %v2015
        %v2025 = vld [vmem:[%s9] sm:$0xf]
        %v2026 = vld [vmem:[%s9 + $0x4] sm:$0xf]
        %v2027 = vld [vmem:[%s9 + $0x8] sm:$0xf]
        %v2028 = vld [vmem:[%s9 + $0xc] sm:$0xf]
        %v2029 = vld [vmem:[%s9 + $0x10] sm:$0xf]
        %v2030 = vld [vmem:[%s9 + $0x14] sm:$0xf]
        %v2031 = vld [vmem:[%s9 + $0x18] sm:$0xf]
        %v2032 = vld [vmem:[%s9 + $0x1c] sm:$0xf]
        %v2033 = vld [vmem:[%s9 + $0x20] sm:$0xf]
        %v2034 = vld [vmem:[%s9 + $0x24] sm:$0xf]
        %v2035 = vld [vmem:[%s9 + $0x28] sm:$0xf]
        %v2036 = vld [vmem:[%s9 + $0x2c] sm:$0xf]
        %v2037 = vld [vmem:[%s9 + $0x30] sm:$0xf]
        %v2038 = vld [vmem:[%s9 + $0x34] sm:$0xf]
        %v2039 = vld [vmem:[%s9 + $0x38] sm:$0xf]
        %v2040 = vld [vmem:[%s9 + $0x3c] sm:$0xf]
        %v2041 = vld [vmem:[%s9 + $0x40] sm:$0xf]
        %v2042 = vld [vmem:[%s9 + $0x44] sm:$0xf]
        %v2043 = vld [vmem:[%s9 + $0x48] sm:$0xf]
        %v2044 = vld [vmem:[%s9 + $0x4c] sm:$0xf]
        %v2045 = vld [vmem:[%s9 + $0x50] sm:$0xf]
        %v2046 = vld [vmem:[%s9 + $0x54] sm:$0xf]
        %v2047 = vld [vmem:[%s9 + $0x58] sm:$0xf]
        %v2048 = vld [vmem:[%s9 + $0x5c] sm:$0xf]
        %v2049 = vld [vmem:[%s9 + $0x60] sm:$0xf]
        %v2050 = vld [vmem:[%s9 + $0x64] sm:$0xf]
        %v2051 = vld [vmem:[%s9 + $0x68] sm:$0xf]
        %v2052 = vld [vmem:[%s9 + $0x6c] sm:$0xf]
        %v2053 = vld [vmem:[%s9 + $0x70] sm:$0xf]
        %v2054 = vld [vmem:[%s9 + $0x74] sm:$0xf]
        %v2055 = vld [vmem:[%s9 + $0x78] sm:$0xf]
        %v2056 = vld [vmem:[%s9 + $0x7c] sm:$0xf]
        %v2057 = vld [vmem:[%s9 + $0x80] sm:$0xf]
        %v2058 = vld [vmem:[%s9 + $0x84] sm:$0xf]
        %v2059 = vld [vmem:[%s9 + $0x88] sm:$0xf]
        %v2060 = vld [vmem:[%s9 + $0x8c] sm:$0xf]
        %v2097 = vunpack.c.l.b16 %v2025
        %v2098 = vunpack.c.l.b16 %v2026
        %v2099 = vunpack.c.l.b16 %v2027
        %v2100 = vunpack.c.l.b16 %v2028
        %v2101 = vunpack.c.l.b16 %v2029
        %v2102 = vunpack.c.l.b16 %v2030
        %v2103 = vunpack.c.l.b16 %v2031
        %v2104 = vunpack.c.l.b16 %v2032
        %v2105 = vunpack.c.l.b16 %v2033
        %v2106 = vunpack.c.l.b16 %v2034
        %v2107 = vunpack.c.l.b16 %v2035
        %v2108 = vunpack.c.l.b16 %v2036
        %v2109 = vunpack.c.l.b16 %v2037
        %v2110 = vunpack.c.l.b16 %v2038
        %v2111 = vunpack.c.l.b16 %v2039
        %v2112 = vunpack.c.l.b16 %v2040
        %v2113 = vunpack.c.l.b16 %v2041
        %v2114 = vunpack.c.l.b16 %v2042
        %v2115 = vunpack.c.l.b16 %v2043
        %v2116 = vunpack.c.l.b16 %v2044
        %v2117 = vunpack.c.l.b16 %v2045
        %v2118 = vunpack.c.l.b16 %v2046
        %v2119 = vunpack.c.l.b16 %v2047
        %v2120 = vunpack.c.l.b16 %v2048
        %v2121 = vunpack.c.l.b16 %v2049
        %v2122 = vunpack.c.l.b16 %v2050
        %v2123 = vunpack.c.l.b16 %v2051
        %v2124 = vunpack.c.l.b16 %v2052
        %v2125 = vunpack.c.l.b16 %v2053
        %v2126 = vunpack.c.l.b16 %v2054
        %v2127 = vunpack.c.l.b16 %v2055
        %v2128 = vunpack.c.l.b16 %v2056
        %v2129 = vunpack.c.l.b16 %v2057
        %v2130 = vunpack.c.l.b16 %v2058
        %v2131 = vunpack.c.l.b16 %v2059
        %v2132 = vunpack.c.l.b16 %v2060
        %v2133 = vpack.c.b16 %v2098, %v2097
        %v2134 = vpack.c.b16 %v2100, %v2099
        %v2135 = vpack.c.b16 %v2102, %v2101
        %v2136 = vpack.c.b16 %v2104, %v2103
        %v2137 = vpack.c.b16 %v2106, %v2105
        %v2138 = vpack.c.b16 %v2108, %v2107
        %v2139 = vpack.c.b16 %v2110, %v2109
        %v2140 = vpack.c.b16 %v2112, %v2111
        %v2141 = vpack.c.b16 %v2114, %v2113
        %v2142 = vpack.c.b16 %v2116, %v2115
        %v2143 = vpack.c.b16 %v2118, %v2117
        %v2144 = vpack.c.b16 %v2120, %v2119
        %v2145 = vpack.c.b16 %v2122, %v2121
        %v2146 = vpack.c.b16 %v2124, %v2123
        %v2147 = vpack.c.b16 %v2126, %v2125
        %v2148 = vpack.c.b16 %v2128, %v2127
        %v2149 = vpack.c.b16 %v2130, %v2129
        %v2150 = vpack.c.b16 %v2132, %v2131
        %v2170 = vsel %vm859, %v2021, 0
        %v2173 = vsel %vm859, %v2024, 0
        %2175 = vmatprep.subr.bf16.mxu0 0
        %2176 = vmatpush1.bf16.msra.mxu0 %v2133
        %2177 = vmatprep.subr.bf16.mxu0 0
        %2178 = vmatpush1.bf16.msra.mxu0 %v2134
        %2179 = vmatprep.subr.bf16.mxu0 0
        %2180 = vmatpush1.bf16.msra.mxu0 %v2135
        %2181 = vmatprep.subr.bf16.mxu0 0
        %2182 = vmatpush1.bf16.msra.mxu0 %v2136
        %2183 = vmatprep.subr.bf16.mxu0 0
        %2184 = vmatpush1.bf16.msra.mxu0 %v2137
        %2185 = vmatprep.subr.bf16.mxu0 0
        %2186 = vmatpush1.bf16.msra.mxu0 %v2138
        %2187 = vmatprep.subr.bf16.mxu0 0
        %2188 = vmatpush1.bf16.msra.mxu0 %v2139
        %2189 = vmatprep.subr.bf16.mxu0 0
        %2190 = vmatpush1.bf16.msra.mxu0 %v2140
        %2191 = vmatprep.subr.bf16.mxu0 0
        %2192 = vmatpush1.bf16.msra.mxu0 %v2141
        %2193 = vmatprep.subr.bf16.mxu0 0
        %2194 = vmatpush1.bf16.msra.mxu0 %v2142
        %2195 = vmatprep.subr.bf16.mxu0 0
        %2196 = vmatpush1.bf16.msra.mxu0 %v2143
        %2197 = vmatprep.subr.bf16.mxu0 0
        %2198 = vmatpush1.bf16.msra.mxu0 %v2144
        %2199 = vmatprep.subr.bf16.mxu0 0
        %2200 = vmatpush1.bf16.msra.mxu0 %v2145
        %2201 = vmatprep.subr.bf16.mxu0 0
        %2202 = vmatpush1.bf16.msra.mxu0 %v2146
        %2203 = vmatprep.subr.bf16.mxu0 0
        %2204 = vmatpush1.bf16.msra.mxu0 %v2147
        %2205 = vmatprep.subr.bf16.mxu0 0
        %2206 = vmatpush1.bf16.msra.mxu0 %v2148
        %2207 = vmatprep.mubr.bf16.mxu0 %v2020
        %2208 = vmatmul.mubr.bf16.gmra.mrb[0].mxu0 %v2019
        %v2209 = vpop.f32.mrb[0].mxu0
        %v2210 = vadd.f32 0.0, %v2209
        %v2211 = vpop.f32.mrb[0].mxu0
        %v2212 = vpop.f32.mrb[0].mxu0
        %v2213 = vadd.f32 0.0, %v2212
        %v2214 = vpop.f32.mrb[0].mxu0
        %2215 = vmatprep.mubr.bf16.mxu0 %v2023
        %2216 = vmatmul.mubr.bf16.gmra.mrb[0].mxu0 %v2022
        %v2217 = vpop.f32.mrb[0].mxu0
        %v2218 = vadd.f32 0.0, %v2217
        %v2219 = vpop.f32.mrb[0].mxu0
        %v2220 = vpop.f32.mrb[0].mxu0
        %v2221 = vadd.f32 0.0, %v2220
        %v2222 = vpop.f32.mrb[0].mxu0
        %2223 = vdwg.mxu0
        %2224 = vmatprep.subr.bf16.mxu0 0
        %2225 = vmatpush1.bf16.msra.mxu0 %v2149
        %2226 = vmatprep.subr.bf16.mxu0 0
        %2227 = vmatpush1.bf16.msra.mxu0 %v2150
        %2228 = vmatprep.subr.bf16.mxu0 0
        %2229 = vmatpush1.bf16.msra.mxu0 0
        %2230 = vmatprep.subr.bf16.mxu0 0
        %2231 = vmatpush1.bf16.msra.mxu0 0
        %2232 = vmatprep.subr.bf16.mxu0 0
        %2233 = vmatpush1.bf16.msra.mxu0 0
        %2234 = vmatprep.subr.bf16.mxu0 0
        %2235 = vmatpush1.bf16.msra.mxu0 0
        %2236 = vmatprep.subr.bf16.mxu0 0
        %2237 = vmatpush1.bf16.msra.mxu0 0
        %2238 = vmatprep.subr.bf16.mxu0 0
        %2239 = vmatpush1.bf16.msra.mxu0 0
        %2240 = vmatprep.subr.bf16.mxu0 0
        %2241 = vmatpush1.bf16.msra.mxu0 0
        %2242 = vmatprep.subr.bf16.mxu0 0
        %2243 = vmatpush1.bf16.msra.mxu0 0
        %2244 = vmatprep.subr.bf16.mxu0 0
        %2245 = vmatpush1.bf16.msra.mxu0 0
        %2246 = vmatprep.subr.bf16.mxu0 0
        %2247 = vmatpush1.bf16.msra.mxu0 0
        %2248 = vmatprep.subr.bf16.mxu0 0
        %2249 = vmatpush1.bf16.msra.mxu0 0
        %2250 = vmatprep.subr.bf16.mxu0 0
        %2251 = vmatpush1.bf16.msra.mxu0 0
        %2252 = vmatprep.subr.bf16.mxu0 0
        %2253 = vmatpush1.bf16.msra.mxu0 0
        %2254 = vmatprep.subr.bf16.mxu0 0
        %2255 = vmatpush1.bf16.msra.mxu0 0
        %2256 = vmatprep.mubr.bf16.mxu0 0
        %2257 = vmatmul.mubr.bf16.gmra.mrb[0].mxu0 %v2170
        %v2258 = vpop.f32.mrb[0].mxu0
        %v2259 = vadd.f32 %v2210, %v2258
        %v2260 = vpop.f32.mrb[0].mxu0
        %v2261 = vpop.f32.mrb[0].mxu0
        %v2262 = vadd.f32 %v2213, %v2261
        %v2263 = vpop.f32.mrb[0].mxu0
        %2264 = vmatprep.mubr.bf16.mxu0 0
        %2265 = vmatmul.mubr.bf16.gmra.mrb[0].mxu0 %v2173
        %v2266 = vpop.f32.mrb[0].mxu0
        %v2267 = vadd.f32 %v2218, %v2266
        %v2268 = vpop.f32.mrb[0].mxu0
        %v2269 = vpop.f32.mrb[0].mxu0
        %v2270 = vadd.f32 %v2221, %v2269
        %v2271 = vpop.f32.mrb[0].mxu0
        %2272 = vdwg.mxu0
        %v2273 = vmax.f32 %v2259, 0.0
        %v2274 = vmax.f32 %v2262, 0.0
        %v2275 = vmax.f32 %v2267, 0.0
        %v2276 = vmax.f32 %v2270, 0.0
        %v2277 = vpack.c.bf16 %v2274, %v2273
        %v2278 = vpack.c.bf16 %v2276, %v2275
        %v2279 = vld [vmem:[%s10] sm:$0xf]
        %v2281 = vsel %vm1767, %v2277, 0
        %v2284 = vsel %vm1767, %v2278, 0
        %v2287 = vsel %vm1774, %v2279, 0
        %2289 = vmatprep.subr.bf16.mxu0 0
        %2290 = vmatpush1.bf16.msra.mxu0 %v2287
        %2291 = vmatprep.subr.bf16.mxu0 0
        %2292 = vmatpush1.bf16.msra.mxu0 0
        %2293 = vmatprep.subr.bf16.mxu0 0
        %2294 = vmatpush1.bf16.msra.mxu0 0
        %2295 = vmatprep.subr.bf16.mxu0 0
        %2296 = vmatpush1.bf16.msra.mxu0 0
        %2297 = vmatprep.subr.bf16.mxu0 0
        %2298 = vmatpush1.bf16.msra.mxu0 0
        %2299 = vmatprep.subr.bf16.mxu0 0
        %2300 = vmatpush1.bf16.msra.mxu0 0
        %2301 = vmatprep.subr.bf16.mxu0 0
        %2302 = vmatpush1.bf16.msra.mxu0 0
        %2303 = vmatprep.subr.bf16.mxu0 0
        %2304 = vmatpush1.bf16.msra.mxu0 0
        %2305 = vmatprep.subr.bf16.mxu0 0
        %2306 = vmatpush1.bf16.msra.mxu0 0
        %2307 = vmatprep.subr.bf16.mxu0 0
        %2308 = vmatpush1.bf16.msra.mxu0 0
        %2309 = vmatprep.subr.bf16.mxu0 0
        %2310 = vmatpush1.bf16.msra.mxu0 0
        %2311 = vmatprep.subr.bf16.mxu0 0
        %2312 = vmatpush1.bf16.msra.mxu0 0
        %2313 = vmatprep.subr.bf16.mxu0 0
        %2314 = vmatpush1.bf16.msra.mxu0 0
        %2315 = vmatprep.subr.bf16.mxu0 0
        %2316 = vmatpush1.bf16.msra.mxu0 0
        %2317 = vmatprep.subr.bf16.mxu0 0
        %2318 = vmatpush1.bf16.msra.mxu0 0
        %2319 = vmatprep.subr.bf16.mxu0 0
        %2320 = vmatpush1.bf16.msra.mxu0 0
        %2321 = vmatprep.mubr.bf16.mxu0 0
        %2322 = vmatmul.mubr.bf16.gmra.mrb[0].mxu0 %v2281
        %v2323 = vpop.f32.mrb[0].mxu0
        %v2324 = vadd.f32 0.0, %v2323
        %v2325 = vpop.f32.mrb[0].mxu0
        %v2326 = vpop.f32.mrb[0].mxu0
        %v2327 = vadd.f32 0.0, %v2326
        %v2328 = vpop.f32.mrb[0].mxu0
        %2329 = vmatprep.mubr.bf16.mxu0 0
        %2330 = vmatmul.mubr.bf16.gmra.mrb[0].mxu0 %v2284
        %v2331 = vpop.f32.mrb[0].mxu0
        %v2332 = vadd.f32 0.0, %v2331
        %v2333 = vpop.f32.mrb[0].mxu0
        %v2334 = vpop.f32.mrb[0].mxu0
        %v2335 = vadd.f32 0.0, %v2334
        %v2336 = vpop.f32.mrb[0].mxu0
        %2337 = vdwg.mxu0
        %v2338 = vadd.f32 %v1827, %v2324
        %v2339 = vadd.f32 %v1828, %v2327
        %v2340 = vadd.f32 %v1829, %v2332
        %v2341 = vadd.f32 %v1830, %v2335
        %v2342 = vmax.f32 %v2338, 0.0
        %v2343 = vmax.f32 %v2339, 0.0
        %v2344 = vmax.f32 %v2340, 0.0
        %v2345 = vmax.f32 %v2341, 0.0
        %2346 = vst.msk [vmem:[%s379] sm:$0xf] %vm866, %v2342
        %s2347 = scalar_lea.vmem %s379, 4 [#allocation6]
        %2348 = vst.msk [vmem:[%s2347] sm:$0xf] %vm866, %v2343
        %s2349 = scalar_lea.vmem %s379, 8 [#allocation6]
        %2350 = vst.msk [vmem:[%s2349] sm:$0xf] %vm866, %v2344
        %s2351 = scalar_lea.vmem %s379, 12 [#allocation6]
        %2352 = vst.msk [vmem:[%s2351] sm:$0xf] %vm866, %v2345
        %s2353 = sand.u32 %s269, 1
        %s2354 = scalar_lea.sflag [#allocation7], %s2353
        %s2355 = sand.u32 %s269, 1
        %s2356 = smul.addr %s2355, 16
        %s2357 = scalar_lea.vmem [#allocation6], %s2356
        // Predicated region
        $region65: #{_lambda_.1} parent=63 // pred_check
          %p2358 = pneg %p279
        $region66: #{_lambda_.1} parent=63 // pred_check_branch
          %2360 = sbr.rel (%p2358) target = $region68
        $region67: #{_lambda_.1} parent=63 // pred_region
          %s2362 = ssub.s32 256, 256
          %2363 = vsyncadd %s2354, %s2362
          %s2364 = smul.addr %s25, 4
          %s2365 = smul.addr %s2364, 64
          %s2366 = scalar_lea.hbm %s11, %s2365
          %s2367 = sshll.u32 %s2357, 4
          %s2368 = int_to_ptr.vmem [resolvable:$true] %s2367
          %2373 = dma.vmem_to_hbm [thread:$0]  %s2368, 256, %s2366, %s2354, 64, 64, 4
        $region68: #{_lambda_.1} parent=63 // pred_fallthru
          _
      $region64: #{_lambda_.1} parent=5 // pred_fallthru
        _
      %p2374 = scmp.le.s32.totalorder 2, %s20
      // Predicated region
      $region69: #{_lambda_.1} parent=5 // pred_check
        %p2375 = pneg %p2374
      $region70: #{_lambda_.1} parent=5 // pred_check_branch
        %2377 = sbr.rel (%p2375) target = $region72
      $region71: #{_lambda_.1} parent=5 // pred_region
        %s2378 = ssub.s32 %s20, 2
        // Predicated region
        $region73: #{_lambda_.1} parent=71 // pred_check
          %p2379 = pneg %p285
        $region74: #{_lambda_.1} parent=71 // pred_check_branch
          %2381 = sbr.rel (%p2379) target = $region76
        $region75: #{_lambda_.1} parent=71 // pred_region
          %s2382 = sand.u32 %s270, 1
          %s2383 = scalar_lea.sflag [#allocation7], %s2382
          %s2384 = sand.u32 %s270, 1
          %s2385 = smul.addr %s2384, 16
          %s2386 = scalar_lea.vmem [#allocation6], %s2385
          %2387 = dma.done %s2383, 256
        $region76: #{_lambda_.1} parent=71 // pred_fallthru
          _
      $region72: #{_lambda_.1} parent=5 // pred_fallthru
        _
    $region6: #{_lambda_.1} parent=1 // loop_footer
      %s24 = sadd.s32 1, %s20
    $region7: #{_lambda_.1} parent=1 // loop_footer_branch
      %19 = sbr.rel target = $region3
    $region8: #{_lambda_.1} parent=1 // loop_exit
      _
    %2388 = vsyncpa [#allocation7], 1
    %s2389 = scalar_lea.sflag [#allocation7], 1
    %2390 = vsyncpa %s2389, 1

</llo_original>
